<compile_context>
chip_gen: v5e
topology: v5e:2x2
jax: 0.10.0
libtpu: 0.0.40
codegen_flags: <defaults>
</compile_context>

<pallas_src>
import jax
import jax.numpy as jnp
import numpy as np
from jax.experimental import pallas as pl
from jax.experimental.pallas import tpu as pltpu

N_FORC = 5                 # forcing feature count (NN input = 5 forcings + Sw0)
N_IN = N_FORC + 1          # snow-NN input width
T_LEN = 5                  # antecedent-temperature window (init_model tLen=5)
HID = 32                   # snow-NN hidden width
EPS = 0.0003               # self.eps in the module
LANE = 128                 # TPU lane width
MAX_SUB_TILE = 256         # sublanes per grid step -> 32768 basins / step
                           # (sized for v7x 64 MiB VMEM; 512-1024 OK on v6e/v5e)
VMEM_LIMIT_BYTES = 48 * 1024 * 1024   # explicit scoped-VMEM limit (< v7x phys)

N_OUT = 12
OUT_NAMES = ["Swt", "Sit", "Sst", "Qb", "Qs", "E",
             "Ew", "Ei", "Es", "Sslt", "Ssst", "alpha"]

# flat SMEM packing of the snow-NN parameters: W1 | b1 | W2 | b2
W1_OFF = 0
B1_OFF = HID * N_IN          # 192
W2_OFF = B1_OFF + HID        # 224
B2_OFF = W2_OFF + HID        # 256
NN_PARAM_LEN = B2_OFF + 1    # 257


def _exphydro_kernel(forc_ref, s0_ref, sta_ref, dyn_ref, ant_ref, nnp_ref,
                     out_ref, ant_out_ref):
    # Each `ref[k]` is a full (sub_tile, 128) f32 tile -> full-vreg VPU work.
    P, T, Ep = forc_ref[0], forc_ref[1], forc_ref[2]
    Sw0, Si0, Ssl0, Sss0 = s0_ref[0], s0_ref[1], s0_ref[2], s0_ref[3]
    parTMIN, parDDF, parTMAX = sta_ref[0], sta_ref[1], sta_ref[2]
    parQMAX, parSMAX, parIMAX = sta_ref[3], sta_ref[4], sta_ref[5]
    parF, parALPHA = dyn_ref[0], dyn_ref[1]

    # antT history shift + mean over the NEW window (full-vreg row ops).
    ant_sum = T
    for t in range(1, T_LEN):
        row = ant_ref[t]
        ant_out_ref[t - 1] = row
        ant_sum = ant_sum + row
    ant_out_ref[T_LEN - 1] = T
    mean_antT = ant_sum * (1.0 / T_LEN)

    # Snow NN on the VPU: 32 scalar-broadcast FMA chains, weights in SMEM.
    # Dropout is identity (eval mode).
    feats = (P, T, Ep, forc_ref[3], forc_ref[4], Sw0)
    z2 = None
    for j in range(HID):
        z = feats[0] * nnp_ref[W1_OFF + j * N_IN]
        for f in range(1, N_IN):
            z = z + feats[f] * nnp_ref[W1_OFF + j * N_IN + f]
        z = z + nnp_ref[B1_OFF + j]
        h = jnp.maximum(z, 0.0)
        c = h * nnp_ref[W2_OFF + j]
        z2 = c if z2 is None else z2 + c
    z2 = z2 + nnp_ref[B2_OFF]
    parRSUB = 1.0 / (1.0 + jnp.exp(-z2))          # exact sigmoid (see header)

    # ---------------- snow bucket ----------------
    pr = P * (T >= parTMIN).astype(jnp.float32)
    ps = P * (T < parTMIN).astype(jnp.float32)
    melt = jnp.clip(parDDF * (T - parTMAX), 0.0, Sw0)
    Ew = jnp.minimum(Sw0 * parRSUB, Sw0 - melt)
    Swt = Sw0 - melt - Ew + ps

    # ---------------- vegetation bucket ----------------
    Ei = jnp.clip(Si0, 0.0, jnp.maximum(Ep - Ew, 0.0))
    Pe = jnp.maximum(pr + Si0 - parIMAX, 0.0)
    Sit = jnp.clip(pr + Si0 - Ei - Pe, 0.0, parIMAX)

    # ---------------- soil bucket ----------------
    Ss = jnp.minimum(Sss0 + Ssl0, parSMAX - EPS)
    freeze = mean_antT < 0.0
    minSss = jnp.where(freeze, Sss0, 0.0)
    maxSss = jnp.where(freeze, Ss, Sss0)
    Sss = minSss + (maxSss - minSss) * parALPHA
    Ssl = jnp.maximum(Ss - Sss, EPS)
    Qb = jnp.clip(parQMAX * jnp.exp(-parF * (parSMAX - Sss - Ssl)),
                  0.0, jnp.minimum(Ssl - EPS, parQMAX))
    cr = jnp.clip(Ssl / (parSMAX - Sss), 0.0, 1.0)
    Es = jnp.clip((Ep - Ei - Ew) * cr, 0.0, jnp.maximum(Ssl - Qb, 0.0))
    Ssl = Ssl + Pe + melt - Es - Qb
    Qs = jnp.maximum(Ssl - (parSMAX - Sss), 0.0)
    Sslt = Ssl - Qs

    # fused output slab: 12 full-width unmasked row stores.
    out_ref[0] = Swt
    out_ref[1] = Sit
    out_ref[2] = Sslt + Sss
    out_ref[3] = Qb
    out_ref[4] = Qs
    out_ref[5] = Ew + Ei + Es
    out_ref[6] = Ew
    out_ref[7] = Ei
    out_ref[8] = Es
    out_ref[9] = Sslt
    out_ref[10] = Sss
    out_ref[11] = parALPHA


def _round_up(x, m):
    return ((x + m - 1) // m) * m


def _choose_tiling(n):
    """-> (sublane tile per grid step, total padded sublanes)."""
    s_needed = max(1, -(-n // LANE))
    s_tile = min(MAX_SUB_TILE, _round_up(s_needed, 8))
    s_tot = _round_up(s_needed, s_tile)     # always a multiple of the tile
    return s_tile, s_tot


def exphydro_forward_cm(forc_cm, s0_cm, sta_cm, dyn_cm, ant_cm, nnp_flat):
    """Core single step in channel-major, basin-tiled layout.

    forc_cm [5,S,128]; s0_cm [4,S,128]; sta_cm [6,S,128]; dyn_cm [2,S,128]
    (parF, parALPHA); ant_cm [T_LEN,S,128]; nnp_flat [257] = W1|b1|W2|b2.
    Returns (out_slab [12,S,128], antT_new_cm [T_LEN,S,128]).
    Keep state/params in this layout across time steps to avoid per-step
    transposes/pads around the kernel.
    """
    f32 = jnp.float32
    s_tot = forc_cm.shape[1]
    s_tile = min(MAX_SUB_TILE, s_tot)
    assert s_tot % s_tile == 0 and s_tile % 8 == 0, (s_tot, s_tile)
    grid = (s_tot // s_tile,)

    def tile_spec(c):
        return pl.BlockSpec((c, s_tile, LANE), lambda i: (0, i, 0))

    return pl.pallas_call(
        _exphydro_kernel,
        grid=grid,
        in_specs=[tile_spec(N_FORC), tile_spec(4), tile_spec(6), tile_spec(2),
                  tile_spec(T_LEN),
                  pl.BlockSpec(memory_space=pltpu.MemorySpace.SMEM)],
        out_specs=(tile_spec(N_OUT), tile_spec(T_LEN)),
        out_shape=(jax.ShapeDtypeStruct((N_OUT, s_tot, LANE), f32),
                   jax.ShapeDtypeStruct((T_LEN, s_tot, LANE), f32)),
        compiler_params=pltpu.CompilerParams(
            dimension_semantics=("parallel",),
            vmem_limit_bytes=VMEM_LIMIT_BYTES),
    )(forc_cm, s0_cm, sta_cm, dyn_cm, ant_cm, nnp_flat)


def _to_cm(x_nc, n_pad, pad_value=0.0):
    """[N, C] -> channel-major, basin-tiled [C, n_pad//128, 128]."""
    n, c = x_nc.shape
    x = jnp.transpose(x_nc.astype(jnp.float32))
    x = jnp.pad(x, ((0, 0), (0, n_pad - n)), constant_values=pad_value)
    return x.reshape(c, n_pad // LANE, LANE)


@jax.jit
def exphydro_forward(forcing, S0, staParas, dynParas, antT, nn_params):
    """PyTorch-layout convenience wrapper. Returns (output_dict, antT_new).

    forcing [N,5]; S0 [N,nMul,4]; staParas [N,nMul,6]; dynParas [N,nMul,3];
    antT [N,nMul,T_LEN]; nn_params = (W1 [32,6], b1 [32], W2 [1,32], b2 [1])
    in PyTorch nn.Linear layout.
    """
    n, nmul = S0.shape[0], S0.shape[1]
    assert nmul == 1, "snow-NN concat in the reference module requires nMul == 1"
    w1, b1, w2, b2 = nn_params
    f32 = jnp.float32

    _, s_tot = _choose_tiling(n)
    n_pad = s_tot * LANE

    forc_cm = _to_cm(forcing, n_pad)
    s0_cm = _to_cm(S0[:, 0, :], n_pad)
    sta_cm = _to_cm(staParas[:, 0, :], n_pad, pad_value=1.0)  # finite padded lanes
    dyn_cm = _to_cm(dynParas[:, 0, :2], n_pad)                # parF, parALPHA only
    ant_cm = _to_cm(antT[:, 0, :], n_pad)

    nnp_flat = jnp.concatenate([
        w1.astype(f32).reshape(-1), b1.astype(f32).reshape(-1),
        w2.astype(f32).reshape(-1), b2.astype(f32).reshape(-1)])

    out_slab, ant_new = exphydro_forward_cm(forc_cm, s0_cm, sta_cm, dyn_cm,
                                            ant_cm, nnp_flat)

    out_flat = out_slab.reshape(N_OUT, n_pad)[:, :n]
    output = {name: out_flat[k].reshape(n, nmul)
              for k, name in enumerate(OUT_NAMES)}
    antT_new = ant_new.reshape(T_LEN, n_pad)[:, :n].T.reshape(n, nmul, T_LEN)
    return output, antT_new


def _reference(forcing, S0, staParas, dynParas, antT, nn_params):
    """Plain-JAX mirror of the PyTorch forward (eval mode) for checking."""
    w1, b1, w2, b2 = nn_params
    n, nmul = S0.shape[0], S0.shape[1]
    P = jnp.broadcast_to(forcing[:, 0:1], (n, nmul))
    T = jnp.broadcast_to(forcing[:, 1:2], (n, nmul))
    Ep = jnp.broadcast_to(forcing[:, 2:3], (n, nmul))
    antT_new = jnp.concatenate([antT[:, :, 1:], T[:, :, None]], axis=-1)
    Sw0, Si0, Ssl0, Sss0 = (S0[:, :, k] for k in range(4))
    parTMIN, parDDF, parTMAX, parQMAX, parSMAX, parIMAX = (
        staParas[:, :, k] for k in range(6))
    parF, parALPHA = dynParas[:, :, 0], dynParas[:, :, 1]
    x = jnp.concatenate([forcing, Sw0], axis=-1)          # [N, 6] (nMul == 1)
    hp = jax.lax.Precision.HIGHEST
    h = jnp.maximum(jnp.dot(x, w1.T, precision=hp) + b1, 0.0)
    parRSUB = jax.nn.sigmoid(jnp.dot(h, w2.T, precision=hp) + b2)
    pr = P * (T >= parTMIN)
    ps = P * (T < parTMIN)
    melt = jnp.clip(parDDF * (T - parTMAX), 0.0, Sw0)
    Ew = jnp.minimum(Sw0 * parRSUB, Sw0 - melt)
    Swt = Sw0 - melt - Ew + ps
    Ei = jnp.clip(Si0, 0.0, jnp.maximum(Ep - Ew, 0.0))
    Pe = jnp.maximum(pr + Si0 - parIMAX, 0.0)
    Sit = jnp.clip(pr + Si0 - Ei - Pe, 0.0, parIMAX)
    Ss = jnp.minimum(Sss0 + Ssl0, parSMAX - EPS)
    freeze = jnp.mean(antT_new, axis=-1) < 0.0
    minSss = jnp.where(freeze, Sss0, 0.0)
    maxSss = jnp.where(freeze, Ss, Sss0)
    Sss = minSss + (maxSss - minSss) * parALPHA
    Ssl = jnp.maximum(Ss - Sss, EPS)
    Qb = jnp.clip(parQMAX * jnp.exp(-parF * (parSMAX - Sss - Ssl)),
                  0.0, jnp.minimum(Ssl - EPS, parQMAX))
    cr = jnp.clip(Ssl / (parSMAX - Sss), 0.0, 1.0)
    Es = jnp.clip((Ep - Ei - Ew) * cr, 0.0, jnp.maximum(Ssl - Qb, 0.0))
    Ssl = Ssl + Pe + melt - Es - Qb
    Qs = jnp.maximum(Ssl - (parSMAX - Sss), 0.0)
    Sslt = Ssl - Qs
    out = {"Swt": Swt, "Sit": Sit, "Sst": Sslt + Sss, "Qb": Qb, "Qs": Qs,
           "E": Ew + Ei + Es, "Ew": Ew, "Ei": Ei, "Es": Es,
           "Sslt": Sslt, "Ssst": Sss, "alpha": parALPHA}
    return out, antT_new


if __name__ == "__main__":
    N = 8          # number of basins
    NMUL = 1       # nMul (must be 1 for the snow-NN concat to type-check)

    key = jax.random.PRNGKey(0)
    ks = jax.random.split(key, 24)

    # forcing: [P, T, Ep, extra1, extra2]
    P = jax.random.uniform(ks[0], (N, 1), minval=0.0, maxval=20.0)
    T = jax.random.uniform(ks[1], (N, 1), minval=-10.0, maxval=20.0)
    Ep = jax.random.uniform(ks[2], (N, 1), minval=0.0, maxval=8.0)
    extra = jax.random.normal(ks[3], (N, 2))
    forcing = jnp.concatenate([P, T, Ep, extra], axis=-1).astype(jnp.float32)

    # initial storages [N, nMul, 4]: Sw, Si, Ssl, Sss
    S0 = jnp.stack([
        jax.random.uniform(ks[4], (N, NMUL), minval=0.0, maxval=10.0),
        jax.random.uniform(ks[5], (N, NMUL), minval=0.0, maxval=1.0),
        jax.random.uniform(ks[6], (N, NMUL), minval=1.0, maxval=100.0),
        jax.random.uniform(ks[7], (N, NMUL), minval=0.0, maxval=50.0),
    ], axis=-1).astype(jnp.float32)

    # static parameters [N, nMul, 6]: TMIN, DDF, TMAX, QMAX, SMAX, IMAX
    staParas = jnp.stack([
        jax.random.uniform(ks[8], (N, NMUL), minval=-3.0, maxval=0.0),
        jax.random.uniform(ks[9], (N, NMUL), minval=0.0, maxval=5.0),
        jax.random.uniform(ks[10], (N, NMUL), minval=0.0, maxval=3.0),
        jax.random.uniform(ks[11], (N, NMUL), minval=10.0, maxval=50.0),
        jax.random.uniform(ks[12], (N, NMUL), minval=100.0, maxval=1500.0),
        jax.random.uniform(ks[13], (N, NMUL), minval=0.1, maxval=1.0),
    ], axis=-1).astype(jnp.float32)

    # dynamic parameters [N, nMul, 3]: F, ALPHA, RSUB(unused, NN overrides)
    dynParas = jnp.stack([
        jax.random.uniform(ks[14], (N, NMUL), minval=0.0, maxval=0.1),
        jax.random.uniform(ks[15], (N, NMUL), minval=0.0, maxval=1.0),
        jnp.full((N, NMUL), 0.5, jnp.float32),
    ], axis=-1).astype(jnp.float32)

    # antecedent temperature history [N, nMul, tLen]
    antT = jax.random.uniform(ks[16], (N, NMUL, T_LEN),
                              minval=-5.0, maxval=5.0).astype(jnp.float32)

    # snow-NN parameters in PyTorch nn.Linear layout
    a1, a2 = 1.0 / np.sqrt(6.0), 1.0 / np.sqrt(32.0)
    w1 = jax.random.uniform(ks[17], (HID, N_IN), minval=-a1, maxval=a1).astype(jnp.float32)
    b1 = jax.random.uniform(ks[18], (HID,), minval=-a1, maxval=a1).astype(jnp.float32)
    w2 = jax.random.uniform(ks[19], (1, HID), minval=-a2, maxval=a2).astype(jnp.float32)
    b2 = jax.random.uniform(ks[20], (1,), minval=-a2, maxval=a2).astype(jnp.float32)
    nn_params = (w1, b1, w2, b2)

    out, antT_new = exphydro_forward(forcing, S0, staParas, dynParas, antT,
                                     nn_params)
    jax.block_until_ready((out, antT_new))

    ref_out, ref_antT = _reference(forcing, S0, staParas, dynParas, antT,
                                   nn_params)
    for name in OUT_NAMES:
        np.testing.assert_allclose(np.asarray(out[name]),
                                   np.asarray(ref_out[name]),
                                   rtol=1e-4, atol=1e-3)
    np.testing.assert_allclose(np.asarray(antT_new), np.asarray(ref_antT),
                               rtol=1e-6, atol=1e-6)
    print("KERNEL_OK")
</pallas_src>

<mosaic_0001>
module attributes {stable_mosaic.version = 11 : i64} {
  func.func @_exphydro_kernel(%arg0: i32, %arg1: memref<5x8x128xf32, #tpu.memory_space<vmem>>, %arg2: memref<4x8x128xf32, #tpu.memory_space<vmem>>, %arg3: memref<6x8x128xf32, #tpu.memory_space<vmem>>, %arg4: memref<2x8x128xf32, #tpu.memory_space<vmem>>, %arg5: memref<5x8x128xf32, #tpu.memory_space<vmem>>, %arg6: memref<257xf32, #tpu.memory_space<smem>>, %arg7: memref<12x8x128xf32, #tpu.memory_space<vmem>>, %arg8: memref<5x8x128xf32, #tpu.memory_space<vmem>>) attributes {dimension_semantics = [#tpu.dimension_semantics<parallel>], iteration_bounds = array<i64: 1>, scalar_prefetch = 0 : i64, scratch_operands = 0 : i64, tpu.core_type = #tpu.core_type<tc>, window_params = [{transform_indices = @transform_0, window_bounds = array<i64: 5, 8, 128>}, {transform_indices = @transform_1, window_bounds = array<i64: 4, 8, 128>}, {transform_indices = @transform_2, window_bounds = array<i64: 6, 8, 128>}, {transform_indices = @transform_3, window_bounds = array<i64: 2, 8, 128>}, {transform_indices = @transform_4, window_bounds = array<i64: 5, 8, 128>}, {transform_indices = @transform_5, window_bounds = array<i64: 257>}, {transform_indices = @transform_6, window_bounds = array<i64: 12, 8, 128>}, {transform_indices = @transform_7, window_bounds = array<i64: 5, 8, 128>}]} {
    %c0 = arith.constant 0 : index
    %c0_0 = arith.constant 0 : index
    %c0_1 = arith.constant 0 : index
    %0 = vector.load %arg1[%c0, %c0_0, %c0_1] : memref<5x8x128xf32, #tpu.memory_space<vmem>>, vector<1x8x128xf32>
    %1 = vector.shape_cast %0 : vector<1x8x128xf32> to vector<8x128xf32>
    %c1 = arith.constant 1 : index
    %c0_2 = arith.constant 0 : index
    %c0_3 = arith.constant 0 : index
    %2 = vector.load %arg1[%c1, %c0_2, %c0_3] : memref<5x8x128xf32, #tpu.memory_space<vmem>>, vector<1x8x128xf32>
    %3 = vector.shape_cast %2 : vector<1x8x128xf32> to vector<8x128xf32>
    %c2 = arith.constant 2 : index
    %c0_4 = arith.constant 0 : index
    %c0_5 = arith.constant 0 : index
    %4 = vector.load %arg1[%c2, %c0_4, %c0_5] : memref<5x8x128xf32, #tpu.memory_space<vmem>>, vector<1x8x128xf32>
    %5 = vector.shape_cast %4 : vector<1x8x128xf32> to vector<8x128xf32>
    %c0_6 = arith.constant 0 : index
    %c0_7 = arith.constant 0 : index
    %c0_8 = arith.constant 0 : index
    %6 = vector.load %arg2[%c0_6, %c0_7, %c0_8] : memref<4x8x128xf32, #tpu.memory_space<vmem>>, vector<1x8x128xf32>
    %7 = vector.shape_cast %6 : vector<1x8x128xf32> to vector<8x128xf32>
    %c1_9 = arith.constant 1 : index
    %c0_10 = arith.constant 0 : index
    %c0_11 = arith.constant 0 : index
    %8 = vector.load %arg2[%c1_9, %c0_10, %c0_11] : memref<4x8x128xf32, #tpu.memory_space<vmem>>, vector<1x8x128xf32>
    %9 = vector.shape_cast %8 : vector<1x8x128xf32> to vector<8x128xf32>
    %c2_12 = arith.constant 2 : index
    %c0_13 = arith.constant 0 : index
    %c0_14 = arith.constant 0 : index
    %10 = vector.load %arg2[%c2_12, %c0_13, %c0_14] : memref<4x8x128xf32, #tpu.memory_space<vmem>>, vector<1x8x128xf32>
    %11 = vector.shape_cast %10 : vector<1x8x128xf32> to vector<8x128xf32>
    %c3 = arith.constant 3 : index
    %c0_15 = arith.constant 0 : index
    %c0_16 = arith.constant 0 : index
    %12 = vector.load %arg2[%c3, %c0_15, %c0_16] : memref<4x8x128xf32, #tpu.memory_space<vmem>>, vector<1x8x128xf32>
    %13 = vector.shape_cast %12 : vector<1x8x128xf32> to vector<8x128xf32>
    %c0_17 = arith.constant 0 : index
    %c0_18 = arith.constant 0 : index
    %c0_19 = arith.constant 0 : index
    %14 = vector.load %arg3[%c0_17, %c0_18, %c0_19] : memref<6x8x128xf32, #tpu.memory_space<vmem>>, vector<1x8x128xf32>
    %15 = vector.shape_cast %14 : vector<1x8x128xf32> to vector<8x128xf32>
    %c1_20 = arith.constant 1 : index
    %c0_21 = arith.constant 0 : index
    %c0_22 = arith.constant 0 : index
    %16 = vector.load %arg3[%c1_20, %c0_21, %c0_22] : memref<6x8x128xf32, #tpu.memory_space<vmem>>, vector<1x8x128xf32>
    %17 = vector.shape_cast %16 : vector<1x8x128xf32> to vector<8x128xf32>
    %c2_23 = arith.constant 2 : index
    %c0_24 = arith.constant 0 : index
    %c0_25 = arith.constant 0 : index
    %18 = vector.load %arg3[%c2_23, %c0_24, %c0_25] : memref<6x8x128xf32, #tpu.memory_space<vmem>>, vector<1x8x128xf32>
    %19 = vector.shape_cast %18 : vector<1x8x128xf32> to vector<8x128xf32>
    %c3_26 = arith.constant 3 : index
    %c0_27 = arith.constant 0 : index
    %c0_28 = arith.constant 0 : index
    %20 = vector.load %arg3[%c3_26, %c0_27, %c0_28] : memref<6x8x128xf32, #tpu.memory_space<vmem>>, vector<1x8x128xf32>
    %21 = vector.shape_cast %20 : vector<1x8x128xf32> to vector<8x128xf32>
    %c4 = arith.constant 4 : index
    %c0_29 = arith.constant 0 : index
    %c0_30 = arith.constant 0 : index
    %22 = vector.load %arg3[%c4, %c0_29, %c0_30] : memref<6x8x128xf32, #tpu.memory_space<vmem>>, vector<1x8x128xf32>
    %23 = vector.shape_cast %22 : vector<1x8x128xf32> to vector<8x128xf32>
    %c5 = arith.constant 5 : index
    %c0_31 = arith.constant 0 : index
    %c0_32 = arith.constant 0 : index
    %24 = vector.load %arg3[%c5, %c0_31, %c0_32] : memref<6x8x128xf32, #tpu.memory_space<vmem>>, vector<1x8x128xf32>
    %25 = vector.shape_cast %24 : vector<1x8x128xf32> to vector<8x128xf32>
    %c0_33 = arith.constant 0 : index
    %c0_34 = arith.constant 0 : index
    %c0_35 = arith.constant 0 : index
    %26 = vector.load %arg4[%c0_33, %c0_34, %c0_35] : memref<2x8x128xf32, #tpu.memory_space<vmem>>, vector<1x8x128xf32>
    %27 = vector.shape_cast %26 : vector<1x8x128xf32> to vector<8x128xf32>
    %c1_36 = arith.constant 1 : index
    %c0_37 = arith.constant 0 : index
    %c0_38 = arith.constant 0 : index
    %28 = vector.load %arg4[%c1_36, %c0_37, %c0_38] : memref<2x8x128xf32, #tpu.memory_space<vmem>>, vector<1x8x128xf32>
    %29 = vector.shape_cast %28 : vector<1x8x128xf32> to vector<8x128xf32>
    %c1_39 = arith.constant 1 : index
    %c0_40 = arith.constant 0 : index
    %c0_41 = arith.constant 0 : index
    %30 = vector.load %arg5[%c1_39, %c0_40, %c0_41] : memref<5x8x128xf32, #tpu.memory_space<vmem>>, vector<1x8x128xf32>
    %31 = vector.shape_cast %30 : vector<1x8x128xf32> to vector<8x128xf32>
    %c0_42 = arith.constant 0 : index
    %c0_43 = arith.constant 0 : index
    %c0_44 = arith.constant 0 : index
    %32 = vector.load %arg8[%c0_42, %c0_43, %c0_44] : memref<5x8x128xf32, #tpu.memory_space<vmem>>, vector<1x8x128xf32>
    %33 = vector.shape_cast %32 : vector<1x8x128xf32> to vector<8x128xf32>
    %34 = vector.shape_cast %31 : vector<8x128xf32> to vector<1x8x128xf32>
    tpu.vector_store %arg8[%c0_42, %c0_43, %c0_44], %34 {strides = array<i32>} : memref<5x8x128xf32, #tpu.memory_space<vmem>>, vector<1x8x128xf32>,
    %35 = arith.addf %3, %31 : vector<8x128xf32>
    %c2_45 = arith.constant 2 : index
    %c0_46 = arith.constant 0 : index
    %c0_47 = arith.constant 0 : index
    %36 = vector.load %arg5[%c2_45, %c0_46, %c0_47] : memref<5x8x128xf32, #tpu.memory_space<vmem>>, vector<1x8x128xf32>
    %37 = vector.shape_cast %36 : vector<1x8x128xf32> to vector<8x128xf32>
    %c1_48 = arith.constant 1 : index
    %c0_49 = arith.constant 0 : index
    %c0_50 = arith.constant 0 : index
    %38 = vector.load %arg8[%c1_48, %c0_49, %c0_50] : memref<5x8x128xf32, #tpu.memory_space<vmem>>, vector<1x8x128xf32>
    %39 = vector.shape_cast %38 : vector<1x8x128xf32> to vector<8x128xf32>
    %40 = vector.shape_cast %37 : vector<8x128xf32> to vector<1x8x128xf32>
    tpu.vector_store %arg8[%c1_48, %c0_49, %c0_50], %40 {strides = array<i32>} : memref<5x8x128xf32, #tpu.memory_space<vmem>>, vector<1x8x128xf32>,
    %41 = arith.addf %35, %37 : vector<8x128xf32>
    %c3_51 = arith.constant 3 : index
    %c0_52 = arith.constant 0 : index
    %c0_53 = arith.constant 0 : index
    %42 = vector.load %arg5[%c3_51, %c0_52, %c0_53] : memref<5x8x128xf32, #tpu.memory_space<vmem>>, vector<1x8x128xf32>
    %43 = vector.shape_cast %42 : vector<1x8x128xf32> to vector<8x128xf32>
    %c2_54 = arith.constant 2 : index
    %c0_55 = arith.constant 0 : index
    %c0_56 = arith.constant 0 : index
    %44 = vector.load %arg8[%c2_54, %c0_55, %c0_56] : memref<5x8x128xf32, #tpu.memory_space<vmem>>, vector<1x8x128xf32>
    %45 = vector.shape_cast %44 : vector<1x8x128xf32> to vector<8x128xf32>
    %46 = vector.shape_cast %43 : vector<8x128xf32> to vector<1x8x128xf32>
    tpu.vector_store %arg8[%c2_54, %c0_55, %c0_56], %46 {strides = array<i32>} : memref<5x8x128xf32, #tpu.memory_space<vmem>>, vector<1x8x128xf32>,
    %47 = arith.addf %41, %43 : vector<8x128xf32>
    %c4_57 = arith.constant 4 : index
    %c0_58 = arith.constant 0 : index
    %c0_59 = arith.constant 0 : index
    %48 = vector.load %arg5[%c4_57, %c0_58, %c0_59] : memref<5x8x128xf32, #tpu.memory_space<vmem>>, vector<1x8x128xf32>
    %49 = vector.shape_cast %48 : vector<1x8x128xf32> to vector<8x128xf32>
    %c3_60 = arith.constant 3 : index
    %c0_61 = arith.constant 0 : index
    %c0_62 = arith.constant 0 : index
    %50 = vector.load %arg8[%c3_60, %c0_61, %c0_62] : memref<5x8x128xf32, #tpu.memory_space<vmem>>, vector<1x8x128xf32>
    %51 = vector.shape_cast %50 : vector<1x8x128xf32> to vector<8x128xf32>
    %52 = vector.shape_cast %49 : vector<8x128xf32> to vector<1x8x128xf32>
    tpu.vector_store %arg8[%c3_60, %c0_61, %c0_62], %52 {strides = array<i32>} : memref<5x8x128xf32, #tpu.memory_space<vmem>>, vector<1x8x128xf32>,
    %53 = arith.addf %47, %49 : vector<8x128xf32>
    %c4_63 = arith.constant 4 : index
    %c0_64 = arith.constant 0 : index
    %c0_65 = arith.constant 0 : index
    %54 = vector.load %arg8[%c4_63, %c0_64, %c0_65] : memref<5x8x128xf32, #tpu.memory_space<vmem>>, vector<1x8x128xf32>
    %55 = vector.shape_cast %54 : vector<1x8x128xf32> to vector<8x128xf32>
    %56 = vector.shape_cast %3 : vector<8x128xf32> to vector<1x8x128xf32>
    tpu.vector_store %arg8[%c4_63, %c0_64, %c0_65], %56 {strides = array<i32>} : memref<5x8x128xf32, #tpu.memory_space<vmem>>, vector<1x8x128xf32>,
    %cst = arith.constant 2.000000e-01 : f32
    %57 = vector.broadcast %cst : f32 to vector<8x128xf32>
    %58 = arith.mulf %53, %57 : vector<8x128xf32>
    %c3_66 = arith.constant 3 : index
    %c0_67 = arith.constant 0 : index
    %c0_68 = arith.constant 0 : index
    %59 = vector.load %arg1[%c3_66, %c0_67, %c0_68] : memref<5x8x128xf32, #tpu.memory_space<vmem>>, vector<1x8x128xf32>
    %60 = vector.shape_cast %59 : vector<1x8x128xf32> to vector<8x128xf32>
    %c4_69 = arith.constant 4 : index
    %c0_70 = arith.constant 0 : index
    %c0_71 = arith.constant 0 : index
    %61 = vector.load %arg1[%c4_69, %c0_70, %c0_71] : memref<5x8x128xf32, #tpu.memory_space<vmem>>, vector<1x8x128xf32>
    %62 = vector.shape_cast %61 : vector<1x8x128xf32> to vector<8x128xf32>
    %c0_72 = arith.constant 0 : index
    %63 = memref.load %arg6[%c0_72] : memref<257xf32, #tpu.memory_space<smem>>
    %64 = vector.broadcast %63 : f32 to vector<8x128xf32>
    %65 = arith.mulf %1, %64 : vector<8x128xf32>
    %c1_73 = arith.constant 1 : index
    %66 = memref.load %arg6[%c1_73] : memref<257xf32, #tpu.memory_space<smem>>
    %67 = vector.broadcast %66 : f32 to vector<8x128xf32>
    %68 = arith.mulf %3, %67 : vector<8x128xf32>
    %69 = arith.addf %65, %68 : vector<8x128xf32>
    %c2_74 = arith.constant 2 : index
    %70 = memref.load %arg6[%c2_74] : memref<257xf32, #tpu.memory_space<smem>>
    %71 = vector.broadcast %70 : f32 to vector<8x128xf32>
    %72 = arith.mulf %5, %71 : vector<8x128xf32>
    %73 = arith.addf %69, %72 : vector<8x128xf32>
    %c3_75 = arith.constant 3 : index
    %74 = memref.load %arg6[%c3_75] : memref<257xf32, #tpu.memory_space<smem>>
    %75 = vector.broadcast %74 : f32 to vector<8x128xf32>
    %76 = arith.mulf %60, %75 : vector<8x128xf32>
    %77 = arith.addf %73, %76 : vector<8x128xf32>
    %c4_76 = arith.constant 4 : index
    %78 = memref.load %arg6[%c4_76] : memref<257xf32, #tpu.memory_space<smem>>
    %79 = vector.broadcast %78 : f32 to vector<8x128xf32>
    %80 = arith.mulf %62, %79 : vector<8x128xf32>
    %81 = arith.addf %77, %80 : vector<8x128xf32>
    %c5_77 = arith.constant 5 : index
    %82 = memref.load %arg6[%c5_77] : memref<257xf32, #tpu.memory_space<smem>>
    %83 = vector.broadcast %82 : f32 to vector<8x128xf32>
    %84 = arith.mulf %7, %83 : vector<8x128xf32>
    %85 = arith.addf %81, %84 : vector<8x128xf32>
    %c192 = arith.constant 192 : index
    %86 = memref.load %arg6[%c192] : memref<257xf32, #tpu.memory_space<smem>>
    %87 = vector.broadcast %86 : f32 to vector<8x128xf32>
    %88 = arith.addf %85, %87 : vector<8x128xf32>
    %cst_78 = arith.constant 0.000000e+00 : f32
    %89 = vector.broadcast %cst_78 : f32 to vector<8x128xf32>
    %90 = arith.maximumf %88, %89 : vector<8x128xf32>
    %c224 = arith.constant 224 : index
    %91 = memref.load %arg6[%c224] : memref<257xf32, #tpu.memory_space<smem>>
    %92 = vector.broadcast %91 : f32 to vector<8x128xf32>
    %93 = arith.mulf %90, %92 : vector<8x128xf32>
    %c6 = arith.constant 6 : index
    %94 = memref.load %arg6[%c6] : memref<257xf32, #tpu.memory_space<smem>>
    %95 = vector.broadcast %94 : f32 to vector<8x128xf32>
    %96 = arith.mulf %1, %95 : vector<8x128xf32>
    %c7 = arith.constant 7 : index
    %97 = memref.load %arg6[%c7] : memref<257xf32, #tpu.memory_space<smem>>
    %98 = vector.broadcast %97 : f32 to vector<8x128xf32>
    %99 = arith.mulf %3, %98 : vector<8x128xf32>
    %100 = arith.addf %96, %99 : vector<8x128xf32>
    %c8 = arith.constant 8 : index
    %101 = memref.load %arg6[%c8] : memref<257xf32, #tpu.memory_space<smem>>
    %102 = vector.broadcast %101 : f32 to vector<8x128xf32>
    %103 = arith.mulf %5, %102 : vector<8x128xf32>
    %104 = arith.addf %100, %103 : vector<8x128xf32>
    %c9 = arith.constant 9 : index
    %105 = memref.load %arg6[%c9] : memref<257xf32, #tpu.memory_space<smem>>
    %106 = vector.broadcast %105 : f32 to vector<8x128xf32>
    %107 = arith.mulf %60, %106 : vector<8x128xf32>
    %108 = arith.addf %104, %107 : vector<8x128xf32>
    %c10 = arith.constant 10 : index
    %109 = memref.load %arg6[%c10] : memref<257xf32, #tpu.memory_space<smem>>
    %110 = vector.broadcast %109 : f32 to vector<8x128xf32>
    %111 = arith.mulf %62, %110 : vector<8x128xf32>
    %112 = arith.addf %108, %111 : vector<8x128xf32>
    %c11 = arith.constant 11 : index
    %113 = memref.load %arg6[%c11] : memref<257xf32, #tpu.memory_space<smem>>
    %114 = vector.broadcast %113 : f32 to vector<8x128xf32>
    %115 = arith.mulf %7, %114 : vector<8x128xf32>
    %116 = arith.addf %112, %115 : vector<8x128xf32>
    %c193 = arith.constant 193 : index
    %117 = memref.load %arg6[%c193] : memref<257xf32, #tpu.memory_space<smem>>
    %118 = vector.broadcast %117 : f32 to vector<8x128xf32>
    %119 = arith.addf %116, %118 : vector<8x128xf32>
    %cst_79 = arith.constant 0.000000e+00 : f32
    %120 = vector.broadcast %cst_79 : f32 to vector<8x128xf32>
    %121 = arith.maximumf %119, %120 : vector<8x128xf32>
    %c225 = arith.constant 225 : index
    %122 = memref.load %arg6[%c225] : memref<257xf32, #tpu.memory_space<smem>>
    %123 = vector.broadcast %122 : f32 to vector<8x128xf32>
    %124 = arith.mulf %121, %123 : vector<8x128xf32>
    %125 = arith.addf %93, %124 : vector<8x128xf32>
    %c12 = arith.constant 12 : index
    %126 = memref.load %arg6[%c12] : memref<257xf32, #tpu.memory_space<smem>>
    %127 = vector.broadcast %126 : f32 to vector<8x128xf32>
    %128 = arith.mulf %1, %127 : vector<8x128xf32>
    %c13 = arith.constant 13 : index
    %129 = memref.load %arg6[%c13] : memref<257xf32, #tpu.memory_space<smem>>
    %130 = vector.broadcast %129 : f32 to vector<8x128xf32>
    %131 = arith.mulf %3, %130 : vector<8x128xf32>
    %132 = arith.addf %128, %131 : vector<8x128xf32>
    %c14 = arith.constant 14 : index
    %133 = memref.load %arg6[%c14] : memref<257xf32, #tpu.memory_space<smem>>
    %134 = vector.broadcast %133 : f32 to vector<8x128xf32>
    %135 = arith.mulf %5, %134 : vector<8x128xf32>
    %136 = arith.addf %132, %135 : vector<8x128xf32>
    %c15 = arith.constant 15 : index
    %137 = memref.load %arg6[%c15] : memref<257xf32, #tpu.memory_space<smem>>
    %138 = vector.broadcast %137 : f32 to vector<8x128xf32>
    %139 = arith.mulf %60, %138 : vector<8x128xf32>
    %140 = arith.addf %136, %139 : vector<8x128xf32>
    %c16 = arith.constant 16 : index
    %141 = memref.load %arg6[%c16] : memref<257xf32, #tpu.memory_space<smem>>
    %142 = vector.broadcast %141 : f32 to vector<8x128xf32>
    %143 = arith.mulf %62, %142 : vector<8x128xf32>
    %144 = arith.addf %140, %143 : vector<8x128xf32>
    %c17 = arith.constant 17 : index
    %145 = memref.load %arg6[%c17] : memref<257xf32, #tpu.memory_space<smem>>
    %146 = vector.broadcast %145 : f32 to vector<8x128xf32>
    %147 = arith.mulf %7, %146 : vector<8x128xf32>
    %148 = arith.addf %144, %147 : vector<8x128xf32>
    %c194 = arith.constant 194 : index
    %149 = memref.load %arg6[%c194] : memref<257xf32, #tpu.memory_space<smem>>
    %150 = vector.broadcast %149 : f32 to vector<8x128xf32>
    %151 = arith.addf %148, %150 : vector<8x128xf32>
    %cst_80 = arith.constant 0.000000e+00 : f32
    %152 = vector.broadcast %cst_80 : f32 to vector<8x128xf32>
    %153 = arith.maximumf %151, %152 : vector<8x128xf32>
    %c226 = arith.constant 226 : index
    %154 = memref.load %arg6[%c226] : memref<257xf32, #tpu.memory_space<smem>>
    %155 = vector.broadcast %154 : f32 to vector<8x128xf32>
    %156 = arith.mulf %153, %155 : vector<8x128xf32>
    %157 = arith.addf %125, %156 : vector<8x128xf32>
    %c18 = arith.constant 18 : index
    %158 = memref.load %arg6[%c18] : memref<257xf32, #tpu.memory_space<smem>>
    %159 = vector.broadcast %158 : f32 to vector<8x128xf32>
    %160 = arith.mulf %1, %159 : vector<8x128xf32>
    %c19 = arith.constant 19 : index
    %161 = memref.load %arg6[%c19] : memref<257xf32, #tpu.memory_space<smem>>
    %162 = vector.broadcast %161 : f32 to vector<8x128xf32>
    %163 = arith.mulf %3, %162 : vector<8x128xf32>
    %164 = arith.addf %160, %163 : vector<8x128xf32>
    %c20 = arith.constant 20 : index
    %165 = memref.load %arg6[%c20] : memref<257xf32, #tpu.memory_space<smem>>
    %166 = vector.broadcast %165 : f32 to vector<8x128xf32>
    %167 = arith.mulf %5, %166 : vector<8x128xf32>
    %168 = arith.addf %164, %167 : vector<8x128xf32>
    %c21 = arith.constant 21 : index
    %169 = memref.load %arg6[%c21] : memref<257xf32, #tpu.memory_space<smem>>
    %170 = vector.broadcast %169 : f32 to vector<8x128xf32>
    %171 = arith.mulf %60, %170 : vector<8x128xf32>
    %172 = arith.addf %168, %171 : vector<8x128xf32>
    %c22 = arith.constant 22 : index
    %173 = memref.load %arg6[%c22] : memref<257xf32, #tpu.memory_space<smem>>
    %174 = vector.broadcast %173 : f32 to vector<8x128xf32>
    %175 = arith.mulf %62, %174 : vector<8x128xf32>
    %176 = arith.addf %172, %175 : vector<8x128xf32>
    %c23 = arith.constant 23 : index
    %177 = memref.load %arg6[%c23] : memref<257xf32, #tpu.memory_space<smem>>
    %178 = vector.broadcast %177 : f32 to vector<8x128xf32>
    %179 = arith.mulf %7, %178 : vector<8x128xf32>
    %180 = arith.addf %176, %179 : vector<8x128xf32>
    %c195 = arith.constant 195 : index
    %181 = memref.load %arg6[%c195] : memref<257xf32, #tpu.memory_space<smem>>
    %182 = vector.broadcast %181 : f32 to vector<8x128xf32>
    %183 = arith.addf %180, %182 : vector<8x128xf32>
    %cst_81 = arith.constant 0.000000e+00 : f32
    %184 = vector.broadcast %cst_81 : f32 to vector<8x128xf32>
    %185 = arith.maximumf %183, %184 : vector<8x128xf32>
    %c227 = arith.constant 227 : index
    %186 = memref.load %arg6[%c227] : memref<257xf32, #tpu.memory_space<smem>>
    %187 = vector.broadcast %186 : f32 to vector<8x128xf32>
    %188 = arith.mulf %185, %187 : vector<8x128xf32>
    %189 = arith.addf %157, %188 : vector<8x128xf32>
    %c24 = arith.constant 24 : index
    %190 = memref.load %arg6[%c24] : memref<257xf32, #tpu.memory_space<smem>>
    %191 = vector.broadcast %190 : f32 to vector<8x128xf32>
    %192 = arith.mulf %1, %191 : vector<8x128xf32>
    %c25 = arith.constant 25 : index
    %193 = memref.load %arg6[%c25] : memref<257xf32, #tpu.memory_space<smem>>
    %194 = vector.broadcast %193 : f32 to vector<8x128xf32>
    %195 = arith.mulf %3, %194 : vector<8x128xf32>
    %196 = arith.addf %192, %195 : vector<8x128xf32>
    %c26 = arith.constant 26 : index
    %197 = memref.load %arg6[%c26] : memref<257xf32, #tpu.memory_space<smem>>
    %198 = vector.broadcast %197 : f32 to vector<8x128xf32>
    %199 = arith.mulf %5, %198 : vector<8x128xf32>
    %200 = arith.addf %196, %199 : vector<8x128xf32>
    %c27 = arith.constant 27 : index
    %201 = memref.load %arg6[%c27] : memref<257xf32, #tpu.memory_space<smem>>
    %202 = vector.broadcast %201 : f32 to vector<8x128xf32>
    %203 = arith.mulf %60, %202 : vector<8x128xf32>
    %204 = arith.addf %200, %203 : vector<8x128xf32>
    %c28 = arith.constant 28 : index
    %205 = memref.load %arg6[%c28] : memref<257xf32, #tpu.memory_space<smem>>
    %206 = vector.broadcast %205 : f32 to vector<8x128xf32>
    %207 = arith.mulf %62, %206 : vector<8x128xf32>
    %208 = arith.addf %204, %207 : vector<8x128xf32>
    %c29 = arith.constant 29 : index
    %209 = memref.load %arg6[%c29] : memref<257xf32, #tpu.memory_space<smem>>
    %210 = vector.broadcast %209 : f32 to vector<8x128xf32>
    %211 = arith.mulf %7, %210 : vector<8x128xf32>
    %212 = arith.addf %208, %211 : vector<8x128xf32>
    %c196 = arith.constant 196 : index
    %213 = memref.load %arg6[%c196] : memref<257xf32, #tpu.memory_space<smem>>
    %214 = vector.broadcast %213 : f32 to vector<8x128xf32>
    %215 = arith.addf %212, %214 : vector<8x128xf32>
    %cst_82 = arith.constant 0.000000e+00 : f32
    %216 = vector.broadcast %cst_82 : f32 to vector<8x128xf32>
    %217 = arith.maximumf %215, %216 : vector<8x128xf32>
    %c228 = arith.constant 228 : index
    %218 = memref.load %arg6[%c228] : memref<257xf32, #tpu.memory_space<smem>>
    %219 = vector.broadcast %218 : f32 to vector<8x128xf32>
    %220 = arith.mulf %217, %219 : vector<8x128xf32>
    %221 = arith.addf %189, %220 : vector<8x128xf32>
    %c30 = arith.constant 30 : index
    %222 = memref.load %arg6[%c30] : memref<257xf32, #tpu.memory_space<smem>>
    %223 = vector.broadcast %222 : f32 to vector<8x128xf32>
    %224 = arith.mulf %1, %223 : vector<8x128xf32>
    %c31 = arith.constant 31 : index
    %225 = memref.load %arg6[%c31] : memref<257xf32, #tpu.memory_space<smem>>
    %226 = vector.broadcast %225 : f32 to vector<8x128xf32>
    %227 = arith.mulf %3, %226 : vector<8x128xf32>
    %228 = arith.addf %224, %227 : vector<8x128xf32>
    %c32 = arith.constant 32 : index
    %229 = memref.load %arg6[%c32] : memref<257xf32, #tpu.memory_space<smem>>
    %230 = vector.broadcast %229 : f32 to vector<8x128xf32>
    %231 = arith.mulf %5, %230 : vector<8x128xf32>
    %232 = arith.addf %228, %231 : vector<8x128xf32>
    %c33 = arith.constant 33 : index
    %233 = memref.load %arg6[%c33] : memref<257xf32, #tpu.memory_space<smem>>
    %234 = vector.broadcast %233 : f32 to vector<8x128xf32>
    %235 = arith.mulf %60, %234 : vector<8x128xf32>
    %236 = arith.addf %232, %235 : vector<8x128xf32>
    %c34 = arith.constant 34 : index
    %237 = memref.load %arg6[%c34] : memref<257xf32, #tpu.memory_space<smem>>
    %238 = vector.broadcast %237 : f32 to vector<8x128xf32>
    %239 = arith.mulf %62, %238 : vector<8x128xf32>
    %240 = arith.addf %236, %239 : vector<8x128xf32>
    %c35 = arith.constant 35 : index
    %241 = memref.load %arg6[%c35] : memref<257xf32, #tpu.memory_space<smem>>
    %242 = vector.broadcast %241 : f32 to vector<8x128xf32>
    %243 = arith.mulf %7, %242 : vector<8x128xf32>
    %244 = arith.addf %240, %243 : vector<8x128xf32>
    %c197 = arith.constant 197 : index
    %245 = memref.load %arg6[%c197] : memref<257xf32, #tpu.memory_space<smem>>
    %246 = vector.broadcast %245 : f32 to vector<8x128xf32>
    %247 = arith.addf %244, %246 : vector<8x128xf32>
    %cst_83 = arith.constant 0.000000e+00 : f32
    %248 = vector.broadcast %cst_83 : f32 to vector<8x128xf32>
    %249 = arith.maximumf %247, %248 : vector<8x128xf32>
    %c229 = arith.constant 229 : index
    %250 = memref.load %arg6[%c229] : memref<257xf32, #tpu.memory_space<smem>>
    %251 = vector.broadcast %250 : f32 to vector<8x128xf32>
    %252 = arith.mulf %249, %251 : vector<8x128xf32>
    %253 = arith.addf %221, %252 : vector<8x128xf32>
    %c36 = arith.constant 36 : index
    %254 = memref.load %arg6[%c36] : memref<257xf32, #tpu.memory_space<smem>>
    %255 = vector.broadcast %254 : f32 to vector<8x128xf32>
    %256 = arith.mulf %1, %255 : vector<8x128xf32>
    %c37 = arith.constant 37 : index
    %257 = memref.load %arg6[%c37] : memref<257xf32, #tpu.memory_space<smem>>
    %258 = vector.broadcast %257 : f32 to vector<8x128xf32>
    %259 = arith.mulf %3, %258 : vector<8x128xf32>
    %260 = arith.addf %256, %259 : vector<8x128xf32>
    %c38 = arith.constant 38 : index
    %261 = memref.load %arg6[%c38] : memref<257xf32, #tpu.memory_space<smem>>
    %262 = vector.broadcast %261 : f32 to vector<8x128xf32>
    %263 = arith.mulf %5, %262 : vector<8x128xf32>
    %264 = arith.addf %260, %263 : vector<8x128xf32>
    %c39 = arith.constant 39 : index
    %265 = memref.load %arg6[%c39] : memref<257xf32, #tpu.memory_space<smem>>
    %266 = vector.broadcast %265 : f32 to vector<8x128xf32>
    %267 = arith.mulf %60, %266 : vector<8x128xf32>
    %268 = arith.addf %264, %267 : vector<8x128xf32>
    %c40 = arith.constant 40 : index
    %269 = memref.load %arg6[%c40] : memref<257xf32, #tpu.memory_space<smem>>
    %270 = vector.broadcast %269 : f32 to vector<8x128xf32>
    %271 = arith.mulf %62, %270 : vector<8x128xf32>
    %272 = arith.addf %268, %271 : vector<8x128xf32>
    %c41 = arith.constant 41 : index
    %273 = memref.load %arg6[%c41] : memref<257xf32, #tpu.memory_space<smem>>
    %274 = vector.broadcast %273 : f32 to vector<8x128xf32>
    %275 = arith.mulf %7, %274 : vector<8x128xf32>
    %276 = arith.addf %272, %275 : vector<8x128xf32>
    %c198 = arith.constant 198 : index
    %277 = memref.load %arg6[%c198] : memref<257xf32, #tpu.memory_space<smem>>
    %278 = vector.broadcast %277 : f32 to vector<8x128xf32>
    %279 = arith.addf %276, %278 : vector<8x128xf32>
    %cst_84 = arith.constant 0.000000e+00 : f32
    %280 = vector.broadcast %cst_84 : f32 to vector<8x128xf32>
    %281 = arith.maximumf %279, %280 : vector<8x128xf32>
    %c230 = arith.constant 230 : index
    %282 = memref.load %arg6[%c230] : memref<257xf32, #tpu.memory_space<smem>>
    %283 = vector.broadcast %282 : f32 to vector<8x128xf32>
    %284 = arith.mulf %281, %283 : vector<8x128xf32>
    %285 = arith.addf %253, %284 : vector<8x128xf32>
    %c42 = arith.constant 42 : index
    %286 = memref.load %arg6[%c42] : memref<257xf32, #tpu.memory_space<smem>>
    %287 = vector.broadcast %286 : f32 to vector<8x128xf32>
    %288 = arith.mulf %1, %287 : vector<8x128xf32>
    %c43 = arith.constant 43 : index
    %289 = memref.load %arg6[%c43] : memref<257xf32, #tpu.memory_space<smem>>
    %290 = vector.broadcast %289 : f32 to vector<8x128xf32>
    %291 = arith.mulf %3, %290 : vector<8x128xf32>
    %292 = arith.addf %288, %291 : vector<8x128xf32>
    %c44 = arith.constant 44 : index
    %293 = memref.load %arg6[%c44] : memref<257xf32, #tpu.memory_space<smem>>
    %294 = vector.broadcast %293 : f32 to vector<8x128xf32>
    %295 = arith.mulf %5, %294 : vector<8x128xf32>
    %296 = arith.addf %292, %295 : vector<8x128xf32>
    %c45 = arith.constant 45 : index
    %297 = memref.load %arg6[%c45] : memref<257xf32, #tpu.memory_space<smem>>
    %298 = vector.broadcast %297 : f32 to vector<8x128xf32>
    %299 = arith.mulf %60, %298 : vector<8x128xf32>
    %300 = arith.addf %296, %299 : vector<8x128xf32>
    %c46 = arith.constant 46 : index
    %301 = memref.load %arg6[%c46] : memref<257xf32, #tpu.memory_space<smem>>
    %302 = vector.broadcast %301 : f32 to vector<8x128xf32>
    %303 = arith.mulf %62, %302 : vector<8x128xf32>
    %304 = arith.addf %300, %303 : vector<8x128xf32>
    %c47 = arith.constant 47 : index
    %305 = memref.load %arg6[%c47] : memref<257xf32, #tpu.memory_space<smem>>
    %306 = vector.broadcast %305 : f32 to vector<8x128xf32>
    %307 = arith.mulf %7, %306 : vector<8x128xf32>
    %308 = arith.addf %304, %307 : vector<8x128xf32>
    %c199 = arith.constant 199 : index
    %309 = memref.load %arg6[%c199] : memref<257xf32, #tpu.memory_space<smem>>
    %310 = vector.broadcast %309 : f32 to vector<8x128xf32>
    %311 = arith.addf %308, %310 : vector<8x128xf32>
    %cst_85 = arith.constant 0.000000e+00 : f32
    %312 = vector.broadcast %cst_85 : f32 to vector<8x128xf32>
    %313 = arith.maximumf %311, %312 : vector<8x128xf32>
    %c231 = arith.constant 231 : index
    %314 = memref.load %arg6[%c231] : memref<257xf32, #tpu.memory_space<smem>>
    %315 = vector.broadcast %314 : f32 to vector<8x128xf32>
    %316 = arith.mulf %313, %315 : vector<8x128xf32>
    %317 = arith.addf %285, %316 : vector<8x128xf32>
    %c48 = arith.constant 48 : index
    %318 = memref.load %arg6[%c48] : memref<257xf32, #tpu.memory_space<smem>>
    %319 = vector.broadcast %318 : f32 to vector<8x128xf32>
    %320 = arith.mulf %1, %319 : vector<8x128xf32>
    %c49 = arith.constant 49 : index
    %321 = memref.load %arg6[%c49] : memref<257xf32, #tpu.memory_space<smem>>
    %322 = vector.broadcast %321 : f32 to vector<8x128xf32>
    %323 = arith.mulf %3, %322 : vector<8x128xf32>
    %324 = arith.addf %320, %323 : vector<8x128xf32>
    %c50 = arith.constant 50 : index
    %325 = memref.load %arg6[%c50] : memref<257xf32, #tpu.memory_space<smem>>
    %326 = vector.broadcast %325 : f32 to vector<8x128xf32>
    %327 = arith.mulf %5, %326 : vector<8x128xf32>
    %328 = arith.addf %324, %327 : vector<8x128xf32>
    %c51 = arith.constant 51 : index
    %329 = memref.load %arg6[%c51] : memref<257xf32, #tpu.memory_space<smem>>
    %330 = vector.broadcast %329 : f32 to vector<8x128xf32>
    %331 = arith.mulf %60, %330 : vector<8x128xf32>
    %332 = arith.addf %328, %331 : vector<8x128xf32>
    %c52 = arith.constant 52 : index
    %333 = memref.load %arg6[%c52] : memref<257xf32, #tpu.memory_space<smem>>
    %334 = vector.broadcast %333 : f32 to vector<8x128xf32>
    %335 = arith.mulf %62, %334 : vector<8x128xf32>
    %336 = arith.addf %332, %335 : vector<8x128xf32>
    %c53 = arith.constant 53 : index
    %337 = memref.load %arg6[%c53] : memref<257xf32, #tpu.memory_space<smem>>
    %338 = vector.broadcast %337 : f32 to vector<8x128xf32>
    %339 = arith.mulf %7, %338 : vector<8x128xf32>
    %340 = arith.addf %336, %339 : vector<8x128xf32>
    %c200 = arith.constant 200 : index
    %341 = memref.load %arg6[%c200] : memref<257xf32, #tpu.memory_space<smem>>
    %342 = vector.broadcast %341 : f32 to vector<8x128xf32>
    %343 = arith.addf %340, %342 : vector<8x128xf32>
    %cst_86 = arith.constant 0.000000e+00 : f32
    %344 = vector.broadcast %cst_86 : f32 to vector<8x128xf32>
    %345 = arith.maximumf %343, %344 : vector<8x128xf32>
    %c232 = arith.constant 232 : index
    %346 = memref.load %arg6[%c232] : memref<257xf32, #tpu.memory_space<smem>>
    %347 = vector.broadcast %346 : f32 to vector<8x128xf32>
    %348 = arith.mulf %345, %347 : vector<8x128xf32>
    %349 = arith.addf %317, %348 : vector<8x128xf32>
    %c54 = arith.constant 54 : index
    %350 = memref.load %arg6[%c54] : memref<257xf32, #tpu.memory_space<smem>>
    %351 = vector.broadcast %350 : f32 to vector<8x128xf32>
    %352 = arith.mulf %1, %351 : vector<8x128xf32>
    %c55 = arith.constant 55 : index
    %353 = memref.load %arg6[%c55] : memref<257xf32, #tpu.memory_space<smem>>
    %354 = vector.broadcast %353 : f32 to vector<8x128xf32>
    %355 = arith.mulf %3, %354 : vector<8x128xf32>
    %356 = arith.addf %352, %355 : vector<8x128xf32>
    %c56 = arith.constant 56 : index
    %357 = memref.load %arg6[%c56] : memref<257xf32, #tpu.memory_space<smem>>
    %358 = vector.broadcast %357 : f32 to vector<8x128xf32>
    %359 = arith.mulf %5, %358 : vector<8x128xf32>
    %360 = arith.addf %356, %359 : vector<8x128xf32>
    %c57 = arith.constant 57 : index
    %361 = memref.load %arg6[%c57] : memref<257xf32, #tpu.memory_space<smem>>
    %362 = vector.broadcast %361 : f32 to vector<8x128xf32>
    %363 = arith.mulf %60, %362 : vector<8x128xf32>
    %364 = arith.addf %360, %363 : vector<8x128xf32>
    %c58 = arith.constant 58 : index
    %365 = memref.load %arg6[%c58] : memref<257xf32, #tpu.memory_space<smem>>
    %366 = vector.broadcast %365 : f32 to vector<8x128xf32>
    %367 = arith.mulf %62, %366 : vector<8x128xf32>
    %368 = arith.addf %364, %367 : vector<8x128xf32>
    %c59 = arith.constant 59 : index
    %369 = memref.load %arg6[%c59] : memref<257xf32, #tpu.memory_space<smem>>
    %370 = vector.broadcast %369 : f32 to vector<8x128xf32>
    %371 = arith.mulf %7, %370 : vector<8x128xf32>
    %372 = arith.addf %368, %371 : vector<8x128xf32>
    %c201 = arith.constant 201 : index
    %373 = memref.load %arg6[%c201] : memref<257xf32, #tpu.memory_space<smem>>
    %374 = vector.broadcast %373 : f32 to vector<8x128xf32>
    %375 = arith.addf %372, %374 : vector<8x128xf32>
    %cst_87 = arith.constant 0.000000e+00 : f32
    %376 = vector.broadcast %cst_87 : f32 to vector<8x128xf32>
    %377 = arith.maximumf %375, %376 : vector<8x128xf32>
    %c233 = arith.constant 233 : index
    %378 = memref.load %arg6[%c233] : memref<257xf32, #tpu.memory_space<smem>>
    %379 = vector.broadcast %378 : f32 to vector<8x128xf32>
    %380 = arith.mulf %377, %379 : vector<8x128xf32>
    %381 = arith.addf %349, %380 : vector<8x128xf32>
    %c60 = arith.constant 60 : index
    %382 = memref.load %arg6[%c60] : memref<257xf32, #tpu.memory_space<smem>>
    %383 = vector.broadcast %382 : f32 to vector<8x128xf32>
    %384 = arith.mulf %1, %383 : vector<8x128xf32>
    %c61 = arith.constant 61 : index
    %385 = memref.load %arg6[%c61] : memref<257xf32, #tpu.memory_space<smem>>
    %386 = vector.broadcast %385 : f32 to vector<8x128xf32>
    %387 = arith.mulf %3, %386 : vector<8x128xf32>
    %388 = arith.addf %384, %387 : vector<8x128xf32>
    %c62 = arith.constant 62 : index
    %389 = memref.load %arg6[%c62] : memref<257xf32, #tpu.memory_space<smem>>
    %390 = vector.broadcast %389 : f32 to vector<8x128xf32>
    %391 = arith.mulf %5, %390 : vector<8x128xf32>
    %392 = arith.addf %388, %391 : vector<8x128xf32>
    %c63 = arith.constant 63 : index
    %393 = memref.load %arg6[%c63] : memref<257xf32, #tpu.memory_space<smem>>
    %394 = vector.broadcast %393 : f32 to vector<8x128xf32>
    %395 = arith.mulf %60, %394 : vector<8x128xf32>
    %396 = arith.addf %392, %395 : vector<8x128xf32>
    %c64 = arith.constant 64 : index
    %397 = memref.load %arg6[%c64] : memref<257xf32, #tpu.memory_space<smem>>
    %398 = vector.broadcast %397 : f32 to vector<8x128xf32>
    %399 = arith.mulf %62, %398 : vector<8x128xf32>
    %400 = arith.addf %396, %399 : vector<8x128xf32>
    %c65 = arith.constant 65 : index
    %401 = memref.load %arg6[%c65] : memref<257xf32, #tpu.memory_space<smem>>
    %402 = vector.broadcast %401 : f32 to vector<8x128xf32>
    %403 = arith.mulf %7, %402 : vector<8x128xf32>
    %404 = arith.addf %400, %403 : vector<8x128xf32>
    %c202 = arith.constant 202 : index
    %405 = memref.load %arg6[%c202] : memref<257xf32, #tpu.memory_space<smem>>
    %406 = vector.broadcast %405 : f32 to vector<8x128xf32>
    %407 = arith.addf %404, %406 : vector<8x128xf32>
    %cst_88 = arith.constant 0.000000e+00 : f32
    %408 = vector.broadcast %cst_88 : f32 to vector<8x128xf32>
    %409 = arith.maximumf %407, %408 : vector<8x128xf32>
    %c234 = arith.constant 234 : index
    %410 = memref.load %arg6[%c234] : memref<257xf32, #tpu.memory_space<smem>>
    %411 = vector.broadcast %410 : f32 to vector<8x128xf32>
    %412 = arith.mulf %409, %411 : vector<8x128xf32>
    %413 = arith.addf %381, %412 : vector<8x128xf32>
    %c66 = arith.constant 66 : index
    %414 = memref.load %arg6[%c66] : memref<257xf32, #tpu.memory_space<smem>>
    %415 = vector.broadcast %414 : f32 to vector<8x128xf32>
    %416 = arith.mulf %1, %415 : vector<8x128xf32>
    %c67 = arith.constant 67 : index
    %417 = memref.load %arg6[%c67] : memref<257xf32, #tpu.memory_space<smem>>
    %418 = vector.broadcast %417 : f32 to vector<8x128xf32>
    %419 = arith.mulf %3, %418 : vector<8x128xf32>
    %420 = arith.addf %416, %419 : vector<8x128xf32>
    %c68 = arith.constant 68 : index
    %421 = memref.load %arg6[%c68] : memref<257xf32, #tpu.memory_space<smem>>
    %422 = vector.broadcast %421 : f32 to vector<8x128xf32>
    %423 = arith.mulf %5, %422 : vector<8x128xf32>
    %424 = arith.addf %420, %423 : vector<8x128xf32>
    %c69 = arith.constant 69 : index
    %425 = memref.load %arg6[%c69] : memref<257xf32, #tpu.memory_space<smem>>
    %426 = vector.broadcast %425 : f32 to vector<8x128xf32>
    %427 = arith.mulf %60, %426 : vector<8x128xf32>
    %428 = arith.addf %424, %427 : vector<8x128xf32>
    %c70 = arith.constant 70 : index
    %429 = memref.load %arg6[%c70] : memref<257xf32, #tpu.memory_space<smem>>
    %430 = vector.broadcast %429 : f32 to vector<8x128xf32>
    %431 = arith.mulf %62, %430 : vector<8x128xf32>
    %432 = arith.addf %428, %431 : vector<8x128xf32>
    %c71 = arith.constant 71 : index
    %433 = memref.load %arg6[%c71] : memref<257xf32, #tpu.memory_space<smem>>
    %434 = vector.broadcast %433 : f32 to vector<8x128xf32>
    %435 = arith.mulf %7, %434 : vector<8x128xf32>
    %436 = arith.addf %432, %435 : vector<8x128xf32>
    %c203 = arith.constant 203 : index
    %437 = memref.load %arg6[%c203] : memref<257xf32, #tpu.memory_space<smem>>
    %438 = vector.broadcast %437 : f32 to vector<8x128xf32>
    %439 = arith.addf %436, %438 : vector<8x128xf32>
    %cst_89 = arith.constant 0.000000e+00 : f32
    %440 = vector.broadcast %cst_89 : f32 to vector<8x128xf32>
    %441 = arith.maximumf %439, %440 : vector<8x128xf32>
    %c235 = arith.constant 235 : index
    %442 = memref.load %arg6[%c235] : memref<257xf32, #tpu.memory_space<smem>>
    %443 = vector.broadcast %442 : f32 to vector<8x128xf32>
    %444 = arith.mulf %441, %443 : vector<8x128xf32>
    %445 = arith.addf %413, %444 : vector<8x128xf32>
    %c72 = arith.constant 72 : index
    %446 = memref.load %arg6[%c72] : memref<257xf32, #tpu.memory_space<smem>>
    %447 = vector.broadcast %446 : f32 to vector<8x128xf32>
    %448 = arith.mulf %1, %447 : vector<8x128xf32>
    %c73 = arith.constant 73 : index
    %449 = memref.load %arg6[%c73] : memref<257xf32, #tpu.memory_space<smem>>
    %450 = vector.broadcast %449 : f32 to vector<8x128xf32>
    %451 = arith.mulf %3, %450 : vector<8x128xf32>
    %452 = arith.addf %448, %451 : vector<8x128xf32>
    %c74 = arith.constant 74 : index
    %453 = memref.load %arg6[%c74] : memref<257xf32, #tpu.memory_space<smem>>
    %454 = vector.broadcast %453 : f32 to vector<8x128xf32>
    %455 = arith.mulf %5, %454 : vector<8x128xf32>
    %456 = arith.addf %452, %455 : vector<8x128xf32>
    %c75 = arith.constant 75 : index
    %457 = memref.load %arg6[%c75] : memref<257xf32, #tpu.memory_space<smem>>
    %458 = vector.broadcast %457 : f32 to vector<8x128xf32>
    %459 = arith.mulf %60, %458 : vector<8x128xf32>
    %460 = arith.addf %456, %459 : vector<8x128xf32>
    %c76 = arith.constant 76 : index
    %461 = memref.load %arg6[%c76] : memref<257xf32, #tpu.memory_space<smem>>
    %462 = vector.broadcast %461 : f32 to vector<8x128xf32>
    %463 = arith.mulf %62, %462 : vector<8x128xf32>
    %464 = arith.addf %460, %463 : vector<8x128xf32>
    %c77 = arith.constant 77 : index
    %465 = memref.load %arg6[%c77] : memref<257xf32, #tpu.memory_space<smem>>
    %466 = vector.broadcast %465 : f32 to vector<8x128xf32>
    %467 = arith.mulf %7, %466 : vector<8x128xf32>
    %468 = arith.addf %464, %467 : vector<8x128xf32>
    %c204 = arith.constant 204 : index
    %469 = memref.load %arg6[%c204] : memref<257xf32, #tpu.memory_space<smem>>
    %470 = vector.broadcast %469 : f32 to vector<8x128xf32>
    %471 = arith.addf %468, %470 : vector<8x128xf32>
    %cst_90 = arith.constant 0.000000e+00 : f32
    %472 = vector.broadcast %cst_90 : f32 to vector<8x128xf32>
    %473 = arith.maximumf %471, %472 : vector<8x128xf32>
    %c236 = arith.constant 236 : index
    %474 = memref.load %arg6[%c236] : memref<257xf32, #tpu.memory_space<smem>>
    %475 = vector.broadcast %474 : f32 to vector<8x128xf32>
    %476 = arith.mulf %473, %475 : vector<8x128xf32>
    %477 = arith.addf %445, %476 : vector<8x128xf32>
    %c78 = arith.constant 78 : index
    %478 = memref.load %arg6[%c78] : memref<257xf32, #tpu.memory_space<smem>>
    %479 = vector.broadcast %478 : f32 to vector<8x128xf32>
    %480 = arith.mulf %1, %479 : vector<8x128xf32>
    %c79 = arith.constant 79 : index
    %481 = memref.load %arg6[%c79] : memref<257xf32, #tpu.memory_space<smem>>
    %482 = vector.broadcast %481 : f32 to vector<8x128xf32>
    %483 = arith.mulf %3, %482 : vector<8x128xf32>
    %484 = arith.addf %480, %483 : vector<8x128xf32>
    %c80 = arith.constant 80 : index
    %485 = memref.load %arg6[%c80] : memref<257xf32, #tpu.memory_space<smem>>
    %486 = vector.broadcast %485 : f32 to vector<8x128xf32>
    %487 = arith.mulf %5, %486 : vector<8x128xf32>
    %488 = arith.addf %484, %487 : vector<8x128xf32>
    %c81 = arith.constant 81 : index
    %489 = memref.load %arg6[%c81] : memref<257xf32, #tpu.memory_space<smem>>
    %490 = vector.broadcast %489 : f32 to vector<8x128xf32>
    %491 = arith.mulf %60, %490 : vector<8x128xf32>
    %492 = arith.addf %488, %491 : vector<8x128xf32>
    %c82 = arith.constant 82 : index
    %493 = memref.load %arg6[%c82] : memref<257xf32, #tpu.memory_space<smem>>
    %494 = vector.broadcast %493 : f32 to vector<8x128xf32>
    %495 = arith.mulf %62, %494 : vector<8x128xf32>
    %496 = arith.addf %492, %495 : vector<8x128xf32>
    %c83 = arith.constant 83 : index
    %497 = memref.load %arg6[%c83] : memref<257xf32, #tpu.memory_space<smem>>
    %498 = vector.broadcast %497 : f32 to vector<8x128xf32>
    %499 = arith.mulf %7, %498 : vector<8x128xf32>
    %500 = arith.addf %496, %499 : vector<8x128xf32>
    %c205 = arith.constant 205 : index
    %501 = memref.load %arg6[%c205] : memref<257xf32, #tpu.memory_space<smem>>
    %502 = vector.broadcast %501 : f32 to vector<8x128xf32>
    %503 = arith.addf %500, %502 : vector<8x128xf32>
    %cst_91 = arith.constant 0.000000e+00 : f32
    %504 = vector.broadcast %cst_91 : f32 to vector<8x128xf32>
    %505 = arith.maximumf %503, %504 : vector<8x128xf32>
    %c237 = arith.constant 237 : index
    %506 = memref.load %arg6[%c237] : memref<257xf32, #tpu.memory_space<smem>>
    %507 = vector.broadcast %506 : f32 to vector<8x128xf32>
    %508 = arith.mulf %505, %507 : vector<8x128xf32>
    %509 = arith.addf %477, %508 : vector<8x128xf32>
    %c84 = arith.constant 84 : index
    %510 = memref.load %arg6[%c84] : memref<257xf32, #tpu.memory_space<smem>>
    %511 = vector.broadcast %510 : f32 to vector<8x128xf32>
    %512 = arith.mulf %1, %511 : vector<8x128xf32>
    %c85 = arith.constant 85 : index
    %513 = memref.load %arg6[%c85] : memref<257xf32, #tpu.memory_space<smem>>
    %514 = vector.broadcast %513 : f32 to vector<8x128xf32>
    %515 = arith.mulf %3, %514 : vector<8x128xf32>
    %516 = arith.addf %512, %515 : vector<8x128xf32>
    %c86 = arith.constant 86 : index
    %517 = memref.load %arg6[%c86] : memref<257xf32, #tpu.memory_space<smem>>
    %518 = vector.broadcast %517 : f32 to vector<8x128xf32>
    %519 = arith.mulf %5, %518 : vector<8x128xf32>
    %520 = arith.addf %516, %519 : vector<8x128xf32>
    %c87 = arith.constant 87 : index
    %521 = memref.load %arg6[%c87] : memref<257xf32, #tpu.memory_space<smem>>
    %522 = vector.broadcast %521 : f32 to vector<8x128xf32>
    %523 = arith.mulf %60, %522 : vector<8x128xf32>
    %524 = arith.addf %520, %523 : vector<8x128xf32>
    %c88 = arith.constant 88 : index
    %525 = memref.load %arg6[%c88] : memref<257xf32, #tpu.memory_space<smem>>
    %526 = vector.broadcast %525 : f32 to vector<8x128xf32>
    %527 = arith.mulf %62, %526 : vector<8x128xf32>
    %528 = arith.addf %524, %527 : vector<8x128xf32>
    %c89 = arith.constant 89 : index
    %529 = memref.load %arg6[%c89] : memref<257xf32, #tpu.memory_space<smem>>
    %530 = vector.broadcast %529 : f32 to vector<8x128xf32>
    %531 = arith.mulf %7, %530 : vector<8x128xf32>
    %532 = arith.addf %528, %531 : vector<8x128xf32>
    %c206 = arith.constant 206 : index
    %533 = memref.load %arg6[%c206] : memref<257xf32, #tpu.memory_space<smem>>
    %534 = vector.broadcast %533 : f32 to vector<8x128xf32>
    %535 = arith.addf %532, %534 : vector<8x128xf32>
    %cst_92 = arith.constant 0.000000e+00 : f32
    %536 = vector.broadcast %cst_92 : f32 to vector<8x128xf32>
    %537 = arith.maximumf %535, %536 : vector<8x128xf32>
    %c238 = arith.constant 238 : index
    %538 = memref.load %arg6[%c238] : memref<257xf32, #tpu.memory_space<smem>>
    %539 = vector.broadcast %538 : f32 to vector<8x128xf32>
    %540 = arith.mulf %537, %539 : vector<8x128xf32>
    %541 = arith.addf %509, %540 : vector<8x128xf32>
    %c90 = arith.constant 90 : index
    %542 = memref.load %arg6[%c90] : memref<257xf32, #tpu.memory_space<smem>>
    %543 = vector.broadcast %542 : f32 to vector<8x128xf32>
    %544 = arith.mulf %1, %543 : vector<8x128xf32>
    %c91 = arith.constant 91 : index
    %545 = memref.load %arg6[%c91] : memref<257xf32, #tpu.memory_space<smem>>
    %546 = vector.broadcast %545 : f32 to vector<8x128xf32>
    %547 = arith.mulf %3, %546 : vector<8x128xf32>
    %548 = arith.addf %544, %547 : vector<8x128xf32>
    %c92 = arith.constant 92 : index
    %549 = memref.load %arg6[%c92] : memref<257xf32, #tpu.memory_space<smem>>
    %550 = vector.broadcast %549 : f32 to vector<8x128xf32>
    %551 = arith.mulf %5, %550 : vector<8x128xf32>
    %552 = arith.addf %548, %551 : vector<8x128xf32>
    %c93 = arith.constant 93 : index
    %553 = memref.load %arg6[%c93] : memref<257xf32, #tpu.memory_space<smem>>
    %554 = vector.broadcast %553 : f32 to vector<8x128xf32>
    %555 = arith.mulf %60, %554 : vector<8x128xf32>
    %556 = arith.addf %552, %555 : vector<8x128xf32>
    %c94 = arith.constant 94 : index
    %557 = memref.load %arg6[%c94] : memref<257xf32, #tpu.memory_space<smem>>
    %558 = vector.broadcast %557 : f32 to vector<8x128xf32>
    %559 = arith.mulf %62, %558 : vector<8x128xf32>
    %560 = arith.addf %556, %559 : vector<8x128xf32>
    %c95 = arith.constant 95 : index
    %561 = memref.load %arg6[%c95] : memref<257xf32, #tpu.memory_space<smem>>
    %562 = vector.broadcast %561 : f32 to vector<8x128xf32>
    %563 = arith.mulf %7, %562 : vector<8x128xf32>
    %564 = arith.addf %560, %563 : vector<8x128xf32>
    %c207 = arith.constant 207 : index
    %565 = memref.load %arg6[%c207] : memref<257xf32, #tpu.memory_space<smem>>
    %566 = vector.broadcast %565 : f32 to vector<8x128xf32>
    %567 = arith.addf %564, %566 : vector<8x128xf32>
    %cst_93 = arith.constant 0.000000e+00 : f32
    %568 = vector.broadcast %cst_93 : f32 to vector<8x128xf32>
    %569 = arith.maximumf %567, %568 : vector<8x128xf32>
    %c239 = arith.constant 239 : index
    %570 = memref.load %arg6[%c239] : memref<257xf32, #tpu.memory_space<smem>>
    %571 = vector.broadcast %570 : f32 to vector<8x128xf32>
    %572 = arith.mulf %569, %571 : vector<8x128xf32>
    %573 = arith.addf %541, %572 : vector<8x128xf32>
    %c96 = arith.constant 96 : index
    %574 = memref.load %arg6[%c96] : memref<257xf32, #tpu.memory_space<smem>>
    %575 = vector.broadcast %574 : f32 to vector<8x128xf32>
    %576 = arith.mulf %1, %575 : vector<8x128xf32>
    %c97 = arith.constant 97 : index
    %577 = memref.load %arg6[%c97] : memref<257xf32, #tpu.memory_space<smem>>
    %578 = vector.broadcast %577 : f32 to vector<8x128xf32>
    %579 = arith.mulf %3, %578 : vector<8x128xf32>
    %580 = arith.addf %576, %579 : vector<8x128xf32>
    %c98 = arith.constant 98 : index
    %581 = memref.load %arg6[%c98] : memref<257xf32, #tpu.memory_space<smem>>
    %582 = vector.broadcast %581 : f32 to vector<8x128xf32>
    %583 = arith.mulf %5, %582 : vector<8x128xf32>
    %584 = arith.addf %580, %583 : vector<8x128xf32>
    %c99 = arith.constant 99 : index
    %585 = memref.load %arg6[%c99] : memref<257xf32, #tpu.memory_space<smem>>
    %586 = vector.broadcast %585 : f32 to vector<8x128xf32>
    %587 = arith.mulf %60, %586 : vector<8x128xf32>
    %588 = arith.addf %584, %587 : vector<8x128xf32>
    %c100 = arith.constant 100 : index
    %589 = memref.load %arg6[%c100] : memref<257xf32, #tpu.memory_space<smem>>
    %590 = vector.broadcast %589 : f32 to vector<8x128xf32>
    %591 = arith.mulf %62, %590 : vector<8x128xf32>
    %592 = arith.addf %588, %591 : vector<8x128xf32>
    %c101 = arith.constant 101 : index
    %593 = memref.load %arg6[%c101] : memref<257xf32, #tpu.memory_space<smem>>
    %594 = vector.broadcast %593 : f32 to vector<8x128xf32>
    %595 = arith.mulf %7, %594 : vector<8x128xf32>
    %596 = arith.addf %592, %595 : vector<8x128xf32>
    %c208 = arith.constant 208 : index
    %597 = memref.load %arg6[%c208] : memref<257xf32, #tpu.memory_space<smem>>
    %598 = vector.broadcast %597 : f32 to vector<8x128xf32>
    %599 = arith.addf %596, %598 : vector<8x128xf32>
    %cst_94 = arith.constant 0.000000e+00 : f32
    %600 = vector.broadcast %cst_94 : f32 to vector<8x128xf32>
    %601 = arith.maximumf %599, %600 : vector<8x128xf32>
    %c240 = arith.constant 240 : index
    %602 = memref.load %arg6[%c240] : memref<257xf32, #tpu.memory_space<smem>>
    %603 = vector.broadcast %602 : f32 to vector<8x128xf32>
    %604 = arith.mulf %601, %603 : vector<8x128xf32>
    %605 = arith.addf %573, %604 : vector<8x128xf32>
    %c102 = arith.constant 102 : index
    %606 = memref.load %arg6[%c102] : memref<257xf32, #tpu.memory_space<smem>>
    %607 = vector.broadcast %606 : f32 to vector<8x128xf32>
    %608 = arith.mulf %1, %607 : vector<8x128xf32>
    %c103 = arith.constant 103 : index
    %609 = memref.load %arg6[%c103] : memref<257xf32, #tpu.memory_space<smem>>
    %610 = vector.broadcast %609 : f32 to vector<8x128xf32>
    %611 = arith.mulf %3, %610 : vector<8x128xf32>
    %612 = arith.addf %608, %611 : vector<8x128xf32>
    %c104 = arith.constant 104 : index
    %613 = memref.load %arg6[%c104] : memref<257xf32, #tpu.memory_space<smem>>
    %614 = vector.broadcast %613 : f32 to vector<8x128xf32>
    %615 = arith.mulf %5, %614 : vector<8x128xf32>
    %616 = arith.addf %612, %615 : vector<8x128xf32>
    %c105 = arith.constant 105 : index
    %617 = memref.load %arg6[%c105] : memref<257xf32, #tpu.memory_space<smem>>
    %618 = vector.broadcast %617 : f32 to vector<8x128xf32>
    %619 = arith.mulf %60, %618 : vector<8x128xf32>
    %620 = arith.addf %616, %619 : vector<8x128xf32>
    %c106 = arith.constant 106 : index
    %621 = memref.load %arg6[%c106] : memref<257xf32, #tpu.memory_space<smem>>
    %622 = vector.broadcast %621 : f32 to vector<8x128xf32>
    %623 = arith.mulf %62, %622 : vector<8x128xf32>
    %624 = arith.addf %620, %623 : vector<8x128xf32>
    %c107 = arith.constant 107 : index
    %625 = memref.load %arg6[%c107] : memref<257xf32, #tpu.memory_space<smem>>
    %626 = vector.broadcast %625 : f32 to vector<8x128xf32>
    %627 = arith.mulf %7, %626 : vector<8x128xf32>
    %628 = arith.addf %624, %627 : vector<8x128xf32>
    %c209 = arith.constant 209 : index
    %629 = memref.load %arg6[%c209] : memref<257xf32, #tpu.memory_space<smem>>
    %630 = vector.broadcast %629 : f32 to vector<8x128xf32>
    %631 = arith.addf %628, %630 : vector<8x128xf32>
    %cst_95 = arith.constant 0.000000e+00 : f32
    %632 = vector.broadcast %cst_95 : f32 to vector<8x128xf32>
    %633 = arith.maximumf %631, %632 : vector<8x128xf32>
    %c241 = arith.constant 241 : index
    %634 = memref.load %arg6[%c241] : memref<257xf32, #tpu.memory_space<smem>>
    %635 = vector.broadcast %634 : f32 to vector<8x128xf32>
    %636 = arith.mulf %633, %635 : vector<8x128xf32>
    %637 = arith.addf %605, %636 : vector<8x128xf32>
    %c108 = arith.constant 108 : index
    %638 = memref.load %arg6[%c108] : memref<257xf32, #tpu.memory_space<smem>>
    %639 = vector.broadcast %638 : f32 to vector<8x128xf32>
    %640 = arith.mulf %1, %639 : vector<8x128xf32>
    %c109 = arith.constant 109 : index
    %641 = memref.load %arg6[%c109] : memref<257xf32, #tpu.memory_space<smem>>
    %642 = vector.broadcast %641 : f32 to vector<8x128xf32>
    %643 = arith.mulf %3, %642 : vector<8x128xf32>
    %644 = arith.addf %640, %643 : vector<8x128xf32>
    %c110 = arith.constant 110 : index
    %645 = memref.load %arg6[%c110] : memref<257xf32, #tpu.memory_space<smem>>
    %646 = vector.broadcast %645 : f32 to vector<8x128xf32>
    %647 = arith.mulf %5, %646 : vector<8x128xf32>
    %648 = arith.addf %644, %647 : vector<8x128xf32>
    %c111 = arith.constant 111 : index
    %649 = memref.load %arg6[%c111] : memref<257xf32, #tpu.memory_space<smem>>
    %650 = vector.broadcast %649 : f32 to vector<8x128xf32>
    %651 = arith.mulf %60, %650 : vector<8x128xf32>
    %652 = arith.addf %648, %651 : vector<8x128xf32>
    %c112 = arith.constant 112 : index
    %653 = memref.load %arg6[%c112] : memref<257xf32, #tpu.memory_space<smem>>
    %654 = vector.broadcast %653 : f32 to vector<8x128xf32>
    %655 = arith.mulf %62, %654 : vector<8x128xf32>
    %656 = arith.addf %652, %655 : vector<8x128xf32>
    %c113 = arith.constant 113 : index
    %657 = memref.load %arg6[%c113] : memref<257xf32, #tpu.memory_space<smem>>
    %658 = vector.broadcast %657 : f32 to vector<8x128xf32>
    %659 = arith.mulf %7, %658 : vector<8x128xf32>
    %660 = arith.addf %656, %659 : vector<8x128xf32>
    %c210 = arith.constant 210 : index
    %661 = memref.load %arg6[%c210] : memref<257xf32, #tpu.memory_space<smem>>
    %662 = vector.broadcast %661 : f32 to vector<8x128xf32>
    %663 = arith.addf %660, %662 : vector<8x128xf32>
    %cst_96 = arith.constant 0.000000e+00 : f32
    %664 = vector.broadcast %cst_96 : f32 to vector<8x128xf32>
    %665 = arith.maximumf %663, %664 : vector<8x128xf32>
    %c242 = arith.constant 242 : index
    %666 = memref.load %arg6[%c242] : memref<257xf32, #tpu.memory_space<smem>>
    %667 = vector.broadcast %666 : f32 to vector<8x128xf32>
    %668 = arith.mulf %665, %667 : vector<8x128xf32>
    %669 = arith.addf %637, %668 : vector<8x128xf32>
    %c114 = arith.constant 114 : index
    %670 = memref.load %arg6[%c114] : memref<257xf32, #tpu.memory_space<smem>>
    %671 = vector.broadcast %670 : f32 to vector<8x128xf32>
    %672 = arith.mulf %1, %671 : vector<8x128xf32>
    %c115 = arith.constant 115 : index
    %673 = memref.load %arg6[%c115] : memref<257xf32, #tpu.memory_space<smem>>
    %674 = vector.broadcast %673 : f32 to vector<8x128xf32>
    %675 = arith.mulf %3, %674 : vector<8x128xf32>
    %676 = arith.addf %672, %675 : vector<8x128xf32>
    %c116 = arith.constant 116 : index
    %677 = memref.load %arg6[%c116] : memref<257xf32, #tpu.memory_space<smem>>
    %678 = vector.broadcast %677 : f32 to vector<8x128xf32>
    %679 = arith.mulf %5, %678 : vector<8x128xf32>
    %680 = arith.addf %676, %679 : vector<8x128xf32>
    %c117 = arith.constant 117 : index
    %681 = memref.load %arg6[%c117] : memref<257xf32, #tpu.memory_space<smem>>
    %682 = vector.broadcast %681 : f32 to vector<8x128xf32>
    %683 = arith.mulf %60, %682 : vector<8x128xf32>
    %684 = arith.addf %680, %683 : vector<8x128xf32>
    %c118 = arith.constant 118 : index
    %685 = memref.load %arg6[%c118] : memref<257xf32, #tpu.memory_space<smem>>
    %686 = vector.broadcast %685 : f32 to vector<8x128xf32>
    %687 = arith.mulf %62, %686 : vector<8x128xf32>
    %688 = arith.addf %684, %687 : vector<8x128xf32>
    %c119 = arith.constant 119 : index
    %689 = memref.load %arg6[%c119] : memref<257xf32, #tpu.memory_space<smem>>
    %690 = vector.broadcast %689 : f32 to vector<8x128xf32>
    %691 = arith.mulf %7, %690 : vector<8x128xf32>
    %692 = arith.addf %688, %691 : vector<8x128xf32>
    %c211 = arith.constant 211 : index
    %693 = memref.load %arg6[%c211] : memref<257xf32, #tpu.memory_space<smem>>
    %694 = vector.broadcast %693 : f32 to vector<8x128xf32>
    %695 = arith.addf %692, %694 : vector<8x128xf32>
    %cst_97 = arith.constant 0.000000e+00 : f32
    %696 = vector.broadcast %cst_97 : f32 to vector<8x128xf32>
    %697 = arith.maximumf %695, %696 : vector<8x128xf32>
    %c243 = arith.constant 243 : index
    %698 = memref.load %arg6[%c243] : memref<257xf32, #tpu.memory_space<smem>>
    %699 = vector.broadcast %698 : f32 to vector<8x128xf32>
    %700 = arith.mulf %697, %699 : vector<8x128xf32>
    %701 = arith.addf %669, %700 : vector<8x128xf32>
    %c120 = arith.constant 120 : index
    %702 = memref.load %arg6[%c120] : memref<257xf32, #tpu.memory_space<smem>>
    %703 = vector.broadcast %702 : f32 to vector<8x128xf32>
    %704 = arith.mulf %1, %703 : vector<8x128xf32>
    %c121 = arith.constant 121 : index
    %705 = memref.load %arg6[%c121] : memref<257xf32, #tpu.memory_space<smem>>
    %706 = vector.broadcast %705 : f32 to vector<8x128xf32>
    %707 = arith.mulf %3, %706 : vector<8x128xf32>
    %708 = arith.addf %704, %707 : vector<8x128xf32>
    %c122 = arith.constant 122 : index
    %709 = memref.load %arg6[%c122] : memref<257xf32, #tpu.memory_space<smem>>
    %710 = vector.broadcast %709 : f32 to vector<8x128xf32>
    %711 = arith.mulf %5, %710 : vector<8x128xf32>
    %712 = arith.addf %708, %711 : vector<8x128xf32>
    %c123 = arith.constant 123 : index
    %713 = memref.load %arg6[%c123] : memref<257xf32, #tpu.memory_space<smem>>
    %714 = vector.broadcast %713 : f32 to vector<8x128xf32>
    %715 = arith.mulf %60, %714 : vector<8x128xf32>
    %716 = arith.addf %712, %715 : vector<8x128xf32>
    %c124 = arith.constant 124 : index
    %717 = memref.load %arg6[%c124] : memref<257xf32, #tpu.memory_space<smem>>
    %718 = vector.broadcast %717 : f32 to vector<8x128xf32>
    %719 = arith.mulf %62, %718 : vector<8x128xf32>
    %720 = arith.addf %716, %719 : vector<8x128xf32>
    %c125 = arith.constant 125 : index
    %721 = memref.load %arg6[%c125] : memref<257xf32, #tpu.memory_space<smem>>
    %722 = vector.broadcast %721 : f32 to vector<8x128xf32>
    %723 = arith.mulf %7, %722 : vector<8x128xf32>
    %724 = arith.addf %720, %723 : vector<8x128xf32>
    %c212 = arith.constant 212 : index
    %725 = memref.load %arg6[%c212] : memref<257xf32, #tpu.memory_space<smem>>
    %726 = vector.broadcast %725 : f32 to vector<8x128xf32>
    %727 = arith.addf %724, %726 : vector<8x128xf32>
    %cst_98 = arith.constant 0.000000e+00 : f32
    %728 = vector.broadcast %cst_98 : f32 to vector<8x128xf32>
    %729 = arith.maximumf %727, %728 : vector<8x128xf32>
    %c244 = arith.constant 244 : index
    %730 = memref.load %arg6[%c244] : memref<257xf32, #tpu.memory_space<smem>>
    %731 = vector.broadcast %730 : f32 to vector<8x128xf32>
    %732 = arith.mulf %729, %731 : vector<8x128xf32>
    %733 = arith.addf %701, %732 : vector<8x128xf32>
    %c126 = arith.constant 126 : index
    %734 = memref.load %arg6[%c126] : memref<257xf32, #tpu.memory_space<smem>>
    %735 = vector.broadcast %734 : f32 to vector<8x128xf32>
    %736 = arith.mulf %1, %735 : vector<8x128xf32>
    %c127 = arith.constant 127 : index
    %737 = memref.load %arg6[%c127] : memref<257xf32, #tpu.memory_space<smem>>
    %738 = vector.broadcast %737 : f32 to vector<8x128xf32>
    %739 = arith.mulf %3, %738 : vector<8x128xf32>
    %740 = arith.addf %736, %739 : vector<8x128xf32>
    %c128 = arith.constant 128 : index
    %741 = memref.load %arg6[%c128] : memref<257xf32, #tpu.memory_space<smem>>
    %742 = vector.broadcast %741 : f32 to vector<8x128xf32>
    %743 = arith.mulf %5, %742 : vector<8x128xf32>
    %744 = arith.addf %740, %743 : vector<8x128xf32>
    %c129 = arith.constant 129 : index
    %745 = memref.load %arg6[%c129] : memref<257xf32, #tpu.memory_space<smem>>
    %746 = vector.broadcast %745 : f32 to vector<8x128xf32>
    %747 = arith.mulf %60, %746 : vector<8x128xf32>
    %748 = arith.addf %744, %747 : vector<8x128xf32>
    %c130 = arith.constant 130 : index
    %749 = memref.load %arg6[%c130] : memref<257xf32, #tpu.memory_space<smem>>
    %750 = vector.broadcast %749 : f32 to vector<8x128xf32>
    %751 = arith.mulf %62, %750 : vector<8x128xf32>
    %752 = arith.addf %748, %751 : vector<8x128xf32>
    %c131 = arith.constant 131 : index
    %753 = memref.load %arg6[%c131] : memref<257xf32, #tpu.memory_space<smem>>
    %754 = vector.broadcast %753 : f32 to vector<8x128xf32>
    %755 = arith.mulf %7, %754 : vector<8x128xf32>
    %756 = arith.addf %752, %755 : vector<8x128xf32>
    %c213 = arith.constant 213 : index
    %757 = memref.load %arg6[%c213] : memref<257xf32, #tpu.memory_space<smem>>
    %758 = vector.broadcast %757 : f32 to vector<8x128xf32>
    %759 = arith.addf %756, %758 : vector<8x128xf32>
    %cst_99 = arith.constant 0.000000e+00 : f32
    %760 = vector.broadcast %cst_99 : f32 to vector<8x128xf32>
    %761 = arith.maximumf %759, %760 : vector<8x128xf32>
    %c245 = arith.constant 245 : index
    %762 = memref.load %arg6[%c245] : memref<257xf32, #tpu.memory_space<smem>>
    %763 = vector.broadcast %762 : f32 to vector<8x128xf32>
    %764 = arith.mulf %761, %763 : vector<8x128xf32>
    %765 = arith.addf %733, %764 : vector<8x128xf32>
    %c132 = arith.constant 132 : index
    %766 = memref.load %arg6[%c132] : memref<257xf32, #tpu.memory_space<smem>>
    %767 = vector.broadcast %766 : f32 to vector<8x128xf32>
    %768 = arith.mulf %1, %767 : vector<8x128xf32>
    %c133 = arith.constant 133 : index
    %769 = memref.load %arg6[%c133] : memref<257xf32, #tpu.memory_space<smem>>
    %770 = vector.broadcast %769 : f32 to vector<8x128xf32>
    %771 = arith.mulf %3, %770 : vector<8x128xf32>
    %772 = arith.addf %768, %771 : vector<8x128xf32>
    %c134 = arith.constant 134 : index
    %773 = memref.load %arg6[%c134] : memref<257xf32, #tpu.memory_space<smem>>
    %774 = vector.broadcast %773 : f32 to vector<8x128xf32>
    %775 = arith.mulf %5, %774 : vector<8x128xf32>
    %776 = arith.addf %772, %775 : vector<8x128xf32>
    %c135 = arith.constant 135 : index
    %777 = memref.load %arg6[%c135] : memref<257xf32, #tpu.memory_space<smem>>
    %778 = vector.broadcast %777 : f32 to vector<8x128xf32>
    %779 = arith.mulf %60, %778 : vector<8x128xf32>
    %780 = arith.addf %776, %779 : vector<8x128xf32>
    %c136 = arith.constant 136 : index
    %781 = memref.load %arg6[%c136] : memref<257xf32, #tpu.memory_space<smem>>
    %782 = vector.broadcast %781 : f32 to vector<8x128xf32>
    %783 = arith.mulf %62, %782 : vector<8x128xf32>
    %784 = arith.addf %780, %783 : vector<8x128xf32>
    %c137 = arith.constant 137 : index
    %785 = memref.load %arg6[%c137] : memref<257xf32, #tpu.memory_space<smem>>
    %786 = vector.broadcast %785 : f32 to vector<8x128xf32>
    %787 = arith.mulf %7, %786 : vector<8x128xf32>
    %788 = arith.addf %784, %787 : vector<8x128xf32>
    %c214 = arith.constant 214 : index
    %789 = memref.load %arg6[%c214] : memref<257xf32, #tpu.memory_space<smem>>
    %790 = vector.broadcast %789 : f32 to vector<8x128xf32>
    %791 = arith.addf %788, %790 : vector<8x128xf32>
    %cst_100 = arith.constant 0.000000e+00 : f32
    %792 = vector.broadcast %cst_100 : f32 to vector<8x128xf32>
    %793 = arith.maximumf %791, %792 : vector<8x128xf32>
    %c246 = arith.constant 246 : index
    %794 = memref.load %arg6[%c246] : memref<257xf32, #tpu.memory_space<smem>>
    %795 = vector.broadcast %794 : f32 to vector<8x128xf32>
    %796 = arith.mulf %793, %795 : vector<8x128xf32>
    %797 = arith.addf %765, %796 : vector<8x128xf32>
    %c138 = arith.constant 138 : index
    %798 = memref.load %arg6[%c138] : memref<257xf32, #tpu.memory_space<smem>>
    %799 = vector.broadcast %798 : f32 to vector<8x128xf32>
    %800 = arith.mulf %1, %799 : vector<8x128xf32>
    %c139 = arith.constant 139 : index
    %801 = memref.load %arg6[%c139] : memref<257xf32, #tpu.memory_space<smem>>
    %802 = vector.broadcast %801 : f32 to vector<8x128xf32>
    %803 = arith.mulf %3, %802 : vector<8x128xf32>
    %804 = arith.addf %800, %803 : vector<8x128xf32>
    %c140 = arith.constant 140 : index
    %805 = memref.load %arg6[%c140] : memref<257xf32, #tpu.memory_space<smem>>
    %806 = vector.broadcast %805 : f32 to vector<8x128xf32>
    %807 = arith.mulf %5, %806 : vector<8x128xf32>
    %808 = arith.addf %804, %807 : vector<8x128xf32>
    %c141 = arith.constant 141 : index
    %809 = memref.load %arg6[%c141] : memref<257xf32, #tpu.memory_space<smem>>
    %810 = vector.broadcast %809 : f32 to vector<8x128xf32>
    %811 = arith.mulf %60, %810 : vector<8x128xf32>
    %812 = arith.addf %808, %811 : vector<8x128xf32>
    %c142 = arith.constant 142 : index
    %813 = memref.load %arg6[%c142] : memref<257xf32, #tpu.memory_space<smem>>
    %814 = vector.broadcast %813 : f32 to vector<8x128xf32>
    %815 = arith.mulf %62, %814 : vector<8x128xf32>
    %816 = arith.addf %812, %815 : vector<8x128xf32>
    %c143 = arith.constant 143 : index
    %817 = memref.load %arg6[%c143] : memref<257xf32, #tpu.memory_space<smem>>
    %818 = vector.broadcast %817 : f32 to vector<8x128xf32>
    %819 = arith.mulf %7, %818 : vector<8x128xf32>
    %820 = arith.addf %816, %819 : vector<8x128xf32>
    %c215 = arith.constant 215 : index
    %821 = memref.load %arg6[%c215] : memref<257xf32, #tpu.memory_space<smem>>
    %822 = vector.broadcast %821 : f32 to vector<8x128xf32>
    %823 = arith.addf %820, %822 : vector<8x128xf32>
    %cst_101 = arith.constant 0.000000e+00 : f32
    %824 = vector.broadcast %cst_101 : f32 to vector<8x128xf32>
    %825 = arith.maximumf %823, %824 : vector<8x128xf32>
    %c247 = arith.constant 247 : index
    %826 = memref.load %arg6[%c247] : memref<257xf32, #tpu.memory_space<smem>>
    %827 = vector.broadcast %826 : f32 to vector<8x128xf32>
    %828 = arith.mulf %825, %827 : vector<8x128xf32>
    %829 = arith.addf %797, %828 : vector<8x128xf32>
    %c144 = arith.constant 144 : index
    %830 = memref.load %arg6[%c144] : memref<257xf32, #tpu.memory_space<smem>>
    %831 = vector.broadcast %830 : f32 to vector<8x128xf32>
    %832 = arith.mulf %1, %831 : vector<8x128xf32>
    %c145 = arith.constant 145 : index
    %833 = memref.load %arg6[%c145] : memref<257xf32, #tpu.memory_space<smem>>
    %834 = vector.broadcast %833 : f32 to vector<8x128xf32>
    %835 = arith.mulf %3, %834 : vector<8x128xf32>
    %836 = arith.addf %832, %835 : vector<8x128xf32>
    %c146 = arith.constant 146 : index
    %837 = memref.load %arg6[%c146] : memref<257xf32, #tpu.memory_space<smem>>
    %838 = vector.broadcast %837 : f32 to vector<8x128xf32>
    %839 = arith.mulf %5, %838 : vector<8x128xf32>
    %840 = arith.addf %836, %839 : vector<8x128xf32>
    %c147 = arith.constant 147 : index
    %841 = memref.load %arg6[%c147] : memref<257xf32, #tpu.memory_space<smem>>
    %842 = vector.broadcast %841 : f32 to vector<8x128xf32>
    %843 = arith.mulf %60, %842 : vector<8x128xf32>
    %844 = arith.addf %840, %843 : vector<8x128xf32>
    %c148 = arith.constant 148 : index
    %845 = memref.load %arg6[%c148] : memref<257xf32, #tpu.memory_space<smem>>
    %846 = vector.broadcast %845 : f32 to vector<8x128xf32>
    %847 = arith.mulf %62, %846 : vector<8x128xf32>
    %848 = arith.addf %844, %847 : vector<8x128xf32>
    %c149 = arith.constant 149 : index
    %849 = memref.load %arg6[%c149] : memref<257xf32, #tpu.memory_space<smem>>
    %850 = vector.broadcast %849 : f32 to vector<8x128xf32>
    %851 = arith.mulf %7, %850 : vector<8x128xf32>
    %852 = arith.addf %848, %851 : vector<8x128xf32>
    %c216 = arith.constant 216 : index
    %853 = memref.load %arg6[%c216] : memref<257xf32, #tpu.memory_space<smem>>
    %854 = vector.broadcast %853 : f32 to vector<8x128xf32>
    %855 = arith.addf %852, %854 : vector<8x128xf32>
    %cst_102 = arith.constant 0.000000e+00 : f32
    %856 = vector.broadcast %cst_102 : f32 to vector<8x128xf32>
    %857 = arith.maximumf %855, %856 : vector<8x128xf32>
    %c248 = arith.constant 248 : index
    %858 = memref.load %arg6[%c248] : memref<257xf32, #tpu.memory_space<smem>>
    %859 = vector.broadcast %858 : f32 to vector<8x128xf32>
    %860 = arith.mulf %857, %859 : vector<8x128xf32>
    %861 = arith.addf %829, %860 : vector<8x128xf32>
    %c150 = arith.constant 150 : index
    %862 = memref.load %arg6[%c150] : memref<257xf32, #tpu.memory_space<smem>>
    %863 = vector.broadcast %862 : f32 to vector<8x128xf32>
    %864 = arith.mulf %1, %863 : vector<8x128xf32>
    %c151 = arith.constant 151 : index
    %865 = memref.load %arg6[%c151] : memref<257xf32, #tpu.memory_space<smem>>
    %866 = vector.broadcast %865 : f32 to vector<8x128xf32>
    %867 = arith.mulf %3, %866 : vector<8x128xf32>
    %868 = arith.addf %864, %867 : vector<8x128xf32>
    %c152 = arith.constant 152 : index
    %869 = memref.load %arg6[%c152] : memref<257xf32, #tpu.memory_space<smem>>
    %870 = vector.broadcast %869 : f32 to vector<8x128xf32>
    %871 = arith.mulf %5, %870 : vector<8x128xf32>
    %872 = arith.addf %868, %871 : vector<8x128xf32>
    %c153 = arith.constant 153 : index
    %873 = memref.load %arg6[%c153] : memref<257xf32, #tpu.memory_space<smem>>
    %874 = vector.broadcast %873 : f32 to vector<8x128xf32>
    %875 = arith.mulf %60, %874 : vector<8x128xf32>
    %876 = arith.addf %872, %875 : vector<8x128xf32>
    %c154 = arith.constant 154 : index
    %877 = memref.load %arg6[%c154] : memref<257xf32, #tpu.memory_space<smem>>
    %878 = vector.broadcast %877 : f32 to vector<8x128xf32>
    %879 = arith.mulf %62, %878 : vector<8x128xf32>
    %880 = arith.addf %876, %879 : vector<8x128xf32>
    %c155 = arith.constant 155 : index
    %881 = memref.load %arg6[%c155] : memref<257xf32, #tpu.memory_space<smem>>
    %882 = vector.broadcast %881 : f32 to vector<8x128xf32>
    %883 = arith.mulf %7, %882 : vector<8x128xf32>
    %884 = arith.addf %880, %883 : vector<8x128xf32>
    %c217 = arith.constant 217 : index
    %885 = memref.load %arg6[%c217] : memref<257xf32, #tpu.memory_space<smem>>
    %886 = vector.broadcast %885 : f32 to vector<8x128xf32>
    %887 = arith.addf %884, %886 : vector<8x128xf32>
    %cst_103 = arith.constant 0.000000e+00 : f32
    %888 = vector.broadcast %cst_103 : f32 to vector<8x128xf32>
    %889 = arith.maximumf %887, %888 : vector<8x128xf32>
    %c249 = arith.constant 249 : index
    %890 = memref.load %arg6[%c249] : memref<257xf32, #tpu.memory_space<smem>>
    %891 = vector.broadcast %890 : f32 to vector<8x128xf32>
    %892 = arith.mulf %889, %891 : vector<8x128xf32>
    %893 = arith.addf %861, %892 : vector<8x128xf32>
    %c156 = arith.constant 156 : index
    %894 = memref.load %arg6[%c156] : memref<257xf32, #tpu.memory_space<smem>>
    %895 = vector.broadcast %894 : f32 to vector<8x128xf32>
    %896 = arith.mulf %1, %895 : vector<8x128xf32>
    %c157 = arith.constant 157 : index
    %897 = memref.load %arg6[%c157] : memref<257xf32, #tpu.memory_space<smem>>
    %898 = vector.broadcast %897 : f32 to vector<8x128xf32>
    %899 = arith.mulf %3, %898 : vector<8x128xf32>
    %900 = arith.addf %896, %899 : vector<8x128xf32>
    %c158 = arith.constant 158 : index
    %901 = memref.load %arg6[%c158] : memref<257xf32, #tpu.memory_space<smem>>
    %902 = vector.broadcast %901 : f32 to vector<8x128xf32>
    %903 = arith.mulf %5, %902 : vector<8x128xf32>
    %904 = arith.addf %900, %903 : vector<8x128xf32>
    %c159 = arith.constant 159 : index
    %905 = memref.load %arg6[%c159] : memref<257xf32, #tpu.memory_space<smem>>
    %906 = vector.broadcast %905 : f32 to vector<8x128xf32>
    %907 = arith.mulf %60, %906 : vector<8x128xf32>
    %908 = arith.addf %904, %907 : vector<8x128xf32>
    %c160 = arith.constant 160 : index
    %909 = memref.load %arg6[%c160] : memref<257xf32, #tpu.memory_space<smem>>
    %910 = vector.broadcast %909 : f32 to vector<8x128xf32>
    %911 = arith.mulf %62, %910 : vector<8x128xf32>
    %912 = arith.addf %908, %911 : vector<8x128xf32>
    %c161 = arith.constant 161 : index
    %913 = memref.load %arg6[%c161] : memref<257xf32, #tpu.memory_space<smem>>
    %914 = vector.broadcast %913 : f32 to vector<8x128xf32>
    %915 = arith.mulf %7, %914 : vector<8x128xf32>
    %916 = arith.addf %912, %915 : vector<8x128xf32>
    %c218 = arith.constant 218 : index
    %917 = memref.load %arg6[%c218] : memref<257xf32, #tpu.memory_space<smem>>
    %918 = vector.broadcast %917 : f32 to vector<8x128xf32>
    %919 = arith.addf %916, %918 : vector<8x128xf32>
    %cst_104 = arith.constant 0.000000e+00 : f32
    %920 = vector.broadcast %cst_104 : f32 to vector<8x128xf32>
    %921 = arith.maximumf %919, %920 : vector<8x128xf32>
    %c250 = arith.constant 250 : index
    %922 = memref.load %arg6[%c250] : memref<257xf32, #tpu.memory_space<smem>>
    %923 = vector.broadcast %922 : f32 to vector<8x128xf32>
    %924 = arith.mulf %921, %923 : vector<8x128xf32>
    %925 = arith.addf %893, %924 : vector<8x128xf32>
    %c162 = arith.constant 162 : index
    %926 = memref.load %arg6[%c162] : memref<257xf32, #tpu.memory_space<smem>>
    %927 = vector.broadcast %926 : f32 to vector<8x128xf32>
    %928 = arith.mulf %1, %927 : vector<8x128xf32>
    %c163 = arith.constant 163 : index
    %929 = memref.load %arg6[%c163] : memref<257xf32, #tpu.memory_space<smem>>
    %930 = vector.broadcast %929 : f32 to vector<8x128xf32>
    %931 = arith.mulf %3, %930 : vector<8x128xf32>
    %932 = arith.addf %928, %931 : vector<8x128xf32>
    %c164 = arith.constant 164 : index
    %933 = memref.load %arg6[%c164] : memref<257xf32, #tpu.memory_space<smem>>
    %934 = vector.broadcast %933 : f32 to vector<8x128xf32>
    %935 = arith.mulf %5, %934 : vector<8x128xf32>
    %936 = arith.addf %932, %935 : vector<8x128xf32>
    %c165 = arith.constant 165 : index
    %937 = memref.load %arg6[%c165] : memref<257xf32, #tpu.memory_space<smem>>
    %938 = vector.broadcast %937 : f32 to vector<8x128xf32>
    %939 = arith.mulf %60, %938 : vector<8x128xf32>
    %940 = arith.addf %936, %939 : vector<8x128xf32>
    %c166 = arith.constant 166 : index
    %941 = memref.load %arg6[%c166] : memref<257xf32, #tpu.memory_space<smem>>
    %942 = vector.broadcast %941 : f32 to vector<8x128xf32>
    %943 = arith.mulf %62, %942 : vector<8x128xf32>
    %944 = arith.addf %940, %943 : vector<8x128xf32>
    %c167 = arith.constant 167 : index
    %945 = memref.load %arg6[%c167] : memref<257xf32, #tpu.memory_space<smem>>
    %946 = vector.broadcast %945 : f32 to vector<8x128xf32>
    %947 = arith.mulf %7, %946 : vector<8x128xf32>
    %948 = arith.addf %944, %947 : vector<8x128xf32>
    %c219 = arith.constant 219 : index
    %949 = memref.load %arg6[%c219] : memref<257xf32, #tpu.memory_space<smem>>
    %950 = vector.broadcast %949 : f32 to vector<8x128xf32>
    %951 = arith.addf %948, %950 : vector<8x128xf32>
    %cst_105 = arith.constant 0.000000e+00 : f32
    %952 = vector.broadcast %cst_105 : f32 to vector<8x128xf32>
    %953 = arith.maximumf %951, %952 : vector<8x128xf32>
    %c251 = arith.constant 251 : index
    %954 = memref.load %arg6[%c251] : memref<257xf32, #tpu.memory_space<smem>>
    %955 = vector.broadcast %954 : f32 to vector<8x128xf32>
    %956 = arith.mulf %953, %955 : vector<8x128xf32>
    %957 = arith.addf %925, %956 : vector<8x128xf32>
    %c168 = arith.constant 168 : index
    %958 = memref.load %arg6[%c168] : memref<257xf32, #tpu.memory_space<smem>>
    %959 = vector.broadcast %958 : f32 to vector<8x128xf32>
    %960 = arith.mulf %1, %959 : vector<8x128xf32>
    %c169 = arith.constant 169 : index
    %961 = memref.load %arg6[%c169] : memref<257xf32, #tpu.memory_space<smem>>
    %962 = vector.broadcast %961 : f32 to vector<8x128xf32>
    %963 = arith.mulf %3, %962 : vector<8x128xf32>
    %964 = arith.addf %960, %963 : vector<8x128xf32>
    %c170 = arith.constant 170 : index
    %965 = memref.load %arg6[%c170] : memref<257xf32, #tpu.memory_space<smem>>
    %966 = vector.broadcast %965 : f32 to vector<8x128xf32>
    %967 = arith.mulf %5, %966 : vector<8x128xf32>
    %968 = arith.addf %964, %967 : vector<8x128xf32>
    %c171 = arith.constant 171 : index
    %969 = memref.load %arg6[%c171] : memref<257xf32, #tpu.memory_space<smem>>
    %970 = vector.broadcast %969 : f32 to vector<8x128xf32>
    %971 = arith.mulf %60, %970 : vector<8x128xf32>
    %972 = arith.addf %968, %971 : vector<8x128xf32>
    %c172 = arith.constant 172 : index
    %973 = memref.load %arg6[%c172] : memref<257xf32, #tpu.memory_space<smem>>
    %974 = vector.broadcast %973 : f32 to vector<8x128xf32>
    %975 = arith.mulf %62, %974 : vector<8x128xf32>
    %976 = arith.addf %972, %975 : vector<8x128xf32>
    %c173 = arith.constant 173 : index
    %977 = memref.load %arg6[%c173] : memref<257xf32, #tpu.memory_space<smem>>
    %978 = vector.broadcast %977 : f32 to vector<8x128xf32>
    %979 = arith.mulf %7, %978 : vector<8x128xf32>
    %980 = arith.addf %976, %979 : vector<8x128xf32>
    %c220 = arith.constant 220 : index
    %981 = memref.load %arg6[%c220] : memref<257xf32, #tpu.memory_space<smem>>
    %982 = vector.broadcast %981 : f32 to vector<8x128xf32>
    %983 = arith.addf %980, %982 : vector<8x128xf32>
    %cst_106 = arith.constant 0.000000e+00 : f32
    %984 = vector.broadcast %cst_106 : f32 to vector<8x128xf32>
    %985 = arith.maximumf %983, %984 : vector<8x128xf32>
    %c252 = arith.constant 252 : index
    %986 = memref.load %arg6[%c252] : memref<257xf32, #tpu.memory_space<smem>>
    %987 = vector.broadcast %986 : f32 to vector<8x128xf32>
    %988 = arith.mulf %985, %987 : vector<8x128xf32>
    %989 = arith.addf %957, %988 : vector<8x128xf32>
    %c174 = arith.constant 174 : index
    %990 = memref.load %arg6[%c174] : memref<257xf32, #tpu.memory_space<smem>>
    %991 = vector.broadcast %990 : f32 to vector<8x128xf32>
    %992 = arith.mulf %1, %991 : vector<8x128xf32>
    %c175 = arith.constant 175 : index
    %993 = memref.load %arg6[%c175] : memref<257xf32, #tpu.memory_space<smem>>
    %994 = vector.broadcast %993 : f32 to vector<8x128xf32>
    %995 = arith.mulf %3, %994 : vector<8x128xf32>
    %996 = arith.addf %992, %995 : vector<8x128xf32>
    %c176 = arith.constant 176 : index
    %997 = memref.load %arg6[%c176] : memref<257xf32, #tpu.memory_space<smem>>
    %998 = vector.broadcast %997 : f32 to vector<8x128xf32>
    %999 = arith.mulf %5, %998 : vector<8x128xf32>
    %1000 = arith.addf %996, %999 : vector<8x128xf32>
    %c177 = arith.constant 177 : index
    %1001 = memref.load %arg6[%c177] : memref<257xf32, #tpu.memory_space<smem>>
    %1002 = vector.broadcast %1001 : f32 to vector<8x128xf32>
    %1003 = arith.mulf %60, %1002 : vector<8x128xf32>
    %1004 = arith.addf %1000, %1003 : vector<8x128xf32>
    %c178 = arith.constant 178 : index
    %1005 = memref.load %arg6[%c178] : memref<257xf32, #tpu.memory_space<smem>>
    %1006 = vector.broadcast %1005 : f32 to vector<8x128xf32>
    %1007 = arith.mulf %62, %1006 : vector<8x128xf32>
    %1008 = arith.addf %1004, %1007 : vector<8x128xf32>
    %c179 = arith.constant 179 : index
    %1009 = memref.load %arg6[%c179] : memref<257xf32, #tpu.memory_space<smem>>
    %1010 = vector.broadcast %1009 : f32 to vector<8x128xf32>
    %1011 = arith.mulf %7, %1010 : vector<8x128xf32>
    %1012 = arith.addf %1008, %1011 : vector<8x128xf32>
    %c221 = arith.constant 221 : index
    %1013 = memref.load %arg6[%c221] : memref<257xf32, #tpu.memory_space<smem>>
    %1014 = vector.broadcast %1013 : f32 to vector<8x128xf32>
    %1015 = arith.addf %1012, %1014 : vector<8x128xf32>
    %cst_107 = arith.constant 0.000000e+00 : f32
    %1016 = vector.broadcast %cst_107 : f32 to vector<8x128xf32>
    %1017 = arith.maximumf %1015, %1016 : vector<8x128xf32>
    %c253 = arith.constant 253 : index
    %1018 = memref.load %arg6[%c253] : memref<257xf32, #tpu.memory_space<smem>>
    %1019 = vector.broadcast %1018 : f32 to vector<8x128xf32>
    %1020 = arith.mulf %1017, %1019 : vector<8x128xf32>
    %1021 = arith.addf %989, %1020 : vector<8x128xf32>
    %c180 = arith.constant 180 : index
    %1022 = memref.load %arg6[%c180] : memref<257xf32, #tpu.memory_space<smem>>
    %1023 = vector.broadcast %1022 : f32 to vector<8x128xf32>
    %1024 = arith.mulf %1, %1023 : vector<8x128xf32>
    %c181 = arith.constant 181 : index
    %1025 = memref.load %arg6[%c181] : memref<257xf32, #tpu.memory_space<smem>>
    %1026 = vector.broadcast %1025 : f32 to vector<8x128xf32>
    %1027 = arith.mulf %3, %1026 : vector<8x128xf32>
    %1028 = arith.addf %1024, %1027 : vector<8x128xf32>
    %c182 = arith.constant 182 : index
    %1029 = memref.load %arg6[%c182] : memref<257xf32, #tpu.memory_space<smem>>
    %1030 = vector.broadcast %1029 : f32 to vector<8x128xf32>
    %1031 = arith.mulf %5, %1030 : vector<8x128xf32>
    %1032 = arith.addf %1028, %1031 : vector<8x128xf32>
    %c183 = arith.constant 183 : index
    %1033 = memref.load %arg6[%c183] : memref<257xf32, #tpu.memory_space<smem>>
    %1034 = vector.broadcast %1033 : f32 to vector<8x128xf32>
    %1035 = arith.mulf %60, %1034 : vector<8x128xf32>
    %1036 = arith.addf %1032, %1035 : vector<8x128xf32>
    %c184 = arith.constant 184 : index
    %1037 = memref.load %arg6[%c184] : memref<257xf32, #tpu.memory_space<smem>>
    %1038 = vector.broadcast %1037 : f32 to vector<8x128xf32>
    %1039 = arith.mulf %62, %1038 : vector<8x128xf32>
    %1040 = arith.addf %1036, %1039 : vector<8x128xf32>
    %c185 = arith.constant 185 : index
    %1041 = memref.load %arg6[%c185] : memref<257xf32, #tpu.memory_space<smem>>
    %1042 = vector.broadcast %1041 : f32 to vector<8x128xf32>
    %1043 = arith.mulf %7, %1042 : vector<8x128xf32>
    %1044 = arith.addf %1040, %1043 : vector<8x128xf32>
    %c222 = arith.constant 222 : index
    %1045 = memref.load %arg6[%c222] : memref<257xf32, #tpu.memory_space<smem>>
    %1046 = vector.broadcast %1045 : f32 to vector<8x128xf32>
    %1047 = arith.addf %1044, %1046 : vector<8x128xf32>
    %cst_108 = arith.constant 0.000000e+00 : f32
    %1048 = vector.broadcast %cst_108 : f32 to vector<8x128xf32>
    %1049 = arith.maximumf %1047, %1048 : vector<8x128xf32>
    %c254 = arith.constant 254 : index
    %1050 = memref.load %arg6[%c254] : memref<257xf32, #tpu.memory_space<smem>>
    %1051 = vector.broadcast %1050 : f32 to vector<8x128xf32>
    %1052 = arith.mulf %1049, %1051 : vector<8x128xf32>
    %1053 = arith.addf %1021, %1052 : vector<8x128xf32>
    %c186 = arith.constant 186 : index
    %1054 = memref.load %arg6[%c186] : memref<257xf32, #tpu.memory_space<smem>>
    %1055 = vector.broadcast %1054 : f32 to vector<8x128xf32>
    %1056 = arith.mulf %1, %1055 : vector<8x128xf32>
    %c187 = arith.constant 187 : index
    %1057 = memref.load %arg6[%c187] : memref<257xf32, #tpu.memory_space<smem>>
    %1058 = vector.broadcast %1057 : f32 to vector<8x128xf32>
    %1059 = arith.mulf %3, %1058 : vector<8x128xf32>
    %1060 = arith.addf %1056, %1059 : vector<8x128xf32>
    %c188 = arith.constant 188 : index
    %1061 = memref.load %arg6[%c188] : memref<257xf32, #tpu.memory_space<smem>>
    %1062 = vector.broadcast %1061 : f32 to vector<8x128xf32>
    %1063 = arith.mulf %5, %1062 : vector<8x128xf32>
    %1064 = arith.addf %1060, %1063 : vector<8x128xf32>
    %c189 = arith.constant 189 : index
    %1065 = memref.load %arg6[%c189] : memref<257xf32, #tpu.memory_space<smem>>
    %1066 = vector.broadcast %1065 : f32 to vector<8x128xf32>
    %1067 = arith.mulf %60, %1066 : vector<8x128xf32>
    %1068 = arith.addf %1064, %1067 : vector<8x128xf32>
    %c190 = arith.constant 190 : index
    %1069 = memref.load %arg6[%c190] : memref<257xf32, #tpu.memory_space<smem>>
    %1070 = vector.broadcast %1069 : f32 to vector<8x128xf32>
    %1071 = arith.mulf %62, %1070 : vector<8x128xf32>
    %1072 = arith.addf %1068, %1071 : vector<8x128xf32>
    %c191 = arith.constant 191 : index
    %1073 = memref.load %arg6[%c191] : memref<257xf32, #tpu.memory_space<smem>>
    %1074 = vector.broadcast %1073 : f32 to vector<8x128xf32>
    %1075 = arith.mulf %7, %1074 : vector<8x128xf32>
    %1076 = arith.addf %1072, %1075 : vector<8x128xf32>
    %c223 = arith.constant 223 : index
    %1077 = memref.load %arg6[%c223] : memref<257xf32, #tpu.memory_space<smem>>
    %1078 = vector.broadcast %1077 : f32 to vector<8x128xf32>
    %1079 = arith.addf %1076, %1078 : vector<8x128xf32>
    %cst_109 = arith.constant 0.000000e+00 : f32
    %1080 = vector.broadcast %cst_109 : f32 to vector<8x128xf32>
    %1081 = arith.maximumf %1079, %1080 : vector<8x128xf32>
    %c255 = arith.constant 255 : index
    %1082 = memref.load %arg6[%c255] : memref<257xf32, #tpu.memory_space<smem>>
    %1083 = vector.broadcast %1082 : f32 to vector<8x128xf32>
    %1084 = arith.mulf %1081, %1083 : vector<8x128xf32>
    %1085 = arith.addf %1053, %1084 : vector<8x128xf32>
    %c256 = arith.constant 256 : index
    %1086 = memref.load %arg6[%c256] : memref<257xf32, #tpu.memory_space<smem>>
    %1087 = vector.broadcast %1086 : f32 to vector<8x128xf32>
    %1088 = arith.addf %1085, %1087 : vector<8x128xf32>
    %cst_110 = arith.constant 0.000000e+00 : f32
    %1089 = vector.broadcast %cst_110 : f32 to vector<8x128xf32>
    %1090 = arith.subf %1089, %1088 : vector<8x128xf32>
    %1091 = math.exp %1090 : vector<8x128xf32>
    %cst_111 = arith.constant 1.000000e+00 : f32
    %1092 = vector.broadcast %cst_111 : f32 to vector<8x128xf32>
    %1093 = arith.addf %1092, %1091 : vector<8x128xf32>
    %cst_112 = arith.constant 1.000000e+00 : f32
    %1094 = vector.broadcast %cst_112 : f32 to vector<8x128xf32>
    %1095 = arith.divf %1094, %1093 : vector<8x128xf32>
    %1096 = arith.cmpf oge, %3, %15 : vector<8x128xf32>
    %1097 = arith.extui %1096 : vector<8x128xi1> to vector<8x128xi32>
    %1098 = arith.sitofp %1097 : vector<8x128xi32> to vector<8x128xf32>
    %1099 = arith.mulf %1, %1098 : vector<8x128xf32>
    %1100 = arith.cmpf olt, %3, %15 : vector<8x128xf32>
    %1101 = arith.extui %1100 : vector<8x128xi1> to vector<8x128xi32>
    %1102 = arith.sitofp %1101 : vector<8x128xi32> to vector<8x128xf32>
    %1103 = arith.mulf %1, %1102 : vector<8x128xf32>
    %1104 = arith.subf %3, %19 : vector<8x128xf32>
    %1105 = arith.mulf %17, %1104 : vector<8x128xf32>
    %cst_113 = arith.constant 0.000000e+00 : f32
    %1106 = vector.broadcast %cst_113 : f32 to vector<8x128xf32>
    %1107 = arith.maximumf %1106, %1105 : vector<8x128xf32>
    %1108 = arith.minimumf %7, %1107 : vector<8x128xf32>
    %1109 = arith.mulf %7, %1095 : vector<8x128xf32>
    %1110 = arith.subf %7, %1108 : vector<8x128xf32>
    %1111 = arith.minimumf %1109, %1110 : vector<8x128xf32>
    %1112 = arith.subf %7, %1108 : vector<8x128xf32>
    %1113 = arith.subf %1112, %1111 : vector<8x128xf32>
    %1114 = arith.addf %1113, %1103 : vector<8x128xf32>
    %1115 = arith.subf %5, %1111 : vector<8x128xf32>
    %cst_114 = arith.constant 0.000000e+00 : f32
    %1116 = vector.broadcast %cst_114 : f32 to vector<8x128xf32>
    %1117 = arith.maximumf %1115, %1116 : vector<8x128xf32>
    %cst_115 = arith.constant 0.000000e+00 : f32
    %1118 = vector.broadcast %cst_115 : f32 to vector<8x128xf32>
    %1119 = arith.maximumf %1118, %9 : vector<8x128xf32>
    %1120 = arith.minimumf %1117, %1119 : vector<8x128xf32>
    %1121 = arith.addf %1099, %9 : vector<8x128xf32>
    %1122 = arith.subf %1121, %25 : vector<8x128xf32>
    %cst_116 = arith.constant 0.000000e+00 : f32
    %1123 = vector.broadcast %cst_116 : f32 to vector<8x128xf32>
    %1124 = arith.maximumf %1122, %1123 : vector<8x128xf32>
    %1125 = arith.addf %1099, %9 : vector<8x128xf32>
    %1126 = arith.subf %1125, %1120 : vector<8x128xf32>
    %1127 = arith.subf %1126, %1124 : vector<8x128xf32>
    %cst_117 = arith.constant 0.000000e+00 : f32
    %1128 = vector.broadcast %cst_117 : f32 to vector<8x128xf32>
    %1129 = arith.maximumf %1128, %1127 : vector<8x128xf32>
    %1130 = arith.minimumf %25, %1129 : vector<8x128xf32>
    %1131 = arith.addf %13, %11 : vector<8x128xf32>
    %cst_118 = arith.constant 3.000000e-04 : f32
    %1132 = vector.broadcast %cst_118 : f32 to vector<8x128xf32>
    %1133 = arith.subf %23, %1132 : vector<8x128xf32>
    %1134 = arith.minimumf %1131, %1133 : vector<8x128xf32>
    %cst_119 = arith.constant 0.000000e+00 : f32
    %1135 = vector.broadcast %cst_119 : f32 to vector<8x128xf32>
    %1136 = arith.cmpf olt, %58, %1135 : vector<8x128xf32>
    %cst_120 = arith.constant 0.000000e+00 : f32
    %1137 = vector.broadcast %cst_120 : f32 to vector<8x128xf32>
    %1138 = arith.select %1136, %13, %1137 : vector<8x128xi1>, vector<8x128xf32>
    %1139 = arith.select %1136, %1134, %13 : vector<8x128xi1>, vector<8x128xf32>
    %1140 = arith.subf %1139, %1138 : vector<8x128xf32>
    %1141 = arith.mulf %1140, %29 : vector<8x128xf32>
    %1142 = arith.addf %1138, %1141 : vector<8x128xf32>
    %1143 = arith.subf %1134, %1142 : vector<8x128xf32>
    %cst_121 = arith.constant 3.000000e-04 : f32
    %1144 = vector.broadcast %cst_121 : f32 to vector<8x128xf32>
    %1145 = arith.maximumf %1143, %1144 : vector<8x128xf32>
    %cst_122 = arith.constant 0.000000e+00 : f32
    %1146 = vector.broadcast %cst_122 : f32 to vector<8x128xf32>
    %1147 = arith.subf %1146, %27 : vector<8x128xf32>
    %1148 = arith.subf %23, %1142 : vector<8x128xf32>
    %1149 = arith.subf %1148, %1145 : vector<8x128xf32>
    %1150 = arith.mulf %1147, %1149 : vector<8x128xf32>
    %1151 = math.exp %1150 : vector<8x128xf32>
    %1152 = arith.mulf %21, %1151 : vector<8x128xf32>
    %cst_123 = arith.constant 3.000000e-04 : f32
    %1153 = vector.broadcast %cst_123 : f32 to vector<8x128xf32>
    %1154 = arith.subf %1145, %1153 : vector<8x128xf32>
    %1155 = arith.minimumf %1154, %21 : vector<8x128xf32>
    %cst_124 = arith.constant 0.000000e+00 : f32
    %1156 = vector.broadcast %cst_124 : f32 to vector<8x128xf32>
    %1157 = arith.maximumf %1156, %1152 : vector<8x128xf32>
    %1158 = arith.minimumf %1155, %1157 : vector<8x128xf32>
    %1159 = arith.subf %23, %1142 : vector<8x128xf32>
    %1160 = arith.divf %1145, %1159 : vector<8x128xf32>
    %cst_125 = arith.constant 0.000000e+00 : f32
    %cst_126 = arith.constant 1.000000e+00 : f32
    %1161 = vector.broadcast %cst_125 : f32 to vector<8x128xf32>
    %1162 = arith.maximumf %1161, %1160 : vector<8x128xf32>
    %1163 = vector.broadcast %cst_126 : f32 to vector<8x128xf32>
    %1164 = arith.minimumf %1163, %1162 : vector<8x128xf32>
    %1165 = arith.subf %5, %1120 : vector<8x128xf32>
    %1166 = arith.subf %1165, %1111 : vector<8x128xf32>
    %1167 = arith.mulf %1166, %1164 : vector<8x128xf32>
    %1168 = arith.subf %1145, %1158 : vector<8x128xf32>
    %cst_127 = arith.constant 0.000000e+00 : f32
    %1169 = vector.broadcast %cst_127 : f32 to vector<8x128xf32>
    %1170 = arith.maximumf %1168, %1169 : vector<8x128xf32>
    %cst_128 = arith.constant 0.000000e+00 : f32
    %1171 = vector.broadcast %cst_128 : f32 to vector<8x128xf32>
    %1172 = arith.maximumf %1171, %1167 : vector<8x128xf32>
    %1173 = arith.minimumf %1170, %1172 : vector<8x128xf32>
    %1174 = arith.addf %1145, %1124 : vector<8x128xf32>
    %1175 = arith.addf %1174, %1108 : vector<8x128xf32>
    %1176 = arith.subf %1175, %1173 : vector<8x128xf32>
    %1177 = arith.subf %1176, %1158 : vector<8x128xf32>
    %1178 = arith.subf %23, %1142 : vector<8x128xf32>
    %1179 = arith.subf %1177, %1178 : vector<8x128xf32>
    %cst_129 = arith.constant 0.000000e+00 : f32
    %1180 = vector.broadcast %cst_129 : f32 to vector<8x128xf32>
    %1181 = arith.maximumf %1179, %1180 : vector<8x128xf32>
    %1182 = arith.subf %1177, %1181 : vector<8x128xf32>
    %c0_130 = arith.constant 0 : index
    %c0_131 = arith.constant 0 : index
    %c0_132 = arith.constant 0 : index
    %1183 = vector.load %arg7[%c0_130, %c0_131, %c0_132] : memref<12x8x128xf32, #tpu.memory_space<vmem>>, vector<1x8x128xf32>
    %1184 = vector.shape_cast %1183 : vector<1x8x128xf32> to vector<8x128xf32>
    %1185 = vector.shape_cast %1114 : vector<8x128xf32> to vector<1x8x128xf32>
    tpu.vector_store %arg7[%c0_130, %c0_131, %c0_132], %1185 {strides = array<i32>} : memref<12x8x128xf32, #tpu.memory_space<vmem>>, vector<1x8x128xf32>,
    %c1_133 = arith.constant 1 : index
    %c0_134 = arith.constant 0 : index
    %c0_135 = arith.constant 0 : index
    %1186 = vector.load %arg7[%c1_133, %c0_134, %c0_135] : memref<12x8x128xf32, #tpu.memory_space<vmem>>, vector<1x8x128xf32>
    %1187 = vector.shape_cast %1186 : vector<1x8x128xf32> to vector<8x128xf32>
    %1188 = vector.shape_cast %1130 : vector<8x128xf32> to vector<1x8x128xf32>
    tpu.vector_store %arg7[%c1_133, %c0_134, %c0_135], %1188 {strides = array<i32>} : memref<12x8x128xf32, #tpu.memory_space<vmem>>, vector<1x8x128xf32>,
    %1189 = arith.addf %1182, %1142 : vector<8x128xf32>
    %c2_136 = arith.constant 2 : index
    %c0_137 = arith.constant 0 : index
    %c0_138 = arith.constant 0 : index
    %1190 = vector.load %arg7[%c2_136, %c0_137, %c0_138] : memref<12x8x128xf32, #tpu.memory_space<vmem>>, vector<1x8x128xf32>
    %1191 = vector.shape_cast %1190 : vector<1x8x128xf32> to vector<8x128xf32>
    %1192 = vector.shape_cast %1189 : vector<8x128xf32> to vector<1x8x128xf32>
    tpu.vector_store %arg7[%c2_136, %c0_137, %c0_138], %1192 {strides = array<i32>} : memref<12x8x128xf32, #tpu.memory_space<vmem>>, vector<1x8x128xf32>,
    %c3_139 = arith.constant 3 : index
    %c0_140 = arith.constant 0 : index
    %c0_141 = arith.constant 0 : index
    %1193 = vector.load %arg7[%c3_139, %c0_140, %c0_141] : memref<12x8x128xf32, #tpu.memory_space<vmem>>, vector<1x8x128xf32>
    %1194 = vector.shape_cast %1193 : vector<1x8x128xf32> to vector<8x128xf32>
    %1195 = vector.shape_cast %1158 : vector<8x128xf32> to vector<1x8x128xf32>
    tpu.vector_store %arg7[%c3_139, %c0_140, %c0_141], %1195 {strides = array<i32>} : memref<12x8x128xf32, #tpu.memory_space<vmem>>, vector<1x8x128xf32>,
    %c4_142 = arith.constant 4 : index
    %c0_143 = arith.constant 0 : index
    %c0_144 = arith.constant 0 : index
    %1196 = vector.load %arg7[%c4_142, %c0_143, %c0_144] : memref<12x8x128xf32, #tpu.memory_space<vmem>>, vector<1x8x128xf32>
    %1197 = vector.shape_cast %1196 : vector<1x8x128xf32> to vector<8x128xf32>
    %1198 = vector.shape_cast %1181 : vector<8x128xf32> to vector<1x8x128xf32>
    tpu.vector_store %arg7[%c4_142, %c0_143, %c0_144], %1198 {strides = array<i32>} : memref<12x8x128xf32, #tpu.memory_space<vmem>>, vector<1x8x128xf32>,
    %1199 = arith.addf %1111, %1120 : vector<8x128xf32>
    %1200 = arith.addf %1199, %1173 : vector<8x128xf32>
    %c5_145 = arith.constant 5 : index
    %c0_146 = arith.constant 0 : index
    %c0_147 = arith.constant 0 : index
    %1201 = vector.load %arg7[%c5_145, %c0_146, %c0_147] : memref<12x8x128xf32, #tpu.memory_space<vmem>>, vector<1x8x128xf32>
    %1202 = vector.shape_cast %1201 : vector<1x8x128xf32> to vector<8x128xf32>
    %1203 = vector.shape_cast %1200 : vector<8x128xf32> to vector<1x8x128xf32>
    tpu.vector_store %arg7[%c5_145, %c0_146, %c0_147], %1203 {strides = array<i32>} : memref<12x8x128xf32, #tpu.memory_space<vmem>>, vector<1x8x128xf32>,
    %c6_148 = arith.constant 6 : index
    %c0_149 = arith.constant 0 : index
    %c0_150 = arith.constant 0 : index
    %1204 = vector.load %arg7[%c6_148, %c0_149, %c0_150] : memref<12x8x128xf32, #tpu.memory_space<vmem>>, vector<1x8x128xf32>
    %1205 = vector.shape_cast %1204 : vector<1x8x128xf32> to vector<8x128xf32>
    %1206 = vector.shape_cast %1111 : vector<8x128xf32> to vector<1x8x128xf32>
    tpu.vector_store %arg7[%c6_148, %c0_149, %c0_150], %1206 {strides = array<i32>} : memref<12x8x128xf32, #tpu.memory_space<vmem>>, vector<1x8x128xf32>,
    %c7_151 = arith.constant 7 : index
    %c0_152 = arith.constant 0 : index
    %c0_153 = arith.constant 0 : index
    %1207 = vector.load %arg7[%c7_151, %c0_152, %c0_153] : memref<12x8x128xf32, #tpu.memory_space<vmem>>, vector<1x8x128xf32>
    %1208 = vector.shape_cast %1207 : vector<1x8x128xf32> to vector<8x128xf32>
    %1209 = vector.shape_cast %1120 : vector<8x128xf32> to vector<1x8x128xf32>
    tpu.vector_store %arg7[%c7_151, %c0_152, %c0_153], %1209 {strides = array<i32>} : memref<12x8x128xf32, #tpu.memory_space<vmem>>, vector<1x8x128xf32>,
    %c8_154 = arith.constant 8 : index
    %c0_155 = arith.constant 0 : index
    %c0_156 = arith.constant 0 : index
    %1210 = vector.load %arg7[%c8_154, %c0_155, %c0_156] : memref<12x8x128xf32, #tpu.memory_space<vmem>>, vector<1x8x128xf32>
    %1211 = vector.shape_cast %1210 : vector<1x8x128xf32> to vector<8x128xf32>
    %1212 = vector.shape_cast %1173 : vector<8x128xf32> to vector<1x8x128xf32>
    tpu.vector_store %arg7[%c8_154, %c0_155, %c0_156], %1212 {strides = array<i32>} : memref<12x8x128xf32, #tpu.memory_space<vmem>>, vector<1x8x128xf32>,
    %c9_157 = arith.constant 9 : index
    %c0_158 = arith.constant 0 : index
    %c0_159 = arith.constant 0 : index
    %1213 = vector.load %arg7[%c9_157, %c0_158, %c0_159] : memref<12x8x128xf32, #tpu.memory_space<vmem>>, vector<1x8x128xf32>
    %1214 = vector.shape_cast %1213 : vector<1x8x128xf32> to vector<8x128xf32>
    %1215 = vector.shape_cast %1182 : vector<8x128xf32> to vector<1x8x128xf32>
    tpu.vector_store %arg7[%c9_157, %c0_158, %c0_159], %1215 {strides = array<i32>} : memref<12x8x128xf32, #tpu.memory_space<vmem>>, vector<1x8x128xf32>,
    %c10_160 = arith.constant 10 : index
    %c0_161 = arith.constant 0 : index
    %c0_162 = arith.constant 0 : index
    %1216 = vector.load %arg7[%c10_160, %c0_161, %c0_162] : memref<12x8x128xf32, #tpu.memory_space<vmem>>, vector<1x8x128xf32>
    %1217 = vector.shape_cast %1216 : vector<1x8x128xf32> to vector<8x128xf32>
    %1218 = vector.shape_cast %1142 : vector<8x128xf32> to vector<1x8x128xf32>
    tpu.vector_store %arg7[%c10_160, %c0_161, %c0_162], %1218 {strides = array<i32>} : memref<12x8x128xf32, #tpu.memory_space<vmem>>, vector<1x8x128xf32>,
    %c11_163 = arith.constant 11 : index
    %c0_164 = arith.constant 0 : index
    %c0_165 = arith.constant 0 : index
    %1219 = vector.load %arg7[%c11_163, %c0_164, %c0_165] : memref<12x8x128xf32, #tpu.memory_space<vmem>>, vector<1x8x128xf32>
    %1220 = vector.shape_cast %1219 : vector<1x8x128xf32> to vector<8x128xf32>
    %1221 = vector.shape_cast %29 : vector<8x128xf32> to vector<1x8x128xf32>
    tpu.vector_store %arg7[%c11_163, %c0_164, %c0_165], %1221 {strides = array<i32>} : memref<12x8x128xf32, #tpu.memory_space<vmem>>, vector<1x8x128xf32>,
    return
  }
  func.func @transform_0(%arg0: i32) -> (i32, i32, i32) {
    %c0_i32 = arith.constant 0 : i32
    %c0_i32_0 = arith.constant 0 : i32
    %c0_i32_1 = arith.constant 0 : i32
    return %c0_i32, %arg0, %c0_i32_0 : i32, i32, i32
  }
  func.func @transform_1(%arg0: i32) -> (i32, i32, i32) {
    %c0_i32 = arith.constant 0 : i32
    %c0_i32_0 = arith.constant 0 : i32
    %c0_i32_1 = arith.constant 0 : i32
    return %c0_i32, %arg0, %c0_i32_0 : i32, i32, i32
  }
  func.func @transform_2(%arg0: i32) -> (i32, i32, i32) {
    %c0_i32 = arith.constant 0 : i32
    %c0_i32_0 = arith.constant 0 : i32
    %c0_i32_1 = arith.constant 0 : i32
    return %c0_i32, %arg0, %c0_i32_0 : i32, i32, i32
  }
  func.func @transform_3(%arg0: i32) -> (i32, i32, i32) {
    %c0_i32 = arith.constant 0 : i32
    %c0_i32_0 = arith.constant 0 : i32
    %c0_i32_1 = arith.constant 0 : i32
    return %c0_i32, %arg0, %c0_i32_0 : i32, i32, i32
  }
  func.func @transform_4(%arg0: i32) -> (i32, i32, i32) {
    %c0_i32 = arith.constant 0 : i32
    %c0_i32_0 = arith.constant 0 : i32
    %c0_i32_1 = arith.constant 0 : i32
    return %c0_i32, %arg0, %c0_i32_0 : i32, i32, i32
  }
  func.func @transform_5(%arg0: i32) -> i32 {
    %c0_i32 = arith.constant 0 : i32
    %c0_i32_0 = arith.constant 0 : i32
    return %c0_i32 : i32
  }
  func.func @transform_6(%arg0: i32) -> (i32, i32, i32) {
    %c0_i32 = arith.constant 0 : i32
    %c0_i32_0 = arith.constant 0 : i32
    %c0_i32_1 = arith.constant 0 : i32
    return %c0_i32, %arg0, %c0_i32_0 : i32, i32, i32
  }
  func.func @transform_7(%arg0: i32) -> (i32, i32, i32) {
    %c0_i32 = arith.constant 0 : i32
    %c0_i32_0 = arith.constant 0 : i32
    %c0_i32_1 = arith.constant 0 : i32
    return %c0_i32, %arg0, %c0_i32_0 : i32, i32, i32
  }
}

</mosaic_0001>

<llo_original>
// kernel: exphydro_forward.1
$region0: #{exphydro_forward.1}
  #allocation0 [shape = 'u32[]', space=smem, size = 0x4, offset = 0x4, fixed_abs, tag = 'smem constant byte address 0x4 - core index']
  #allocation1 [shape = 'u32[72,128]{1,0:T(1,128)}', space=vmem, size = 0x9000, scoped, tag = 'internal scratch']
  %s0 = inlined_call_operand.vmem [shape: f32[5,8,128], index: 0, kind: input, shape index: {}]
  %s1 = inlined_call_operand.vmem [shape: f32[4,8,128], index: 1, kind: input, shape index: {}]
  %s2 = inlined_call_operand.vmem [shape: f32[6,8,128], index: 2, kind: input, shape index: {}]
  %s3 = inlined_call_operand.vmem [shape: f32[2,8,128], index: 3, kind: input, shape index: {}]
  %s4 = inlined_call_operand.vmem [shape: f32[5,8,128], index: 4, kind: input, shape index: {}]
  %s5 = inlined_call_operand.vmem [shape: f32[257], index: 5, kind: input, shape index: {}]
  %s6 = inlined_call_operand.vmem [shape: f32[12,8,128], index: 6, kind: output, shape index: {0}]
  %s7 = inlined_call_operand.vmem [shape: f32[5,8,128], index: 7, kind: output, shape index: {1}]
  %8 = xla_tuple %s6, %s7
  %s9 = sld [smem:[#allocation0]]
  $region46: #{exphydro_forward.1} parent=0
    _
  %s11 = ssub.s32 1, %s9
  %s12 = scalar_select 0, %s11, %s9
  $region1: #{exphydro_forward.1} parent=0
    #allocation2 [shape = 'u8[1536]{0}', space=smem, size = 0x600, scoped, tag = 'input window, operand 5, single buffered']
    #allocation3 [shape = 's32[1]{0}', space=sflag, size = 0x4, scoped, tag = 'scoped memory for exphydro_forward.1']
    %13 = vsyncpa [#allocation3], 0
    // Predicated region
    $region2: #{exphydro_forward.1} parent=1 // pred_check
      _
    $region3: #{exphydro_forward.1} parent=1 // pred_check_branch
      %15 = sbr.rel (0) target = $region5
    $region4: #{exphydro_forward.1} parent=1 // pred_region
      _
    $region5: #{exphydro_forward.1} parent=1 // pred_fallthru
      _
    // Predicated region
    $region6: #{exphydro_forward.1} parent=1 // pred_check
      _
    $region7: #{exphydro_forward.1} parent=1 // pred_check_branch
      %17 = sbr.rel (0) target = $region9
    $region8: #{exphydro_forward.1} parent=1 // pred_region
      _
    $region9: #{exphydro_forward.1} parent=1 // pred_fallthru
      _
    // Predicated region
    $region10: #{exphydro_forward.1} parent=1 // pred_check
      _
    $region11: #{exphydro_forward.1} parent=1 // pred_check_branch
      %19 = sbr.rel (0) target = $region13
    $region12: #{exphydro_forward.1} parent=1 // pred_region
      _
    $region13: #{exphydro_forward.1} parent=1 // pred_fallthru
      _
    // Predicated region
    $region14: #{exphydro_forward.1} parent=1 // pred_check
      _
    $region15: #{exphydro_forward.1} parent=1 // pred_check_branch
      %21 = sbr.rel (0) target = $region17
    $region16: #{exphydro_forward.1} parent=1 // pred_region
      _
    $region17: #{exphydro_forward.1} parent=1 // pred_fallthru
      _
    // Predicated region
    $region18: #{exphydro_forward.1} parent=1 // pred_check
      _
    $region19: #{exphydro_forward.1} parent=1 // pred_check_branch
      %23 = sbr.rel (0) target = $region21
    $region20: #{exphydro_forward.1} parent=1 // pred_region
      _
    $region21: #{exphydro_forward.1} parent=1 // pred_fallthru
      _
    // Predicated region
    $region22: #{exphydro_forward.1} parent=1 // pred_check
      _
    $region23: #{exphydro_forward.1} parent=1 // pred_check_branch
      %25 = sbr.rel (0) target = $region25
    $region24: #{exphydro_forward.1} parent=1 // pred_region
      %27 = vsyncadd [#allocation3], 0
      %s29 = sshll.u32 %s5, 4
      %s30 = int_to_ptr.vmem [resolvable:$true] %s29
      %32 = dma.vmem_to_smem %s30, 48, [#allocation2], [#allocation3]
    $region25: #{exphydro_forward.1} parent=1 // pred_fallthru
      _
    // Predicated region
    $region26: #{exphydro_forward.1} parent=1 // pred_check
      _
    $region27: #{exphydro_forward.1} parent=1 // pred_check_branch
      %34 = sbr.rel (0) target = $region29
    $region28: #{exphydro_forward.1} parent=1 // pred_region
      %36 = dma.done [#allocation3], 48
    $region29: #{exphydro_forward.1} parent=1 // pred_fallthru
      _
    %37 = sfence
    %v38 = vld [vmem:[%s0] sm:$0xff]
    %s39 = scalar_lea.vmem %s0, 8
    %v40 = vld [vmem:[%s39] sm:$0xff]
    %s41 = scalar_lea.vmem %s0, 16
    %v42 = vld [vmem:[%s41] sm:$0xff]
    %v43 = vld [vmem:[%s1] sm:$0xff]
    %s44 = scalar_lea.vmem %s1, 8
    %v45 = vld [vmem:[%s44] sm:$0xff]
    %s46 = scalar_lea.vmem %s1, 16
    %v47 = vld [vmem:[%s46] sm:$0xff]
    %s48 = scalar_lea.vmem %s1, 24
    %v49 = vld [vmem:[%s48] sm:$0xff]
    %v50 = vld [vmem:[%s2] sm:$0xff]
    %s51 = scalar_lea.vmem %s2, 8
    %v52 = vld [vmem:[%s51] sm:$0xff]
    %s53 = scalar_lea.vmem %s2, 16
    %v54 = vld [vmem:[%s53] sm:$0xff]
    %s55 = scalar_lea.vmem %s2, 24
    %v56 = vld [vmem:[%s55] sm:$0xff]
    %s57 = scalar_lea.vmem %s2, 32
    %v58 = vld [vmem:[%s57] sm:$0xff]
    %s59 = scalar_lea.vmem %s2, 40
    %v60 = vld [vmem:[%s59] sm:$0xff]
    %v61 = vld [vmem:[%s3] sm:$0xff]
    %s62 = scalar_lea.vmem %s3, 8
    %v63 = vld [vmem:[%s62] sm:$0xff]
    %s64 = scalar_lea.vmem %s4, 8
    %v65 = vld [vmem:[%s64] sm:$0xff]
    %66 = vst [vmem:[%s7] sm:$0xff] %v65
    %v67 = vadd.f32 %v40, %v65
    %s68 = scalar_lea.vmem %s4, 16
    %v69 = vld [vmem:[%s68] sm:$0xff]
    %s70 = scalar_lea.vmem %s7, 8
    %71 = vst [vmem:[%s70] sm:$0xff] %v69
    %v72 = vadd.f32 %v67, %v69
    %s73 = scalar_lea.vmem %s4, 24
    %v74 = vld [vmem:[%s73] sm:$0xff]
    %s75 = scalar_lea.vmem %s7, 16
    %76 = vst [vmem:[%s75] sm:$0xff] %v74
    %v77 = vadd.f32 %v72, %v74
    %s78 = scalar_lea.vmem %s4, 32
    %v79 = vld [vmem:[%s78] sm:$0xff]
    %s80 = scalar_lea.vmem %s7, 24
    %81 = vst [vmem:[%s80] sm:$0xff] %v79
    %v82 = vadd.f32 %v77, %v79
    %s83 = scalar_lea.vmem %s7, 32
    %84 = vst [vmem:[%s83] sm:$0xff] %v40
    %v85 = vmul.f32 %v82, 0.2
    %s86 = scalar_lea.vmem %s0, 24
    %v87 = vld [vmem:[%s86] sm:$0xff]
    %s88 = scalar_lea.vmem %s0, 32
    %v89 = vld [vmem:[%s88] sm:$0xff]
    %s90 = sld [smem:[#allocation2]]
    %v91 = vstv %s90
    %v92 = vmul.f32 %v38, %v91
    %s93 = sld [smem:[#allocation2 + $0x1]]
    %v94 = vstv %s93
    %v95 = vmul.f32 %v40, %v94
    %v96 = vadd.f32 %v92, %v95
    %s97 = sld [smem:[#allocation2 + $0x2]]
    %v98 = vstv %s97
    %v99 = vmul.f32 %v42, %v98
    %v100 = vadd.f32 %v96, %v99
    %s101 = sld [smem:[#allocation2 + $0x3]]
    %v102 = vstv %s101
    %v103 = vmul.f32 %v87, %v102
    %v104 = vadd.f32 %v100, %v103
    %s105 = sld [smem:[#allocation2 + $0x4]]
    %v106 = vstv %s105
    %v107 = vmul.f32 %v89, %v106
    %v108 = vadd.f32 %v104, %v107
    %s109 = sld [smem:[#allocation2 + $0x5]]
    %v110 = vstv %s109
    %v111 = vmul.f32 %v43, %v110
    %v112 = vadd.f32 %v108, %v111
    %s113 = sld [smem:[#allocation2 + $0xc0]]
    %v114 = vstv %s113
    %v115 = vadd.f32 %v112, %v114
    %v116 = vmax.f32 %v115, 0.0
    %s117 = sld [smem:[#allocation2 + $0xe0]]
    %v118 = vstv %s117
    %v119 = vmul.f32 %v116, %v118
    %s120 = sld [smem:[#allocation2 + $0x6]]
    %v121 = vstv %s120
    %v122 = vmul.f32 %v38, %v121
    %s123 = sld [smem:[#allocation2 + $0x7]]
    %v124 = vstv %s123
    %v125 = vmul.f32 %v40, %v124
    %v126 = vadd.f32 %v122, %v125
    %s127 = sld [smem:[#allocation2 + $0x8]]
    %v128 = vstv %s127
    %v129 = vmul.f32 %v42, %v128
    %v130 = vadd.f32 %v126, %v129
    %s131 = sld [smem:[#allocation2 + $0x9]]
    %v132 = vstv %s131
    %v133 = vmul.f32 %v87, %v132
    %v134 = vadd.f32 %v130, %v133
    %s135 = sld [smem:[#allocation2 + $0xa]]
    %v136 = vstv %s135
    %v137 = vmul.f32 %v89, %v136
    %v138 = vadd.f32 %v134, %v137
    %s139 = sld [smem:[#allocation2 + $0xb]]
    %v140 = vstv %s139
    %v141 = vmul.f32 %v43, %v140
    %v142 = vadd.f32 %v138, %v141
    %s143 = sld [smem:[#allocation2 + $0xc1]]
    %v144 = vstv %s143
    %v145 = vadd.f32 %v142, %v144
    %v146 = vmax.f32 %v145, 0.0
    %s147 = sld [smem:[#allocation2 + $0xe1]]
    %v148 = vstv %s147
    %v149 = vmul.f32 %v146, %v148
    %v150 = vadd.f32 %v119, %v149
    %s151 = sld [smem:[#allocation2 + $0xc]]
    %v152 = vstv %s151
    %v153 = vmul.f32 %v38, %v152
    %s154 = sld [smem:[#allocation2 + $0xd]]
    %v155 = vstv %s154
    %v156 = vmul.f32 %v40, %v155
    %v157 = vadd.f32 %v153, %v156
    %s158 = sld [smem:[#allocation2 + $0xe]]
    %v159 = vstv %s158
    %v160 = vmul.f32 %v42, %v159
    %v161 = vadd.f32 %v157, %v160
    %s162 = sld [smem:[#allocation2 + $0xf]]
    %v163 = vstv %s162
    %v164 = vmul.f32 %v87, %v163
    %v165 = vadd.f32 %v161, %v164
    %s166 = sld [smem:[#allocation2 + $0x10]]
    %v167 = vstv %s166
    %v168 = vmul.f32 %v89, %v167
    %v169 = vadd.f32 %v165, %v168
    %s170 = sld [smem:[#allocation2 + $0x11]]
    %v171 = vstv %s170
    %v172 = vmul.f32 %v43, %v171
    %v173 = vadd.f32 %v169, %v172
    %s174 = sld [smem:[#allocation2 + $0xc2]]
    %v175 = vstv %s174
    %v176 = vadd.f32 %v173, %v175
    %v177 = vmax.f32 %v176, 0.0
    %s178 = sld [smem:[#allocation2 + $0xe2]]
    %v179 = vstv %s178
    %v180 = vmul.f32 %v177, %v179
    %v181 = vadd.f32 %v150, %v180
    %s182 = sld [smem:[#allocation2 + $0x12]]
    %v183 = vstv %s182
    %v184 = vmul.f32 %v38, %v183
    %s185 = sld [smem:[#allocation2 + $0x13]]
    %v186 = vstv %s185
    %v187 = vmul.f32 %v40, %v186
    %v188 = vadd.f32 %v184, %v187
    %s189 = sld [smem:[#allocation2 + $0x14]]
    %v190 = vstv %s189
    %v191 = vmul.f32 %v42, %v190
    %v192 = vadd.f32 %v188, %v191
    %s193 = sld [smem:[#allocation2 + $0x15]]
    %v194 = vstv %s193
    %v195 = vmul.f32 %v87, %v194
    %v196 = vadd.f32 %v192, %v195
    %s197 = sld [smem:[#allocation2 + $0x16]]
    %v198 = vstv %s197
    %v199 = vmul.f32 %v89, %v198
    %v200 = vadd.f32 %v196, %v199
    %s201 = sld [smem:[#allocation2 + $0x17]]
    %v202 = vstv %s201
    %v203 = vmul.f32 %v43, %v202
    %v204 = vadd.f32 %v200, %v203
    %s205 = sld [smem:[#allocation2 + $0xc3]]
    %v206 = vstv %s205
    %v207 = vadd.f32 %v204, %v206
    %v208 = vmax.f32 %v207, 0.0
    %s209 = sld [smem:[#allocation2 + $0xe3]]
    %v210 = vstv %s209
    %v211 = vmul.f32 %v208, %v210
    %v212 = vadd.f32 %v181, %v211
    %s213 = sld [smem:[#allocation2 + $0x18]]
    %v214 = vstv %s213
    %v215 = vmul.f32 %v38, %v214
    %s216 = sld [smem:[#allocation2 + $0x19]]
    %v217 = vstv %s216
    %v218 = vmul.f32 %v40, %v217
    %v219 = vadd.f32 %v215, %v218
    %s220 = sld [smem:[#allocation2 + $0x1a]]
    %v221 = vstv %s220
    %v222 = vmul.f32 %v42, %v221
    %v223 = vadd.f32 %v219, %v222
    %s224 = sld [smem:[#allocation2 + $0x1b]]
    %v225 = vstv %s224
    %v226 = vmul.f32 %v87, %v225
    %v227 = vadd.f32 %v223, %v226
    %s228 = sld [smem:[#allocation2 + $0x1c]]
    %v229 = vstv %s228
    %v230 = vmul.f32 %v89, %v229
    %v231 = vadd.f32 %v227, %v230
    %s232 = sld [smem:[#allocation2 + $0x1d]]
    %v233 = vstv %s232
    %v234 = vmul.f32 %v43, %v233
    %v235 = vadd.f32 %v231, %v234
    %s236 = sld [smem:[#allocation2 + $0xc4]]
    %v237 = vstv %s236
    %v238 = vadd.f32 %v235, %v237
    %v239 = vmax.f32 %v238, 0.0
    %s240 = sld [smem:[#allocation2 + $0xe4]]
    %v241 = vstv %s240
    %v242 = vmul.f32 %v239, %v241
    %v243 = vadd.f32 %v212, %v242
    %s244 = sld [smem:[#allocation2 + $0x1e]]
    %v245 = vstv %s244
    %v246 = vmul.f32 %v38, %v245
    %s247 = sld [smem:[#allocation2 + $0x1f]]
    %v248 = vstv %s247
    %v249 = vmul.f32 %v40, %v248
    %v250 = vadd.f32 %v246, %v249
    %s251 = sld [smem:[#allocation2 + $0x20]]
    %v252 = vstv %s251
    %v253 = vmul.f32 %v42, %v252
    %v254 = vadd.f32 %v250, %v253
    %s255 = sld [smem:[#allocation2 + $0x21]]
    %v256 = vstv %s255
    %v257 = vmul.f32 %v87, %v256
    %v258 = vadd.f32 %v254, %v257
    %s259 = sld [smem:[#allocation2 + $0x22]]
    %v260 = vstv %s259
    %v261 = vmul.f32 %v89, %v260
    %v262 = vadd.f32 %v258, %v261
    %s263 = sld [smem:[#allocation2 + $0x23]]
    %v264 = vstv %s263
    %v265 = vmul.f32 %v43, %v264
    %v266 = vadd.f32 %v262, %v265
    %s267 = sld [smem:[#allocation2 + $0xc5]]
    %v268 = vstv %s267
    %v269 = vadd.f32 %v266, %v268
    %v270 = vmax.f32 %v269, 0.0
    %s271 = sld [smem:[#allocation2 + $0xe5]]
    %v272 = vstv %s271
    %v273 = vmul.f32 %v270, %v272
    %v274 = vadd.f32 %v243, %v273
    %s275 = sld [smem:[#allocation2 + $0x24]]
    %v276 = vstv %s275
    %v277 = vmul.f32 %v38, %v276
    %s278 = sld [smem:[#allocation2 + $0x25]]
    %v279 = vstv %s278
    %v280 = vmul.f32 %v40, %v279
    %v281 = vadd.f32 %v277, %v280
    %s282 = sld [smem:[#allocation2 + $0x26]]
    %v283 = vstv %s282
    %v284 = vmul.f32 %v42, %v283
    %v285 = vadd.f32 %v281, %v284
    %s286 = sld [smem:[#allocation2 + $0x27]]
    %v287 = vstv %s286
    %v288 = vmul.f32 %v87, %v287
    %v289 = vadd.f32 %v285, %v288
    %s290 = sld [smem:[#allocation2 + $0x28]]
    %v291 = vstv %s290
    %v292 = vmul.f32 %v89, %v291
    %v293 = vadd.f32 %v289, %v292
    %s294 = sld [smem:[#allocation2 + $0x29]]
    %v295 = vstv %s294
    %v296 = vmul.f32 %v43, %v295
    %v297 = vadd.f32 %v293, %v296
    %s298 = sld [smem:[#allocation2 + $0xc6]]
    %v299 = vstv %s298
    %v300 = vadd.f32 %v297, %v299
    %v301 = vmax.f32 %v300, 0.0
    %s302 = sld [smem:[#allocation2 + $0xe6]]
    %v303 = vstv %s302
    %v304 = vmul.f32 %v301, %v303
    %v305 = vadd.f32 %v274, %v304
    %s306 = sld [smem:[#allocation2 + $0x2a]]
    %v307 = vstv %s306
    %v308 = vmul.f32 %v38, %v307
    %s309 = sld [smem:[#allocation2 + $0x2b]]
    %v310 = vstv %s309
    %v311 = vmul.f32 %v40, %v310
    %v312 = vadd.f32 %v308, %v311
    %s313 = sld [smem:[#allocation2 + $0x2c]]
    %v314 = vstv %s313
    %v315 = vmul.f32 %v42, %v314
    %v316 = vadd.f32 %v312, %v315
    %s317 = sld [smem:[#allocation2 + $0x2d]]
    %v318 = vstv %s317
    %v319 = vmul.f32 %v87, %v318
    %v320 = vadd.f32 %v316, %v319
    %s321 = sld [smem:[#allocation2 + $0x2e]]
    %v322 = vstv %s321
    %v323 = vmul.f32 %v89, %v322
    %v324 = vadd.f32 %v320, %v323
    %s325 = sld [smem:[#allocation2 + $0x2f]]
    %v326 = vstv %s325
    %v327 = vmul.f32 %v43, %v326
    %v328 = vadd.f32 %v324, %v327
    %s329 = sld [smem:[#allocation2 + $0xc7]]
    %v330 = vstv %s329
    %v331 = vadd.f32 %v328, %v330
    %v332 = vmax.f32 %v331, 0.0
    %s333 = sld [smem:[#allocation2 + $0xe7]]
    %v334 = vstv %s333
    %v335 = vmul.f32 %v332, %v334
    %v336 = vadd.f32 %v305, %v335
    %s337 = sld [smem:[#allocation2 + $0x30]]
    %v338 = vstv %s337
    %v339 = vmul.f32 %v38, %v338
    %s340 = sld [smem:[#allocation2 + $0x31]]
    %v341 = vstv %s340
    %v342 = vmul.f32 %v40, %v341
    %v343 = vadd.f32 %v339, %v342
    %s344 = sld [smem:[#allocation2 + $0x32]]
    %v345 = vstv %s344
    %v346 = vmul.f32 %v42, %v345
    %v347 = vadd.f32 %v343, %v346
    %s348 = sld [smem:[#allocation2 + $0x33]]
    %v349 = vstv %s348
    %v350 = vmul.f32 %v87, %v349
    %v351 = vadd.f32 %v347, %v350
    %s352 = sld [smem:[#allocation2 + $0x34]]
    %v353 = vstv %s352
    %v354 = vmul.f32 %v89, %v353
    %v355 = vadd.f32 %v351, %v354
    %s356 = sld [smem:[#allocation2 + $0x35]]
    %v357 = vstv %s356
    %v358 = vmul.f32 %v43, %v357
    %v359 = vadd.f32 %v355, %v358
    %s360 = sld [smem:[#allocation2 + $0xc8]]
    %v361 = vstv %s360
    %v362 = vadd.f32 %v359, %v361
    %v363 = vmax.f32 %v362, 0.0
    %s364 = sld [smem:[#allocation2 + $0xe8]]
    %v365 = vstv %s364
    %v366 = vmul.f32 %v363, %v365
    %v367 = vadd.f32 %v336, %v366
    %s368 = sld [smem:[#allocation2 + $0x36]]
    %v369 = vstv %s368
    %v370 = vmul.f32 %v38, %v369
    %s371 = sld [smem:[#allocation2 + $0x37]]
    %v372 = vstv %s371
    %v373 = vmul.f32 %v40, %v372
    %v374 = vadd.f32 %v370, %v373
    %s375 = sld [smem:[#allocation2 + $0x38]]
    %v376 = vstv %s375
    %v377 = vmul.f32 %v42, %v376
    %v378 = vadd.f32 %v374, %v377
    %s379 = sld [smem:[#allocation2 + $0x39]]
    %v380 = vstv %s379
    %v381 = vmul.f32 %v87, %v380
    %v382 = vadd.f32 %v378, %v381
    %s383 = sld [smem:[#allocation2 + $0x3a]]
    %v384 = vstv %s383
    %v385 = vmul.f32 %v89, %v384
    %v386 = vadd.f32 %v382, %v385
    %s387 = sld [smem:[#allocation2 + $0x3b]]
    %v388 = vstv %s387
    %v389 = vmul.f32 %v43, %v388
    %v390 = vadd.f32 %v386, %v389
    %s391 = sld [smem:[#allocation2 + $0xc9]]
    %v392 = vstv %s391
    %v393 = vadd.f32 %v390, %v392
    %v394 = vmax.f32 %v393, 0.0
    %s395 = sld [smem:[#allocation2 + $0xe9]]
    %v396 = vstv %s395
    %v397 = vmul.f32 %v394, %v396
    %v398 = vadd.f32 %v367, %v397
    %s399 = sld [smem:[#allocation2 + $0x3c]]
    %v400 = vstv %s399
    %v401 = vmul.f32 %v38, %v400
    %s402 = sld [smem:[#allocation2 + $0x3d]]
    %v403 = vstv %s402
    %v404 = vmul.f32 %v40, %v403
    %v405 = vadd.f32 %v401, %v404
    %s406 = sld [smem:[#allocation2 + $0x3e]]
    %v407 = vstv %s406
    %v408 = vmul.f32 %v42, %v407
    %v409 = vadd.f32 %v405, %v408
    %s410 = sld [smem:[#allocation2 + $0x3f]]
    %v411 = vstv %s410
    %v412 = vmul.f32 %v87, %v411
    %v413 = vadd.f32 %v409, %v412
    %s414 = sld [smem:[#allocation2 + $0x40]]
    %v415 = vstv %s414
    %v416 = vmul.f32 %v89, %v415
    %v417 = vadd.f32 %v413, %v416
    %s418 = sld [smem:[#allocation2 + $0x41]]
    %v419 = vstv %s418
    %v420 = vmul.f32 %v43, %v419
    %v421 = vadd.f32 %v417, %v420
    %s422 = sld [smem:[#allocation2 + $0xca]]
    %v423 = vstv %s422
    %v424 = vadd.f32 %v421, %v423
    %v425 = vmax.f32 %v424, 0.0
    %s426 = sld [smem:[#allocation2 + $0xea]]
    %v427 = vstv %s426
    %v428 = vmul.f32 %v425, %v427
    %v429 = vadd.f32 %v398, %v428
    %s430 = sld [smem:[#allocation2 + $0x42]]
    %v431 = vstv %s430
    %v432 = vmul.f32 %v38, %v431
    %s433 = sld [smem:[#allocation2 + $0x43]]
    %v434 = vstv %s433
    %v435 = vmul.f32 %v40, %v434
    %v436 = vadd.f32 %v432, %v435
    %s437 = sld [smem:[#allocation2 + $0x44]]
    %v438 = vstv %s437
    %v439 = vmul.f32 %v42, %v438
    %v440 = vadd.f32 %v436, %v439
    %s441 = sld [smem:[#allocation2 + $0x45]]
    %v442 = vstv %s441
    %v443 = vmul.f32 %v87, %v442
    %v444 = vadd.f32 %v440, %v443
    %s445 = sld [smem:[#allocation2 + $0x46]]
    %v446 = vstv %s445
    %v447 = vmul.f32 %v89, %v446
    %v448 = vadd.f32 %v444, %v447
    %s449 = sld [smem:[#allocation2 + $0x47]]
    %v450 = vstv %s449
    %v451 = vmul.f32 %v43, %v450
    %v452 = vadd.f32 %v448, %v451
    %s453 = sld [smem:[#allocation2 + $0xcb]]
    %v454 = vstv %s453
    %v455 = vadd.f32 %v452, %v454
    %v456 = vmax.f32 %v455, 0.0
    %s457 = sld [smem:[#allocation2 + $0xeb]]
    %v458 = vstv %s457
    %v459 = vmul.f32 %v456, %v458
    %v460 = vadd.f32 %v429, %v459
    %s461 = sld [smem:[#allocation2 + $0x48]]
    %v462 = vstv %s461
    %v463 = vmul.f32 %v38, %v462
    %s464 = sld [smem:[#allocation2 + $0x49]]
    %v465 = vstv %s464
    %v466 = vmul.f32 %v40, %v465
    %v467 = vadd.f32 %v463, %v466
    %s468 = sld [smem:[#allocation2 + $0x4a]]
    %v469 = vstv %s468
    %v470 = vmul.f32 %v42, %v469
    %v471 = vadd.f32 %v467, %v470
    %s472 = sld [smem:[#allocation2 + $0x4b]]
    %v473 = vstv %s472
    %v474 = vmul.f32 %v87, %v473
    %v475 = vadd.f32 %v471, %v474
    %s476 = sld [smem:[#allocation2 + $0x4c]]
    %v477 = vstv %s476
    %v478 = vmul.f32 %v89, %v477
    %v479 = vadd.f32 %v475, %v478
    %s480 = sld [smem:[#allocation2 + $0x4d]]
    %v481 = vstv %s480
    %v482 = vmul.f32 %v43, %v481
    %v483 = vadd.f32 %v479, %v482
    %s484 = sld [smem:[#allocation2 + $0xcc]]
    %v485 = vstv %s484
    %v486 = vadd.f32 %v483, %v485
    %v487 = vmax.f32 %v486, 0.0
    %s488 = sld [smem:[#allocation2 + $0xec]]
    %v489 = vstv %s488
    %v490 = vmul.f32 %v487, %v489
    %v491 = vadd.f32 %v460, %v490
    %s492 = sld [smem:[#allocation2 + $0x4e]]
    %v493 = vstv %s492
    %v494 = vmul.f32 %v38, %v493
    %s495 = sld [smem:[#allocation2 + $0x4f]]
    %v496 = vstv %s495
    %v497 = vmul.f32 %v40, %v496
    %v498 = vadd.f32 %v494, %v497
    %s499 = sld [smem:[#allocation2 + $0x50]]
    %v500 = vstv %s499
    %v501 = vmul.f32 %v42, %v500
    %v502 = vadd.f32 %v498, %v501
    %s503 = sld [smem:[#allocation2 + $0x51]]
    %v504 = vstv %s503
    %v505 = vmul.f32 %v87, %v504
    %v506 = vadd.f32 %v502, %v505
    %s507 = sld [smem:[#allocation2 + $0x52]]
    %v508 = vstv %s507
    %v509 = vmul.f32 %v89, %v508
    %v510 = vadd.f32 %v506, %v509
    %s511 = sld [smem:[#allocation2 + $0x53]]
    %v512 = vstv %s511
    %v513 = vmul.f32 %v43, %v512
    %v514 = vadd.f32 %v510, %v513
    %s515 = sld [smem:[#allocation2 + $0xcd]]
    %v516 = vstv %s515
    %v517 = vadd.f32 %v514, %v516
    %v518 = vmax.f32 %v517, 0.0
    %s519 = sld [smem:[#allocation2 + $0xed]]
    %v520 = vstv %s519
    %v521 = vmul.f32 %v518, %v520
    %v522 = vadd.f32 %v491, %v521
    %s523 = sld [smem:[#allocation2 + $0x54]]
    %v524 = vstv %s523
    %v525 = vmul.f32 %v38, %v524
    %s526 = sld [smem:[#allocation2 + $0x55]]
    %v527 = vstv %s526
    %v528 = vmul.f32 %v40, %v527
    %v529 = vadd.f32 %v525, %v528
    %s530 = sld [smem:[#allocation2 + $0x56]]
    %v531 = vstv %s530
    %v532 = vmul.f32 %v42, %v531
    %v533 = vadd.f32 %v529, %v532
    %s534 = sld [smem:[#allocation2 + $0x57]]
    %v535 = vstv %s534
    %v536 = vmul.f32 %v87, %v535
    %v537 = vadd.f32 %v533, %v536
    %s538 = sld [smem:[#allocation2 + $0x58]]
    %v539 = vstv %s538
    %v540 = vmul.f32 %v89, %v539
    %v541 = vadd.f32 %v537, %v540
    %s542 = sld [smem:[#allocation2 + $0x59]]
    %v543 = vstv %s542
    %v544 = vmul.f32 %v43, %v543
    %v545 = vadd.f32 %v541, %v544
    %s546 = sld [smem:[#allocation2 + $0xce]]
    %v547 = vstv %s546
    %v548 = vadd.f32 %v545, %v547
    %v549 = vmax.f32 %v548, 0.0
    %s550 = sld [smem:[#allocation2 + $0xee]]
    %v551 = vstv %s550
    %v552 = vmul.f32 %v549, %v551
    %v553 = vadd.f32 %v522, %v552
    %s554 = sld [smem:[#allocation2 + $0x5a]]
    %v555 = vstv %s554
    %v556 = vmul.f32 %v38, %v555
    %s557 = sld [smem:[#allocation2 + $0x5b]]
    %v558 = vstv %s557
    %v559 = vmul.f32 %v40, %v558
    %v560 = vadd.f32 %v556, %v559
    %s561 = sld [smem:[#allocation2 + $0x5c]]
    %v562 = vstv %s561
    %v563 = vmul.f32 %v42, %v562
    %v564 = vadd.f32 %v560, %v563
    %s565 = sld [smem:[#allocation2 + $0x5d]]
    %v566 = vstv %s565
    %v567 = vmul.f32 %v87, %v566
    %v568 = vadd.f32 %v564, %v567
    %s569 = sld [smem:[#allocation2 + $0x5e]]
    %v570 = vstv %s569
    %v571 = vmul.f32 %v89, %v570
    %v572 = vadd.f32 %v568, %v571
    %s573 = sld [smem:[#allocation2 + $0x5f]]
    %v574 = vstv %s573
    %v575 = vmul.f32 %v43, %v574
    %v576 = vadd.f32 %v572, %v575
    %s577 = sld [smem:[#allocation2 + $0xcf]]
    %v578 = vstv %s577
    %v579 = vadd.f32 %v576, %v578
    %v580 = vmax.f32 %v579, 0.0
    %s581 = sld [smem:[#allocation2 + $0xef]]
    %v582 = vstv %s581
    %v583 = vmul.f32 %v580, %v582
    %v584 = vadd.f32 %v553, %v583
    %s585 = sld [smem:[#allocation2 + $0x60]]
    %v586 = vstv %s585
    %v587 = vmul.f32 %v38, %v586
    %s588 = sld [smem:[#allocation2 + $0x61]]
    %v589 = vstv %s588
    %v590 = vmul.f32 %v40, %v589
    %v591 = vadd.f32 %v587, %v590
    %s592 = sld [smem:[#allocation2 + $0x62]]
    %v593 = vstv %s592
    %v594 = vmul.f32 %v42, %v593
    %v595 = vadd.f32 %v591, %v594
    %s596 = sld [smem:[#allocation2 + $0x63]]
    %v597 = vstv %s596
    %v598 = vmul.f32 %v87, %v597
    %v599 = vadd.f32 %v595, %v598
    %s600 = sld [smem:[#allocation2 + $0x64]]
    %v601 = vstv %s600
    %v602 = vmul.f32 %v89, %v601
    %v603 = vadd.f32 %v599, %v602
    %s604 = sld [smem:[#allocation2 + $0x65]]
    %v605 = vstv %s604
    %v606 = vmul.f32 %v43, %v605
    %v607 = vadd.f32 %v603, %v606
    %s608 = sld [smem:[#allocation2 + $0xd0]]
    %v609 = vstv %s608
    %v610 = vadd.f32 %v607, %v609
    %v611 = vmax.f32 %v610, 0.0
    %s612 = sld [smem:[#allocation2 + $0xf0]]
    %v613 = vstv %s612
    %v614 = vmul.f32 %v611, %v613
    %v615 = vadd.f32 %v584, %v614
    %s616 = sld [smem:[#allocation2 + $0x66]]
    %v617 = vstv %s616
    %v618 = vmul.f32 %v38, %v617
    %s619 = sld [smem:[#allocation2 + $0x67]]
    %v620 = vstv %s619
    %v621 = vmul.f32 %v40, %v620
    %v622 = vadd.f32 %v618, %v621
    %s623 = sld [smem:[#allocation2 + $0x68]]
    %v624 = vstv %s623
    %v625 = vmul.f32 %v42, %v624
    %v626 = vadd.f32 %v622, %v625
    %s627 = sld [smem:[#allocation2 + $0x69]]
    %v628 = vstv %s627
    %v629 = vmul.f32 %v87, %v628
    %v630 = vadd.f32 %v626, %v629
    %s631 = sld [smem:[#allocation2 + $0x6a]]
    %v632 = vstv %s631
    %v633 = vmul.f32 %v89, %v632
    %v634 = vadd.f32 %v630, %v633
    %s635 = sld [smem:[#allocation2 + $0x6b]]
    %v636 = vstv %s635
    %v637 = vmul.f32 %v43, %v636
    %v638 = vadd.f32 %v634, %v637
    %s639 = sld [smem:[#allocation2 + $0xd1]]
    %v640 = vstv %s639
    %v641 = vadd.f32 %v638, %v640
    %v642 = vmax.f32 %v641, 0.0
    %s643 = sld [smem:[#allocation2 + $0xf1]]
    %v644 = vstv %s643
    %v645 = vmul.f32 %v642, %v644
    %v646 = vadd.f32 %v615, %v645
    %s647 = sld [smem:[#allocation2 + $0x6c]]
    %v648 = vstv %s647
    %v649 = vmul.f32 %v38, %v648
    %s650 = sld [smem:[#allocation2 + $0x6d]]
    %v651 = vstv %s650
    %v652 = vmul.f32 %v40, %v651
    %v653 = vadd.f32 %v649, %v652
    %s654 = sld [smem:[#allocation2 + $0x6e]]
    %v655 = vstv %s654
    %v656 = vmul.f32 %v42, %v655
    %v657 = vadd.f32 %v653, %v656
    %s658 = sld [smem:[#allocation2 + $0x6f]]
    %v659 = vstv %s658
    %v660 = vmul.f32 %v87, %v659
    %v661 = vadd.f32 %v657, %v660
    %s662 = sld [smem:[#allocation2 + $0x70]]
    %v663 = vstv %s662
    %v664 = vmul.f32 %v89, %v663
    %v665 = vadd.f32 %v661, %v664
    %s666 = sld [smem:[#allocation2 + $0x71]]
    %v667 = vstv %s666
    %v668 = vmul.f32 %v43, %v667
    %v669 = vadd.f32 %v665, %v668
    %s670 = sld [smem:[#allocation2 + $0xd2]]
    %v671 = vstv %s670
    %v672 = vadd.f32 %v669, %v671
    %v673 = vmax.f32 %v672, 0.0
    %s674 = sld [smem:[#allocation2 + $0xf2]]
    %v675 = vstv %s674
    %v676 = vmul.f32 %v673, %v675
    %v677 = vadd.f32 %v646, %v676
    %s678 = sld [smem:[#allocation2 + $0x72]]
    %v679 = vstv %s678
    %v680 = vmul.f32 %v38, %v679
    %s681 = sld [smem:[#allocation2 + $0x73]]
    %v682 = vstv %s681
    %v683 = vmul.f32 %v40, %v682
    %v684 = vadd.f32 %v680, %v683
    %s685 = sld [smem:[#allocation2 + $0x74]]
    %v686 = vstv %s685
    %v687 = vmul.f32 %v42, %v686
    %v688 = vadd.f32 %v684, %v687
    %s689 = sld [smem:[#allocation2 + $0x75]]
    %v690 = vstv %s689
    %v691 = vmul.f32 %v87, %v690
    %v692 = vadd.f32 %v688, %v691
    %s693 = sld [smem:[#allocation2 + $0x76]]
    %v694 = vstv %s693
    %v695 = vmul.f32 %v89, %v694
    %v696 = vadd.f32 %v692, %v695
    %s697 = sld [smem:[#allocation2 + $0x77]]
    %v698 = vstv %s697
    %v699 = vmul.f32 %v43, %v698
    %v700 = vadd.f32 %v696, %v699
    %s701 = sld [smem:[#allocation2 + $0xd3]]
    %v702 = vstv %s701
    %v703 = vadd.f32 %v700, %v702
    %v704 = vmax.f32 %v703, 0.0
    %s705 = sld [smem:[#allocation2 + $0xf3]]
    %v706 = vstv %s705
    %v707 = vmul.f32 %v704, %v706
    %v708 = vadd.f32 %v677, %v707
    %s709 = sld [smem:[#allocation2 + $0x78]]
    %v710 = vstv %s709
    %v711 = vmul.f32 %v38, %v710
    %s712 = sld [smem:[#allocation2 + $0x79]]
    %v713 = vstv %s712
    %v714 = vmul.f32 %v40, %v713
    %v715 = vadd.f32 %v711, %v714
    %s716 = sld [smem:[#allocation2 + $0x7a]]
    %v717 = vstv %s716
    %v718 = vmul.f32 %v42, %v717
    %v719 = vadd.f32 %v715, %v718
    %s720 = sld [smem:[#allocation2 + $0x7b]]
    %v721 = vstv %s720
    %v722 = vmul.f32 %v87, %v721
    %v723 = vadd.f32 %v719, %v722
    %s724 = sld [smem:[#allocation2 + $0x7c]]
    %v725 = vstv %s724
    %v726 = vmul.f32 %v89, %v725
    %v727 = vadd.f32 %v723, %v726
    %s728 = sld [smem:[#allocation2 + $0x7d]]
    %v729 = vstv %s728
    %v730 = vmul.f32 %v43, %v729
    %v731 = vadd.f32 %v727, %v730
    %s732 = sld [smem:[#allocation2 + $0xd4]]
    %v733 = vstv %s732
    %v734 = vadd.f32 %v731, %v733
    %v735 = vmax.f32 %v734, 0.0
    %s736 = sld [smem:[#allocation2 + $0xf4]]
    %v737 = vstv %s736
    %v738 = vmul.f32 %v735, %v737
    %v739 = vadd.f32 %v708, %v738
    %s740 = sld [smem:[#allocation2 + $0x7e]]
    %v741 = vstv %s740
    %v742 = vmul.f32 %v38, %v741
    %s743 = sld [smem:[#allocation2 + $0x7f]]
    %v744 = vstv %s743
    %v745 = vmul.f32 %v40, %v744
    %v746 = vadd.f32 %v742, %v745
    %s747 = sld [smem:[#allocation2 + $0x80]]
    %v748 = vstv %s747
    %v749 = vmul.f32 %v42, %v748
    %v750 = vadd.f32 %v746, %v749
    %s751 = sld [smem:[#allocation2 + $0x81]]
    %v752 = vstv %s751
    %v753 = vmul.f32 %v87, %v752
    %v754 = vadd.f32 %v750, %v753
    %s755 = sld [smem:[#allocation2 + $0x82]]
    %v756 = vstv %s755
    %v757 = vmul.f32 %v89, %v756
    %v758 = vadd.f32 %v754, %v757
    %s759 = sld [smem:[#allocation2 + $0x83]]
    %v760 = vstv %s759
    %v761 = vmul.f32 %v43, %v760
    %v762 = vadd.f32 %v758, %v761
    %s763 = sld [smem:[#allocation2 + $0xd5]]
    %v764 = vstv %s763
    %v765 = vadd.f32 %v762, %v764
    %v766 = vmax.f32 %v765, 0.0
    %s767 = sld [smem:[#allocation2 + $0xf5]]
    %v768 = vstv %s767
    %v769 = vmul.f32 %v766, %v768
    %v770 = vadd.f32 %v739, %v769
    %s771 = sld [smem:[#allocation2 + $0x84]]
    %v772 = vstv %s771
    %v773 = vmul.f32 %v38, %v772
    %s774 = sld [smem:[#allocation2 + $0x85]]
    %v775 = vstv %s774
    %v776 = vmul.f32 %v40, %v775
    %v777 = vadd.f32 %v773, %v776
    %s778 = sld [smem:[#allocation2 + $0x86]]
    %v779 = vstv %s778
    %v780 = vmul.f32 %v42, %v779
    %v781 = vadd.f32 %v777, %v780
    %s782 = sld [smem:[#allocation2 + $0x87]]
    %v783 = vstv %s782
    %v784 = vmul.f32 %v87, %v783
    %v785 = vadd.f32 %v781, %v784
    %s786 = sld [smem:[#allocation2 + $0x88]]
    %v787 = vstv %s786
    %v788 = vmul.f32 %v89, %v787
    %v789 = vadd.f32 %v785, %v788
    %s790 = sld [smem:[#allocation2 + $0x89]]
    %v791 = vstv %s790
    %v792 = vmul.f32 %v43, %v791
    %v793 = vadd.f32 %v789, %v792
    %s794 = sld [smem:[#allocation2 + $0xd6]]
    %v795 = vstv %s794
    %v796 = vadd.f32 %v793, %v795
    %v797 = vmax.f32 %v796, 0.0
    %s798 = sld [smem:[#allocation2 + $0xf6]]
    %v799 = vstv %s798
    %v800 = vmul.f32 %v797, %v799
    %v801 = vadd.f32 %v770, %v800
    %s802 = sld [smem:[#allocation2 + $0x8a]]
    %v803 = vstv %s802
    %v804 = vmul.f32 %v38, %v803
    %s805 = sld [smem:[#allocation2 + $0x8b]]
    %v806 = vstv %s805
    %v807 = vmul.f32 %v40, %v806
    %v808 = vadd.f32 %v804, %v807
    %s809 = sld [smem:[#allocation2 + $0x8c]]
    %v810 = vstv %s809
    %v811 = vmul.f32 %v42, %v810
    %v812 = vadd.f32 %v808, %v811
    %s813 = sld [smem:[#allocation2 + $0x8d]]
    %v814 = vstv %s813
    %v815 = vmul.f32 %v87, %v814
    %v816 = vadd.f32 %v812, %v815
    %s817 = sld [smem:[#allocation2 + $0x8e]]
    %v818 = vstv %s817
    %v819 = vmul.f32 %v89, %v818
    %v820 = vadd.f32 %v816, %v819
    %s821 = sld [smem:[#allocation2 + $0x8f]]
    %v822 = vstv %s821
    %v823 = vmul.f32 %v43, %v822
    %v824 = vadd.f32 %v820, %v823
    %s825 = sld [smem:[#allocation2 + $0xd7]]
    %v826 = vstv %s825
    %v827 = vadd.f32 %v824, %v826
    %v828 = vmax.f32 %v827, 0.0
    %s829 = sld [smem:[#allocation2 + $0xf7]]
    %v830 = vstv %s829
    %v831 = vmul.f32 %v828, %v830
    %v832 = vadd.f32 %v801, %v831
    %s833 = sld [smem:[#allocation2 + $0x90]]
    %v834 = vstv %s833
    %v835 = vmul.f32 %v38, %v834
    %s836 = sld [smem:[#allocation2 + $0x91]]
    %v837 = vstv %s836
    %v838 = vmul.f32 %v40, %v837
    %v839 = vadd.f32 %v835, %v838
    %s840 = sld [smem:[#allocation2 + $0x92]]
    %v841 = vstv %s840
    %v842 = vmul.f32 %v42, %v841
    %v843 = vadd.f32 %v839, %v842
    %s844 = sld [smem:[#allocation2 + $0x93]]
    %v845 = vstv %s844
    %v846 = vmul.f32 %v87, %v845
    %v847 = vadd.f32 %v843, %v846
    %s848 = sld [smem:[#allocation2 + $0x94]]
    %v849 = vstv %s848
    %v850 = vmul.f32 %v89, %v849
    %v851 = vadd.f32 %v847, %v850
    %s852 = sld [smem:[#allocation2 + $0x95]]
    %v853 = vstv %s852
    %v854 = vmul.f32 %v43, %v853
    %v855 = vadd.f32 %v851, %v854
    %s856 = sld [smem:[#allocation2 + $0xd8]]
    %v857 = vstv %s856
    %v858 = vadd.f32 %v855, %v857
    %v859 = vmax.f32 %v858, 0.0
    %s860 = sld [smem:[#allocation2 + $0xf8]]
    %v861 = vstv %s860
    %v862 = vmul.f32 %v859, %v861
    %v863 = vadd.f32 %v832, %v862
    %s864 = sld [smem:[#allocation2 + $0x96]]
    %v865 = vstv %s864
    %v866 = vmul.f32 %v38, %v865
    %s867 = sld [smem:[#allocation2 + $0x97]]
    %v868 = vstv %s867
    %v869 = vmul.f32 %v40, %v868
    %v870 = vadd.f32 %v866, %v869
    %s871 = sld [smem:[#allocation2 + $0x98]]
    %v872 = vstv %s871
    %v873 = vmul.f32 %v42, %v872
    %v874 = vadd.f32 %v870, %v873
    %s875 = sld [smem:[#allocation2 + $0x99]]
    %v876 = vstv %s875
    %v877 = vmul.f32 %v87, %v876
    %v878 = vadd.f32 %v874, %v877
    %s879 = sld [smem:[#allocation2 + $0x9a]]
    %v880 = vstv %s879
    %v881 = vmul.f32 %v89, %v880
    %v882 = vadd.f32 %v878, %v881
    %s883 = sld [smem:[#allocation2 + $0x9b]]
    %v884 = vstv %s883
    %v885 = vmul.f32 %v43, %v884
    %v886 = vadd.f32 %v882, %v885
    %s887 = sld [smem:[#allocation2 + $0xd9]]
    %v888 = vstv %s887
    %v889 = vadd.f32 %v886, %v888
    %v890 = vmax.f32 %v889, 0.0
    %s891 = sld [smem:[#allocation2 + $0xf9]]
    %v892 = vstv %s891
    %v893 = vmul.f32 %v890, %v892
    %v894 = vadd.f32 %v863, %v893
    %s895 = sld [smem:[#allocation2 + $0x9c]]
    %v896 = vstv %s895
    %v897 = vmul.f32 %v38, %v896
    %s898 = sld [smem:[#allocation2 + $0x9d]]
    %v899 = vstv %s898
    %v900 = vmul.f32 %v40, %v899
    %v901 = vadd.f32 %v897, %v900
    %s902 = sld [smem:[#allocation2 + $0x9e]]
    %v903 = vstv %s902
    %v904 = vmul.f32 %v42, %v903
    %v905 = vadd.f32 %v901, %v904
    %s906 = sld [smem:[#allocation2 + $0x9f]]
    %v907 = vstv %s906
    %v908 = vmul.f32 %v87, %v907
    %v909 = vadd.f32 %v905, %v908
    %s910 = sld [smem:[#allocation2 + $0xa0]]
    %v911 = vstv %s910
    %v912 = vmul.f32 %v89, %v911
    %v913 = vadd.f32 %v909, %v912
    %s914 = sld [smem:[#allocation2 + $0xa1]]
    %v915 = vstv %s914
    %v916 = vmul.f32 %v43, %v915
    %v917 = vadd.f32 %v913, %v916
    %s918 = sld [smem:[#allocation2 + $0xda]]
    %v919 = vstv %s918
    %v920 = vadd.f32 %v917, %v919
    %v921 = vmax.f32 %v920, 0.0
    %s922 = sld [smem:[#allocation2 + $0xfa]]
    %v923 = vstv %s922
    %v924 = vmul.f32 %v921, %v923
    %v925 = vadd.f32 %v894, %v924
    %s926 = sld [smem:[#allocation2 + $0xa2]]
    %v927 = vstv %s926
    %v928 = vmul.f32 %v38, %v927
    %s929 = sld [smem:[#allocation2 + $0xa3]]
    %v930 = vstv %s929
    %v931 = vmul.f32 %v40, %v930
    %v932 = vadd.f32 %v928, %v931
    %s933 = sld [smem:[#allocation2 + $0xa4]]
    %v934 = vstv %s933
    %v935 = vmul.f32 %v42, %v934
    %v936 = vadd.f32 %v932, %v935
    %s937 = sld [smem:[#allocation2 + $0xa5]]
    %v938 = vstv %s937
    %v939 = vmul.f32 %v87, %v938
    %v940 = vadd.f32 %v936, %v939
    %s941 = sld [smem:[#allocation2 + $0xa6]]
    %v942 = vstv %s941
    %v943 = vmul.f32 %v89, %v942
    %v944 = vadd.f32 %v940, %v943
    %s945 = sld [smem:[#allocation2 + $0xa7]]
    %v946 = vstv %s945
    %v947 = vmul.f32 %v43, %v946
    %v948 = vadd.f32 %v944, %v947
    %s949 = sld [smem:[#allocation2 + $0xdb]]
    %v950 = vstv %s949
    %v951 = vadd.f32 %v948, %v950
    %v952 = vmax.f32 %v951, 0.0
    %s953 = sld [smem:[#allocation2 + $0xfb]]
    %v954 = vstv %s953
    %v955 = vmul.f32 %v952, %v954
    %v956 = vadd.f32 %v925, %v955
    %s957 = sld [smem:[#allocation2 + $0xa8]]
    %v958 = vstv %s957
    %v959 = vmul.f32 %v38, %v958
    %s960 = sld [smem:[#allocation2 + $0xa9]]
    %v961 = vstv %s960
    %v962 = vmul.f32 %v40, %v961
    %v963 = vadd.f32 %v959, %v962
    %s964 = sld [smem:[#allocation2 + $0xaa]]
    %v965 = vstv %s964
    %v966 = vmul.f32 %v42, %v965
    %v967 = vadd.f32 %v963, %v966
    %s968 = sld [smem:[#allocation2 + $0xab]]
    %v969 = vstv %s968
    %v970 = vmul.f32 %v87, %v969
    %v971 = vadd.f32 %v967, %v970
    %s972 = sld [smem:[#allocation2 + $0xac]]
    %v973 = vstv %s972
    %v974 = vmul.f32 %v89, %v973
    %v975 = vadd.f32 %v971, %v974
    %s976 = sld [smem:[#allocation2 + $0xad]]
    %v977 = vstv %s976
    %v978 = vmul.f32 %v43, %v977
    %v979 = vadd.f32 %v975, %v978
    %s980 = sld [smem:[#allocation2 + $0xdc]]
    %v981 = vstv %s980
    %v982 = vadd.f32 %v979, %v981
    %v983 = vmax.f32 %v982, 0.0
    %s984 = sld [smem:[#allocation2 + $0xfc]]
    %v985 = vstv %s984
    %v986 = vmul.f32 %v983, %v985
    %v987 = vadd.f32 %v956, %v986
    %s988 = sld [smem:[#allocation2 + $0xae]]
    %v989 = vstv %s988
    %v990 = vmul.f32 %v38, %v989
    %s991 = sld [smem:[#allocation2 + $0xaf]]
    %v992 = vstv %s991
    %v993 = vmul.f32 %v40, %v992
    %v994 = vadd.f32 %v990, %v993
    %s995 = sld [smem:[#allocation2 + $0xb0]]
    %v996 = vstv %s995
    %v997 = vmul.f32 %v42, %v996
    %v998 = vadd.f32 %v994, %v997
    %s999 = sld [smem:[#allocation2 + $0xb1]]
    %v1000 = vstv %s999
    %v1001 = vmul.f32 %v87, %v1000
    %v1002 = vadd.f32 %v998, %v1001
    %s1003 = sld [smem:[#allocation2 + $0xb2]]
    %v1004 = vstv %s1003
    %v1005 = vmul.f32 %v89, %v1004
    %v1006 = vadd.f32 %v1002, %v1005
    %s1007 = sld [smem:[#allocation2 + $0xb3]]
    %v1008 = vstv %s1007
    %v1009 = vmul.f32 %v43, %v1008
    %v1010 = vadd.f32 %v1006, %v1009
    %s1011 = sld [smem:[#allocation2 + $0xdd]]
    %v1012 = vstv %s1011
    %v1013 = vadd.f32 %v1010, %v1012
    %v1014 = vmax.f32 %v1013, 0.0
    %s1015 = sld [smem:[#allocation2 + $0xfd]]
    %v1016 = vstv %s1015
    %v1017 = vmul.f32 %v1014, %v1016
    %v1018 = vadd.f32 %v987, %v1017
    %s1019 = sld [smem:[#allocation2 + $0xb4]]
    %v1020 = vstv %s1019
    %v1021 = vmul.f32 %v38, %v1020
    %s1022 = sld [smem:[#allocation2 + $0xb5]]
    %v1023 = vstv %s1022
    %v1024 = vmul.f32 %v40, %v1023
    %v1025 = vadd.f32 %v1021, %v1024
    %s1026 = sld [smem:[#allocation2 + $0xb6]]
    %v1027 = vstv %s1026
    %v1028 = vmul.f32 %v42, %v1027
    %v1029 = vadd.f32 %v1025, %v1028
    %s1030 = sld [smem:[#allocation2 + $0xb7]]
    %v1031 = vstv %s1030
    %v1032 = vmul.f32 %v87, %v1031
    %v1033 = vadd.f32 %v1029, %v1032
    %s1034 = sld [smem:[#allocation2 + $0xb8]]
    %v1035 = vstv %s1034
    %v1036 = vmul.f32 %v89, %v1035
    %v1037 = vadd.f32 %v1033, %v1036
    %s1038 = sld [smem:[#allocation2 + $0xb9]]
    %v1039 = vstv %s1038
    %v1040 = vmul.f32 %v43, %v1039
    %v1041 = vadd.f32 %v1037, %v1040
    %s1042 = sld [smem:[#allocation2 + $0xde]]
    %v1043 = vstv %s1042
    %v1044 = vadd.f32 %v1041, %v1043
    %v1045 = vmax.f32 %v1044, 0.0
    %s1046 = sld [smem:[#allocation2 + $0xfe]]
    %v1047 = vstv %s1046
    %v1048 = vmul.f32 %v1045, %v1047
    %v1049 = vadd.f32 %v1018, %v1048
    %s1050 = sld [smem:[#allocation2 + $0xba]]
    %v1051 = vstv %s1050
    %v1052 = vmul.f32 %v38, %v1051
    %s1053 = sld [smem:[#allocation2 + $0xbb]]
    %v1054 = vstv %s1053
    %v1055 = vmul.f32 %v40, %v1054
    %v1056 = vadd.f32 %v1052, %v1055
    %s1057 = sld [smem:[#allocation2 + $0xbc]]
    %v1058 = vstv %s1057
    %v1059 = vmul.f32 %v42, %v1058
    %v1060 = vadd.f32 %v1056, %v1059
    %s1061 = sld [smem:[#allocation2 + $0xbd]]
    %v1062 = vstv %s1061
    %v1063 = vmul.f32 %v87, %v1062
    %v1064 = vadd.f32 %v1060, %v1063
    %s1065 = sld [smem:[#allocation2 + $0xbe]]
    %v1066 = vstv %s1065
    %v1067 = vmul.f32 %v89, %v1066
    %v1068 = vadd.f32 %v1064, %v1067
    %s1069 = sld [smem:[#allocation2 + $0xbf]]
    %v1070 = vstv %s1069
    %v1071 = vmul.f32 %v43, %v1070
    %v1072 = vadd.f32 %v1068, %v1071
    %s1073 = sld [smem:[#allocation2 + $0xdf]]
    %v1074 = vstv %s1073
    %v1075 = vadd.f32 %v1072, %v1074
    %v1076 = vmax.f32 %v1075, 0.0
    %s1077 = sld [smem:[#allocation2 + $0xff]]
    %v1078 = vstv %s1077
    %v1079 = vmul.f32 %v1076, %v1078
    %v1080 = vadd.f32 %v1049, %v1079
    %s1081 = sld [smem:[#allocation2 + $0x100]]
    %v1082 = vstv %s1081
    %v1083 = vadd.f32 %v1080, %v1082
    %v1084 = vsub.f32 0.0, %v1083
    %v1085 = vmul.f32 %v1084, 1.442695
    %v1086 = vpow.pop %v1085
    %v1087 = vadd.f32 %v1086, 1.0
    %v1088 = vrcp.pop %v1087
    %v1089 = vmul.f32 %v1087, %v1088
    %v1090 = vsub.f32 1.0, %v1089
    %v1091 = vmul.f32 %v1088, %v1090
    %v1092 = vadd.f32 %v1088, %v1091
    %vm1093 = vweird.f32 %v1087
    %vm1094 = vweird.f32 %v1088
    %vm1095 = vmor %vm1093, %vm1094
    %v1096 = vsel %vm1095, %v1088, %v1092
    %v1097 = vand.u32 2147483647, %v1087
    %vm1098 = vcmp.eq.f32.partialorder %v1097, 8.507059e+37
    %v1099 = vand.u32 %v1087, 2147483648
    %v1100 = vor.u32 1.1754944e-38, %v1099
    %v1101 = vsel %vm1098, %v1100, %v1096
    %v1102 = vmul.f32 1.0, %v1101
    %vm1103 = vcmp.ge.f32.partialorder %v40, %v50
    %v1104 = vsel %vm1103, 1, 0
    %v1105 = vcvt.s32.f32 %v1104
    %v1106 = vmul.f32 %v38, %v1105
    %vm1107 = vcmp.lt.f32.partialorder %v40, %v50
    %v1108 = vsel %vm1107, 1, 0
    %v1109 = vcvt.s32.f32 %v1108
    %v1110 = vmul.f32 %v38, %v1109
    %v1111 = vsub.f32 %v40, %v54
    %v1112 = vmul.f32 %v52, %v1111
    %v1113 = vmax.f32 %v1112, 0.0
    %v1114 = vmin.f32 %v43, %v1113
    %v1115 = vmul.f32 %v43, %v1102
    %v1116 = vsub.f32 %v43, %v1114
    %v1117 = vmin.f32 %v1115, %v1116
    %v1118 = vsub.f32 %v1116, %v1117
    %v1119 = vadd.f32 %v1118, %v1110
    %v1120 = vsub.f32 %v42, %v1117
    %v1121 = vmax.f32 %v1120, 0.0
    %v1122 = vmax.f32 %v45, 0.0
    %v1123 = vmin.f32 %v1121, %v1122
    %v1124 = vadd.f32 %v1106, %v45
    %v1125 = vsub.f32 %v1124, %v60
    %v1126 = vmax.f32 %v1125, 0.0
    %v1127 = vsub.f32 %v1124, %v1123
    %v1128 = vsub.f32 %v1127, %v1126
    %v1129 = vmax.f32 %v1128, 0.0
    %v1130 = vmin.f32 %v60, %v1129
    %v1131 = vadd.f32 %v49, %v47
    %v1132 = vsub.f32 %v58, 0.0003
    %v1133 = vmin.f32 %v1131, %v1132
    %vm1134 = vcmp.lt.f32.partialorder %v85, 0.0
    %v1135 = vsel %vm1134, %v49, 0.0
    %v1136 = vsel %vm1134, %v1133, %v49
    %v1137 = vsub.f32 %v1136, %v1135
    %v1138 = vmul.f32 %v1137, %v63
    %v1139 = vadd.f32 %v1135, %v1138
    %v1140 = vsub.f32 %v1133, %v1139
    %v1141 = vmax.f32 %v1140, 0.0003
    %v1142 = vsub.f32 0.0, %v61
    %v1143 = vsub.f32 %v58, %v1139
    %v1144 = vsub.f32 %v1143, %v1141
    %v1145 = vmul.f32 %v1142, %v1144
    %v1146 = vmul.f32 %v1145, 1.442695
    %v1147 = vpow.pop %v1146
    %v1148 = vmul.f32 %v56, %v1147
    %v1149 = vsub.f32 %v1141, 0.0003
    %v1150 = vmin.f32 %v1149, %v56
    %v1151 = vmax.f32 %v1148, 0.0
    %v1152 = vmin.f32 %v1150, %v1151
    %v1153 = vrcp.pop %v1143
    %v1154 = vmul.f32 %v1143, %v1153
    %v1155 = vsub.f32 1.0, %v1154
    %v1156 = vmul.f32 %v1153, %v1155
    %v1157 = vadd.f32 %v1153, %v1156
    %vm1158 = vweird.f32 %v1143
    %vm1159 = vweird.f32 %v1153
    %vm1160 = vmor %vm1158, %vm1159
    %v1161 = vsel %vm1160, %v1153, %v1157
    %v1162 = vand.u32 2147483647, %v1143
    %vm1163 = vcmp.eq.f32.partialorder %v1162, 8.507059e+37
    %v1164 = vand.u32 %v1143, 2147483648
    %v1165 = vor.u32 1.1754944e-38, %v1164
    %v1166 = vsel %vm1163, %v1165, %v1161
    %v1167 = vmul.f32 %v1141, %v1166
    %v1168 = vmax.f32 %v1167, 0.0
    %v1169 = vmin.f32 %v1168, 1.0
    %v1170 = vsub.f32 %v42, %v1123
    %v1171 = vsub.f32 %v1170, %v1117
    %v1172 = vmul.f32 %v1171, %v1169
    %v1173 = vsub.f32 %v1141, %v1152
    %v1174 = vmax.f32 %v1173, 0.0
    %v1175 = vmax.f32 %v1172, 0.0
    %v1176 = vmin.f32 %v1174, %v1175
    %v1177 = vadd.f32 %v1141, %v1126
    %v1178 = vadd.f32 %v1177, %v1114
    %v1179 = vsub.f32 %v1178, %v1176
    %v1180 = vsub.f32 %v1179, %v1152
    %v1181 = vsub.f32 %v1180, %v1143
    %v1182 = vmax.f32 %v1181, 0.0
    %v1183 = vsub.f32 %v1180, %v1182
    %1184 = vst [vmem:[%s6] sm:$0xff] %v1119
    %s1185 = scalar_lea.vmem %s6, 8
    %1186 = vst [vmem:[%s1185] sm:$0xff] %v1130
    %v1187 = vadd.f32 %v1183, %v1139
    %s1188 = scalar_lea.vmem %s6, 16
    %1189 = vst [vmem:[%s1188] sm:$0xff] %v1187
    %s1190 = scalar_lea.vmem %s6, 24
    %1191 = vst [vmem:[%s1190] sm:$0xff] %v1152
    %s1192 = scalar_lea.vmem %s6, 32
    %1193 = vst [vmem:[%s1192] sm:$0xff] %v1182
    %v1194 = vadd.f32 %v1117, %v1123
    %v1195 = vadd.f32 %v1194, %v1176
    %s1196 = scalar_lea.vmem %s6, 40
    %1197 = vst [vmem:[%s1196] sm:$0xff] %v1195
    %s1198 = scalar_lea.vmem %s6, 48
    %1199 = vst [vmem:[%s1198] sm:$0xff] %v1117
    %s1200 = scalar_lea.vmem %s6, 56
    %1201 = vst [vmem:[%s1200] sm:$0xff] %v1123
    %s1202 = scalar_lea.vmem %s6, 64
    %1203 = vst [vmem:[%s1202] sm:$0xff] %v1176
    %s1204 = scalar_lea.vmem %s6, 72
    %1205 = vst [vmem:[%s1204] sm:$0xff] %v1183
    %s1206 = scalar_lea.vmem %s6, 80
    %1207 = vst [vmem:[%s1206] sm:$0xff] %v1139
    %s1208 = scalar_lea.vmem %s6, 88
    %1209 = vst [vmem:[%s1208] sm:$0xff] %v63
    // Predicated region
    $region30: #{exphydro_forward.1} parent=1 // pred_check
      _
    $region31: #{exphydro_forward.1} parent=1 // pred_check_branch
      %1211 = sbr.rel (0) target = $region33
    $region32: #{exphydro_forward.1} parent=1 // pred_region
      _
    $region33: #{exphydro_forward.1} parent=1 // pred_fallthru
      _
    // Predicated region
    $region34: #{exphydro_forward.1} parent=1 // pred_check
      _
    $region35: #{exphydro_forward.1} parent=1 // pred_check_branch
      %1213 = sbr.rel (0) target = $region37
    $region36: #{exphydro_forward.1} parent=1 // pred_region
      _
    $region37: #{exphydro_forward.1} parent=1 // pred_fallthru
      _
    // Predicated region
    $region38: #{exphydro_forward.1} parent=1 // pred_check
      _
    $region39: #{exphydro_forward.1} parent=1 // pred_check_branch
      %1215 = sbr.rel (0) target = $region41
    $region40: #{exphydro_forward.1} parent=1 // pred_region
      _
    $region41: #{exphydro_forward.1} parent=1 // pred_fallthru
      _
    // Predicated region
    $region42: #{exphydro_forward.1} parent=1 // pred_check
      _
    $region43: #{exphydro_forward.1} parent=1 // pred_check_branch
      %1217 = sbr.rel (0) target = $region45
    $region44: #{exphydro_forward.1} parent=1 // pred_region
      _
    $region45: #{exphydro_forward.1} parent=1 // pred_fallthru
      _
    %1218 = vsyncpa [#allocation3], 1

</llo_original>
